<compile_context>
chip_gen: v7x
topology: tpu7x:2x2x1
jax: 0.10.0
libtpu: 0.0.40
codegen_flags: <defaults>
</compile_context>

<pallas_src>
import math
import functools

import jax
import jax.numpy as jnp
from jax.experimental import pallas as pl
from jax.experimental.pallas import tpu as pltpu


# ------------------------------ small helpers ------------------------------

def _round_up(x, m):
    return (x + m - 1) // m * m


@functools.lru_cache(maxsize=None)
def _vmem_limit_bytes():
    """Per-chip VMEM limit: half of physical VMEM, capped at 64 MiB."""
    try:
        cap = pltpu.get_tpu_info().vmem_capacity_bytes
    except Exception:  # interpreter / API drift: stay conservative (v7x-safe)
        return 32 * 1024 * 1024
    return max(16 * 1024 * 1024, min(cap // 2, 64 * 1024 * 1024))


def _row_tile(rows, max_tile=512):
    """Largest multiple-of-8 divisor of `rows` <= max_tile that yields >= 2
    row blocks (keeps the leading 'parallel' axis splittable across v7x TCs);
    falls back to a single full-extent block."""
    start = min(rows // 2, max_tile) // 8 * 8
    for t in range(start, 7, -8):
        if rows % t == 0:
            return t
    return rows


def _col_tile(n, max_tile=512):
    if n <= max_tile:
        return n
    for t in range(max_tile // 128 * 128, 127, -128):
        if n % t == 0:
            return t
    return n


# --------------------------- in-kernel math helpers -------------------------

def _layer_norm(y, gamma, beta, eps):
    mu = jnp.mean(y, axis=-1, keepdims=True)
    var = jnp.mean(jnp.square(y - mu), axis=-1, keepdims=True)
    return (y - mu) * jax.lax.rsqrt(var + eps) * gamma + beta


def _per_head_attention(q_all, k_all, v_all, num_heads, mask):
    """q_all (Tq, E), k_all/v_all (Tk, E) f32; mask broadcastable to (Tq, Tk) or None.
    Returns the head-merged (Tq, E) context (f32)."""
    E = q_all.shape[-1]
    dk = E // num_heads
    scale = 1.0 / math.sqrt(dk)
    outs = []
    for h in range(num_heads):            # static head loop, lane slices
        q = (q_all[:, h * dk:(h + 1) * dk] * scale).astype(jnp.bfloat16)
        k = k_all[:, h * dk:(h + 1) * dk].astype(jnp.bfloat16)
        v = v_all[:, h * dk:(h + 1) * dk].astype(jnp.bfloat16)
        s = jnp.einsum("qd,kd->qk", q, k, preferred_element_type=jnp.float32)
        if mask is not None:
            s = s + mask
        s = s - jnp.max(s, axis=-1, keepdims=True)
        p = jnp.exp(s)
        l = jnp.sum(p, axis=-1, keepdims=True)
        o = jnp.dot(p.astype(jnp.bfloat16), v, preferred_element_type=jnp.float32)
        outs.append(o * pl.reciprocal(l, approx=True))
    return jnp.concatenate(outs, axis=-1)


# ------------------------------ Pallas kernels ------------------------------

def _self_attn_block_kernel(x_ref, wqkv_ref, bqkv_ref, wo_ref, bo_ref,
                            mask_ref, g_ref, bt_ref, o_ref, *, num_heads, eps):
    """Per-batch fused: LN(x + OutProj(SDPA(QKVProj(x), causal_mask)))."""
    E = x_ref.shape[-1]
    x = x_ref[...]                                               # (T, E) f32
    qkv = jnp.dot(x.astype(jnp.bfloat16), wqkv_ref[...],
                  preferred_element_type=jnp.float32) + bqkv_ref[...]   # (T, 3E)
    ctx = _per_head_attention(qkv[:, :E], qkv[:, E:2 * E], qkv[:, 2 * E:],
                              num_heads, mask_ref[...])          # (T, E)
    y = jnp.dot(ctx.astype(jnp.bfloat16), wo_ref[...],
                preferred_element_type=jnp.float32) + bo_ref[...] + x
    o_ref[...] = _layer_norm(y, g_ref[...], bt_ref[...], eps).astype(o_ref.dtype)


def _cross_attn_block_kernel(x_ref, mem_ref, wq_ref, bq_ref, wkv_ref, bkv_ref,
                             wo_ref, bo_ref, g_ref, bt_ref, o_ref,
                             *, num_heads, s_valid, eps):
    """Per-batch fused cross-attention block (no attention mask; padded keys
    masked with a static iota mask when S was padded to a sublane multiple)."""
    E = x_ref.shape[-1]
    s_pad = mem_ref.shape[1]
    x = x_ref[...]                                               # (T, E)
    mem = mem_ref[0]                                             # (S_pad, E)
    q_all = jnp.dot(x.astype(jnp.bfloat16), wq_ref[...],
                    preferred_element_type=jnp.float32) + bq_ref[...]     # (T, E)
    kv = jnp.dot(mem.astype(jnp.bfloat16), wkv_ref[...],
                 preferred_element_type=jnp.float32) + bkv_ref[...]       # (S_pad, 2E)
    if s_valid < s_pad:
        kidx = jax.lax.broadcasted_iota(jnp.int32, (1, s_pad), 1)
        kmask = jnp.where(kidx < s_valid, 0.0, -1e30).astype(jnp.float32)
    else:
        kmask = None
    ctx = _per_head_attention(q_all, kv[:, :E], kv[:, E:], num_heads, kmask)
    y = jnp.dot(ctx.astype(jnp.bfloat16), wo_ref[...],
                preferred_element_type=jnp.float32) + bo_ref[...] + x
    o_ref[...] = _layer_norm(y, g_ref[...], bt_ref[...], eps).astype(o_ref.dtype)


def _ffn_block_kernel(x_ref, w1_ref, b1_ref, w2_ref, b2_ref, g_ref, bt_ref,
                      o_ref, *, eps):
    """Fused: LN(x + W2 @ relu(W1 @ x + b1) + b2)."""
    x = x_ref[...]
    h = jnp.maximum(jnp.dot(x.astype(jnp.bfloat16), w1_ref[...],
                            preferred_element_type=jnp.float32) + b1_ref[...], 0.0)
    y = jnp.dot(h.astype(jnp.bfloat16), w2_ref[...],
                preferred_element_type=jnp.float32) + b2_ref[...] + x
    o_ref[...] = _layer_norm(y, g_ref[...], bt_ref[...], eps).astype(o_ref.dtype)


def _linear_kernel(x_ref, w_ref, b_ref, o_ref):
    """Tiled y = x @ w + b; accumulates directly into the resident f32 output."""
    k = pl.program_id(2)

    @pl.when(k == 0)
    def _():
        o_ref[...] = jnp.zeros_like(o_ref)

    o_ref[...] += jnp.dot(x_ref[...].astype(jnp.bfloat16), w_ref[...],
                          preferred_element_type=jnp.float32)

    @pl.when(k == pl.num_programs(2) - 1)
    def _():
        o_ref[...] += b_ref[...]


# ------------------------------ kernel wrappers ------------------------------

def self_attn_block(x2d, mask, p, num_heads, B, T, ln_g, ln_b, eps=1e-5):
    E = x2d.shape[1]
    return pl.pallas_call(
        functools.partial(_self_attn_block_kernel, num_heads=num_heads, eps=eps),
        out_shape=jax.ShapeDtypeStruct((B * T, E), jnp.float32),
        grid=(B,),
        in_specs=[
            pl.BlockSpec((T, E), lambda b: (b, 0)),
            pl.BlockSpec((E, 3 * E), lambda b: (0, 0)),
            pl.BlockSpec((1, 3 * E), lambda b: (0, 0)),
            pl.BlockSpec((E, E), lambda b: (0, 0)),
            pl.BlockSpec((1, E), lambda b: (0, 0)),
            pl.BlockSpec((T, T), lambda b: (0, 0)),
            pl.BlockSpec((1, E), lambda b: (0, 0)),
            pl.BlockSpec((1, E), lambda b: (0, 0)),
        ],
        out_specs=pl.BlockSpec((T, E), lambda b: (b, 0)),
        compiler_params=pltpu.CompilerParams(
            dimension_semantics=("parallel",),
            vmem_limit_bytes=_vmem_limit_bytes()),
    )(x2d, p["w_qkv"], p["b_qkv"], p["wo"], p["bo"], mask, ln_g, ln_b)


def cross_attn_block(x2d, mem, s_valid, p, num_heads, B, T, ln_g, ln_b, eps=1e-5):
    E = x2d.shape[1]
    s_pad = mem.shape[1]
    return pl.pallas_call(
        functools.partial(_cross_attn_block_kernel, num_heads=num_heads,
                          s_valid=s_valid, eps=eps),
        out_shape=jax.ShapeDtypeStruct((B * T, E), jnp.float32),
        grid=(B,),
        in_specs=[
            pl.BlockSpec((T, E), lambda b: (b, 0)),
            pl.BlockSpec((1, s_pad, E), lambda b: (b, 0, 0)),
            pl.BlockSpec((E, E), lambda b: (0, 0)),
            pl.BlockSpec((1, E), lambda b: (0, 0)),
            pl.BlockSpec((E, 2 * E), lambda b: (0, 0)),
            pl.BlockSpec((1, 2 * E), lambda b: (0, 0)),
            pl.BlockSpec((E, E), lambda b: (0, 0)),
            pl.BlockSpec((1, E), lambda b: (0, 0)),
            pl.BlockSpec((1, E), lambda b: (0, 0)),
            pl.BlockSpec((1, E), lambda b: (0, 0)),
        ],
        out_specs=pl.BlockSpec((T, E), lambda b: (b, 0)),
        compiler_params=pltpu.CompilerParams(
            dimension_semantics=("parallel",),
            vmem_limit_bytes=_vmem_limit_bytes()),
    )(x2d, mem, p["wq"], p["bq"], p["w_kv"], p["b_kv"], p["wo"], p["bo"],
      ln_g, ln_b)


def ffn_block(x2d, p, ln_g, ln_b, eps=1e-5):
    M, E = x2d.shape
    FF = p["ff_w1"].shape[1]
    tm = _row_tile(M)
    return pl.pallas_call(
        functools.partial(_ffn_block_kernel, eps=eps),
        out_shape=jax.ShapeDtypeStruct((M, E), jnp.float32),
        grid=(M // tm,),
        in_specs=[
            pl.BlockSpec((tm, E), lambda i: (i, 0)),
            pl.BlockSpec((E, FF), lambda i: (0, 0)),
            pl.BlockSpec((1, FF), lambda i: (0, 0)),
            pl.BlockSpec((FF, E), lambda i: (0, 0)),
            pl.BlockSpec((1, E), lambda i: (0, 0)),
            pl.BlockSpec((1, E), lambda i: (0, 0)),
            pl.BlockSpec((1, E), lambda i: (0, 0)),
        ],
        out_specs=pl.BlockSpec((tm, E), lambda i: (i, 0)),
        compiler_params=pltpu.CompilerParams(
            dimension_semantics=("parallel",),
            vmem_limit_bytes=_vmem_limit_bytes()),
    )(x2d, p["ff_w1"], p["ff_b1"], p["ff_w2"], p["ff_b2"], ln_g, ln_b)


def linear(x, w, b):
    """y = x @ w + b. w is pre-padded bf16 (K, N), b is f32 (1, N)."""
    M, K = x.shape
    N = w.shape[1]
    Mp = _round_up(M, 8)
    if Mp != M:
        x = jnp.pad(x, ((0, Mp - M), (0, 0)))
    tm = _row_tile(Mp)
    tn = _col_tile(N)
    tk = _col_tile(K)
    grid = (Mp // tm, N // tn, K // tk)

    out = pl.pallas_call(
        _linear_kernel,
        out_shape=jax.ShapeDtypeStruct((Mp, N), jnp.float32),
        grid=grid,
        in_specs=[
            pl.BlockSpec((tm, tk), lambda i, j, k: (i, k)),
            pl.BlockSpec((tk, tn), lambda i, j, k: (k, j)),
            pl.BlockSpec((1, tn), lambda i, j, k: (0, j)),
        ],
        out_specs=pl.BlockSpec((tm, tn), lambda i, j, k: (i, j)),
        compiler_params=pltpu.CompilerParams(
            dimension_semantics=("parallel", "parallel", "arbitrary"),
            vmem_limit_bytes=_vmem_limit_bytes()),
    )(x, w, b)
    return out[:M] if Mp != M else out


# ------------------------------ Model (glue) --------------------------------

def create_positional_embedding(max_len, embed_dim):
    position = jnp.arange(max_len, dtype=jnp.float32)[:, None]
    div_term = jnp.exp(jnp.arange(0, embed_dim, 2, dtype=jnp.float32)
                       * (-math.log(10000.0) / embed_dim))
    pe = jnp.zeros((max_len, 1, embed_dim), jnp.float32)
    pe = pe.at[:, 0, 0::2].set(jnp.sin(position * div_term))
    pe = pe.at[:, 0, 1::2].set(jnp.cos(position * div_term))
    return pe


def transformer_decoder_forward(dec_in, enc_out, params, num_heads,
                                num_layers, trg_vocab):
    # dec_in: (T, B) int32 token ids; enc_out: (S, B, E). Returns (T, B, V).
    T, B = dec_in.shape
    S = enc_out.shape[0]
    E = params["emb_table"].shape[1]
    assert T % 8 == 0 and E % num_heads == 0

    embedded = jnp.take(params["emb_table"], dec_in, axis=0)     # (T, B, E)
    x = embedded + params["pos_emb"][:T]                         # + (T, 1, E)
    # dropout: identity (eval mode)

    # batch-major lane-dense slab: row = b*T + t
    x2d = x.transpose(1, 0, 2).reshape(B * T, E)

    # memory, batch-major, S padded to a sublane multiple (padded keys masked
    # inside the cross-attention kernel)
    s_pad = _round_up(S, 8)
    mem = enc_out.transpose(1, 0, 2)                             # (B, S, E)
    if s_pad != S:
        mem = jnp.pad(mem, ((0, 0), (0, s_pad - S), (0, 0)))

    # intended causal (T, T) mask
    rows = jnp.arange(T)
    tgt_mask = jnp.where(rows[None, :] <= rows[:, None], 0.0, -1e30
                         ).astype(jnp.float32)

    for l in range(num_layers):
        p = params["layers"][l]
        x2d = self_attn_block(x2d, tgt_mask, p["self_attn"], num_heads, B, T,
                              p["ln1_g"], p["ln1_b"])
        x2d = cross_attn_block(x2d, mem, S, p["cross_attn"], num_heads, B, T,
                               p["ln2_g"], p["ln2_b"])
        x2d = ffn_block(x2d, p, p["ln3_g"], p["ln3_b"])

    logits = linear(x2d, params["fc_w"], params["fc_b"])         # (B*T, Vpad)
    logits = logits.reshape(B, T, -1)[:, :, :trg_vocab]          # slice once
    return logits.transpose(1, 0, 2)                             # (T, B, V)


# ------------------------------ Param init ----------------------------------

def init_params(key, emb_vocab, trg_vocab, E, FF, num_layers, max_len):
    keys = jax.random.split(key, 2 + num_layers)
    vocab_pad = _round_up(trg_vocab, 128)        # lane-dense final projection
    fc_w = jax.random.normal(keys[1], (E, trg_vocab), jnp.float32) * 0.05
    params = {
        "emb_table": jax.random.normal(keys[0], (emb_vocab, E), jnp.float32) * 0.1,
        "pos_emb": create_positional_embedding(max_len, E),
        "fc_w": jnp.pad(fc_w, ((0, 0), (0, vocab_pad - trg_vocab))
                        ).astype(jnp.bfloat16),
        "fc_b": jnp.zeros((1, vocab_pad), jnp.float32),
        "layers": [],
    }

    def self_attn_params(ks):
        wq = jax.random.normal(ks[0], (E, E), jnp.float32) * 0.05
        wk = jax.random.normal(ks[1], (E, E), jnp.float32) * 0.05
        wv = jax.random.normal(ks[2], (E, E), jnp.float32) * 0.05
        return {
            "w_qkv": jnp.concatenate([wq, wk, wv], axis=1).astype(jnp.bfloat16),
            "b_qkv": jnp.zeros((1, 3 * E), jnp.float32),
            "wo": (jax.random.normal(ks[3], (E, E), jnp.float32) * 0.05
                   ).astype(jnp.bfloat16),
            "bo": jnp.zeros((1, E), jnp.float32),
        }

    def cross_attn_params(ks):
        wk = jax.random.normal(ks[1], (E, E), jnp.float32) * 0.05
        wv = jax.random.normal(ks[2], (E, E), jnp.float32) * 0.05
        return {
            "wq": (jax.random.normal(ks[0], (E, E), jnp.float32) * 0.05
                   ).astype(jnp.bfloat16),
            "bq": jnp.zeros((1, E), jnp.float32),
            "w_kv": jnp.concatenate([wk, wv], axis=1).astype(jnp.bfloat16),
            "b_kv": jnp.zeros((1, 2 * E), jnp.float32),
            "wo": (jax.random.normal(ks[3], (E, E), jnp.float32) * 0.05
                   ).astype(jnp.bfloat16),
            "bo": jnp.zeros((1, E), jnp.float32),
        }

    for l in range(num_layers):
        lk = jax.random.split(keys[2 + l], 10)
        params["layers"].append({
            "self_attn": self_attn_params(lk[0:4]),
            "cross_attn": cross_attn_params(lk[4:8]),
            "ff_w1": (jax.random.normal(lk[8], (E, FF), jnp.float32) * 0.05
                      ).astype(jnp.bfloat16),
            "ff_b1": jnp.zeros((1, FF), jnp.float32),
            "ff_w2": (jax.random.normal(lk[9], (FF, E), jnp.float32) * 0.05
                      ).astype(jnp.bfloat16),
            "ff_b2": jnp.zeros((1, E), jnp.float32),
            "ln1_g": jnp.ones((1, E), jnp.float32), "ln1_b": jnp.zeros((1, E), jnp.float32),
            "ln2_g": jnp.ones((1, E), jnp.float32), "ln2_b": jnp.zeros((1, E), jnp.float32),
            "ln3_g": jnp.ones((1, E), jnp.float32), "ln3_b": jnp.zeros((1, E), jnp.float32),
        })
    return params


# --------------------------------- Main --------------------------------------

if __name__ == "__main__":
    key = jax.random.PRNGKey(0)
    k_param, k_tok, k_mem = jax.random.split(key, 3)

    B, T, S = 2, 8, 10            # batch, target seq, memory (encoder) seq
    E, H, L, FF = 32, 4, 2, 64    # embed dim, heads, layers, feedforward dim
    emb_vocab, trg_vocab, max_len = 60, 50, 16

    params = init_params(k_param, emb_vocab, trg_vocab, E, FF, L, max_len)
    dec_in = jax.random.randint(k_tok, (T, B), 0, emb_vocab, dtype=jnp.int32)
    enc_out = jax.random.normal(k_mem, (S, B, E), jnp.float32)

    fwd = jax.jit(functools.partial(transformer_decoder_forward,
                                    num_heads=H, num_layers=L,
                                    trg_vocab=trg_vocab))
    out = jax.block_until_ready(fwd(dec_in, enc_out, params))

    assert out.shape == (T, B, trg_vocab), out.shape
    assert bool(jnp.all(jnp.isfinite(out)))
    print("KERNEL_OK")
</pallas_src>

<mosaic_0001>
module attributes {stable_mosaic.version = 11 : i64} {
  func.func @_self_attn_block_kernel(%arg0: i32, %arg1: memref<8x32xf32, #tpu.memory_space<vmem>>, %arg2: memref<32x96xbf16, #tpu.memory_space<vmem>>, %arg3: memref<1x96xf32, #tpu.memory_space<vmem>>, %arg4: memref<32x32xbf16, #tpu.memory_space<vmem>>, %arg5: memref<1x32xf32, #tpu.memory_space<vmem>>, %arg6: memref<8x8xf32, #tpu.memory_space<vmem>>, %arg7: memref<1x32xf32, #tpu.memory_space<vmem>>, %arg8: memref<1x32xf32, #tpu.memory_space<vmem>>, %arg9: memref<8x32xf32, #tpu.memory_space<vmem>>) attributes {dimension_semantics = [#tpu.dimension_semantics<parallel>], iteration_bounds = array<i64: 2>, scalar_prefetch = 0 : i64, scratch_operands = 0 : i64, tpu.core_type = #tpu.core_type<tc>, window_params = [{transform_indices = @transform_0, window_bounds = array<i64: 8, 32>}, {pipeline_mode = #tpu.pipeline_mode<synchronous>, transform_indices = @transform_1, window_bounds = array<i64: 32, 96>}, {pipeline_mode = #tpu.pipeline_mode<synchronous>, transform_indices = @transform_2, window_bounds = array<i64: 1, 96>}, {pipeline_mode = #tpu.pipeline_mode<synchronous>, transform_indices = @transform_3, window_bounds = array<i64: 32, 32>}, {pipeline_mode = #tpu.pipeline_mode<synchronous>, transform_indices = @transform_4, window_bounds = array<i64: 1, 32>}, {pipeline_mode = #tpu.pipeline_mode<synchronous>, transform_indices = @transform_5, window_bounds = array<i64: 8, 8>}, {pipeline_mode = #tpu.pipeline_mode<synchronous>, transform_indices = @transform_6, window_bounds = array<i64: 1, 32>}, {pipeline_mode = #tpu.pipeline_mode<synchronous>, transform_indices = @transform_7, window_bounds = array<i64: 1, 32>}, {transform_indices = @transform_8, window_bounds = array<i64: 8, 32>}]} {
    %c0 = arith.constant 0 : index
    %c0_0 = arith.constant 0 : index
    %0 = vector.load %arg1[%c0, %c0_0] : memref<8x32xf32, #tpu.memory_space<vmem>>, vector<8x32xf32>
    %1 = arith.truncf %0 : vector<8x32xf32> to vector<8x32xbf16>
    %c0_1 = arith.constant 0 : index
    %c0_2 = arith.constant 0 : index
    %2 = vector.load %arg2[%c0_1, %c0_2] : memref<32x96xbf16, #tpu.memory_space<vmem>>, vector<32x96xbf16>
    %cst = arith.constant dense<0.000000e+00> : vector<8x96xf32>
    %3 = tpu.matmul %1, %2, %cst {dimension_numbers = #tpu.dot_dimension_numbers<[1], [0], [0], [1], [0, 0, 1, 1], [], []>} : vector<8x32xbf16>, vector<32x96xbf16>, vector<8x96xf32> -> vector<8x96xf32>
    %c0_3 = arith.constant 0 : index
    %c0_4 = arith.constant 0 : index
    %4 = vector.load %arg3[%c0_3, %c0_4] : memref<1x96xf32, #tpu.memory_space<vmem>>, vector<1x96xf32>
    %5 = vector.broadcast %4 : vector<1x96xf32> to vector<8x96xf32>
    %6 = arith.addf %3, %5 : vector<8x96xf32>
    %7 = vector.extract_strided_slice %6 {offsets = [0, 0], sizes = [8, 32], strides = [1, 1]} : vector<8x96xf32> to vector<8x32xf32>
    %8 = vector.extract_strided_slice %6 {offsets = [0, 32], sizes = [8, 32], strides = [1, 1]} : vector<8x96xf32> to vector<8x32xf32>
    %9 = vector.extract_strided_slice %6 {offsets = [0, 64], sizes = [8, 32], strides = [1, 1]} : vector<8x96xf32> to vector<8x32xf32>
    %c0_5 = arith.constant 0 : index
    %c0_6 = arith.constant 0 : index
    %10 = vector.load %arg6[%c0_5, %c0_6] : memref<8x8xf32, #tpu.memory_space<vmem>>, vector<8x8xf32>
    %11 = vector.extract_strided_slice %7 {offsets = [0, 0], sizes = [8, 8], strides = [1, 1]} : vector<8x32xf32> to vector<8x8xf32>
    %cst_7 = arith.constant 0.353553385 : f32
    %12 = vector.broadcast %cst_7 : f32 to vector<8x8xf32>
    %13 = arith.mulf %11, %12 : vector<8x8xf32>
    %14 = arith.truncf %13 : vector<8x8xf32> to vector<8x8xbf16>
    %15 = vector.extract_strided_slice %8 {offsets = [0, 0], sizes = [8, 8], strides = [1, 1]} : vector<8x32xf32> to vector<8x8xf32>
    %16 = arith.truncf %15 : vector<8x8xf32> to vector<8x8xbf16>
    %17 = vector.extract_strided_slice %9 {offsets = [0, 0], sizes = [8, 8], strides = [1, 1]} : vector<8x32xf32> to vector<8x8xf32>
    %18 = arith.truncf %17 : vector<8x8xf32> to vector<8x8xbf16>
    "tpu.trace_start"() <{level = 10 : i32, message = "qd,kd->qk"}> : () -> ()
    %cst_8 = arith.constant dense<0.000000e+00> : vector<8x8xf32>
    %19 = tpu.matmul %14, %16, %cst_8 {dimension_numbers = #tpu.dot_dimension_numbers<[1], [1], [0], [0], [0, 0, 1, 0], [], []>} : vector<8x8xbf16>, vector<8x8xbf16>, vector<8x8xf32> -> vector<8x8xf32>
    "tpu.trace_stop"() : () -> ()
    %20 = arith.addf %19, %10 : vector<8x8xf32>
    %cst_9 = arith.constant dense<0xFF800000> : vector<8xf32>
    %21 = vector.multi_reduction <maximumf>, %20, %cst_9 [1] : vector<8x8xf32> to vector<8xf32>
    %22 = vector.shape_cast %21 : vector<8xf32> to vector<8x1xf32>
    %23 = vector.broadcast %22 : vector<8x1xf32> to vector<8x8xf32>
    %24 = arith.subf %20, %23 : vector<8x8xf32>
    %25 = math.exp %24 : vector<8x8xf32>
    %cst_10 = arith.constant dense<0.000000e+00> : vector<8xf32>
    %26 = vector.multi_reduction <add>, %25, %cst_10 [1] : vector<8x8xf32> to vector<8xf32>
    %27 = vector.shape_cast %26 : vector<8xf32> to vector<8x1xf32>
    %28 = arith.truncf %25 : vector<8x8xf32> to vector<8x8xbf16>
    %cst_11 = arith.constant dense<0.000000e+00> : vector<8x8xf32>
    %29 = tpu.matmul %28, %18, %cst_11 {dimension_numbers = #tpu.dot_dimension_numbers<[1], [0], [0], [1], [0, 0, 1, 1], [], []>} : vector<8x8xbf16>, vector<8x8xbf16>, vector<8x8xf32> -> vector<8x8xf32>
    %30 = tpu.reciprocal %27 {approx = true} : vector<8x1xf32> -> vector<8x1xf32>
    %31 = vector.broadcast %30 : vector<8x1xf32> to vector<8x8xf32>
    %32 = arith.mulf %29, %31 : vector<8x8xf32>
    %33 = vector.extract_strided_slice %7 {offsets = [0, 8], sizes = [8, 8], strides = [1, 1]} : vector<8x32xf32> to vector<8x8xf32>
    %cst_12 = arith.constant 0.353553385 : f32
    %34 = vector.broadcast %cst_12 : f32 to vector<8x8xf32>
    %35 = arith.mulf %33, %34 : vector<8x8xf32>
    %36 = arith.truncf %35 : vector<8x8xf32> to vector<8x8xbf16>
    %37 = vector.extract_strided_slice %8 {offsets = [0, 8], sizes = [8, 8], strides = [1, 1]} : vector<8x32xf32> to vector<8x8xf32>
    %38 = arith.truncf %37 : vector<8x8xf32> to vector<8x8xbf16>
    %39 = vector.extract_strided_slice %9 {offsets = [0, 8], sizes = [8, 8], strides = [1, 1]} : vector<8x32xf32> to vector<8x8xf32>
    %40 = arith.truncf %39 : vector<8x8xf32> to vector<8x8xbf16>
    "tpu.trace_start"() <{level = 10 : i32, message = "qd,kd->qk"}> : () -> ()
    %cst_13 = arith.constant dense<0.000000e+00> : vector<8x8xf32>
    %41 = tpu.matmul %36, %38, %cst_13 {dimension_numbers = #tpu.dot_dimension_numbers<[1], [1], [0], [0], [0, 0, 1, 0], [], []>} : vector<8x8xbf16>, vector<8x8xbf16>, vector<8x8xf32> -> vector<8x8xf32>
    "tpu.trace_stop"() : () -> ()
    %42 = arith.addf %41, %10 : vector<8x8xf32>
    %cst_14 = arith.constant dense<0xFF800000> : vector<8xf32>
    %43 = vector.multi_reduction <maximumf>, %42, %cst_14 [1] : vector<8x8xf32> to vector<8xf32>
    %44 = vector.shape_cast %43 : vector<8xf32> to vector<8x1xf32>
    %45 = vector.broadcast %44 : vector<8x1xf32> to vector<8x8xf32>
    %46 = arith.subf %42, %45 : vector<8x8xf32>
    %47 = math.exp %46 : vector<8x8xf32>
    %cst_15 = arith.constant dense<0.000000e+00> : vector<8xf32>
    %48 = vector.multi_reduction <add>, %47, %cst_15 [1] : vector<8x8xf32> to vector<8xf32>
    %49 = vector.shape_cast %48 : vector<8xf32> to vector<8x1xf32>
    %50 = arith.truncf %47 : vector<8x8xf32> to vector<8x8xbf16>
    %cst_16 = arith.constant dense<0.000000e+00> : vector<8x8xf32>
    %51 = tpu.matmul %50, %40, %cst_16 {dimension_numbers = #tpu.dot_dimension_numbers<[1], [0], [0], [1], [0, 0, 1, 1], [], []>} : vector<8x8xbf16>, vector<8x8xbf16>, vector<8x8xf32> -> vector<8x8xf32>
    %52 = tpu.reciprocal %49 {approx = true} : vector<8x1xf32> -> vector<8x1xf32>
    %53 = vector.broadcast %52 : vector<8x1xf32> to vector<8x8xf32>
    %54 = arith.mulf %51, %53 : vector<8x8xf32>
    %55 = vector.extract_strided_slice %7 {offsets = [0, 16], sizes = [8, 8], strides = [1, 1]} : vector<8x32xf32> to vector<8x8xf32>
    %cst_17 = arith.constant 0.353553385 : f32
    %56 = vector.broadcast %cst_17 : f32 to vector<8x8xf32>
    %57 = arith.mulf %55, %56 : vector<8x8xf32>
    %58 = arith.truncf %57 : vector<8x8xf32> to vector<8x8xbf16>
    %59 = vector.extract_strided_slice %8 {offsets = [0, 16], sizes = [8, 8], strides = [1, 1]} : vector<8x32xf32> to vector<8x8xf32>
    %60 = arith.truncf %59 : vector<8x8xf32> to vector<8x8xbf16>
    %61 = vector.extract_strided_slice %9 {offsets = [0, 16], sizes = [8, 8], strides = [1, 1]} : vector<8x32xf32> to vector<8x8xf32>
    %62 = arith.truncf %61 : vector<8x8xf32> to vector<8x8xbf16>
    "tpu.trace_start"() <{level = 10 : i32, message = "qd,kd->qk"}> : () -> ()
    %cst_18 = arith.constant dense<0.000000e+00> : vector<8x8xf32>
    %63 = tpu.matmul %58, %60, %cst_18 {dimension_numbers = #tpu.dot_dimension_numbers<[1], [1], [0], [0], [0, 0, 1, 0], [], []>} : vector<8x8xbf16>, vector<8x8xbf16>, vector<8x8xf32> -> vector<8x8xf32>
    "tpu.trace_stop"() : () -> ()
    %64 = arith.addf %63, %10 : vector<8x8xf32>
    %cst_19 = arith.constant dense<0xFF800000> : vector<8xf32>
    %65 = vector.multi_reduction <maximumf>, %64, %cst_19 [1] : vector<8x8xf32> to vector<8xf32>
    %66 = vector.shape_cast %65 : vector<8xf32> to vector<8x1xf32>
    %67 = vector.broadcast %66 : vector<8x1xf32> to vector<8x8xf32>
    %68 = arith.subf %64, %67 : vector<8x8xf32>
    %69 = math.exp %68 : vector<8x8xf32>
    %cst_20 = arith.constant dense<0.000000e+00> : vector<8xf32>
    %70 = vector.multi_reduction <add>, %69, %cst_20 [1] : vector<8x8xf32> to vector<8xf32>
    %71 = vector.shape_cast %70 : vector<8xf32> to vector<8x1xf32>
    %72 = arith.truncf %69 : vector<8x8xf32> to vector<8x8xbf16>
    %cst_21 = arith.constant dense<0.000000e+00> : vector<8x8xf32>
    %73 = tpu.matmul %72, %62, %cst_21 {dimension_numbers = #tpu.dot_dimension_numbers<[1], [0], [0], [1], [0, 0, 1, 1], [], []>} : vector<8x8xbf16>, vector<8x8xbf16>, vector<8x8xf32> -> vector<8x8xf32>
    %74 = tpu.reciprocal %71 {approx = true} : vector<8x1xf32> -> vector<8x1xf32>
    %75 = vector.broadcast %74 : vector<8x1xf32> to vector<8x8xf32>
    %76 = arith.mulf %73, %75 : vector<8x8xf32>
    %77 = vector.extract_strided_slice %7 {offsets = [0, 24], sizes = [8, 8], strides = [1, 1]} : vector<8x32xf32> to vector<8x8xf32>
    %cst_22 = arith.constant 0.353553385 : f32
    %78 = vector.broadcast %cst_22 : f32 to vector<8x8xf32>
    %79 = arith.mulf %77, %78 : vector<8x8xf32>
    %80 = arith.truncf %79 : vector<8x8xf32> to vector<8x8xbf16>
    %81 = vector.extract_strided_slice %8 {offsets = [0, 24], sizes = [8, 8], strides = [1, 1]} : vector<8x32xf32> to vector<8x8xf32>
    %82 = arith.truncf %81 : vector<8x8xf32> to vector<8x8xbf16>
    %83 = vector.extract_strided_slice %9 {offsets = [0, 24], sizes = [8, 8], strides = [1, 1]} : vector<8x32xf32> to vector<8x8xf32>
    %84 = arith.truncf %83 : vector<8x8xf32> to vector<8x8xbf16>
    "tpu.trace_start"() <{level = 10 : i32, message = "qd,kd->qk"}> : () -> ()
    %cst_23 = arith.constant dense<0.000000e+00> : vector<8x8xf32>
    %85 = tpu.matmul %80, %82, %cst_23 {dimension_numbers = #tpu.dot_dimension_numbers<[1], [1], [0], [0], [0, 0, 1, 0], [], []>} : vector<8x8xbf16>, vector<8x8xbf16>, vector<8x8xf32> -> vector<8x8xf32>
    "tpu.trace_stop"() : () -> ()
    %86 = arith.addf %85, %10 : vector<8x8xf32>
    %cst_24 = arith.constant dense<0xFF800000> : vector<8xf32>
    %87 = vector.multi_reduction <maximumf>, %86, %cst_24 [1] : vector<8x8xf32> to vector<8xf32>
    %88 = vector.shape_cast %87 : vector<8xf32> to vector<8x1xf32>
    %89 = vector.broadcast %88 : vector<8x1xf32> to vector<8x8xf32>
    %90 = arith.subf %86, %89 : vector<8x8xf32>
    %91 = math.exp %90 : vector<8x8xf32>
    %cst_25 = arith.constant dense<0.000000e+00> : vector<8xf32>
    %92 = vector.multi_reduction <add>, %91, %cst_25 [1] : vector<8x8xf32> to vector<8xf32>
    %93 = vector.shape_cast %92 : vector<8xf32> to vector<8x1xf32>
    %94 = arith.truncf %91 : vector<8x8xf32> to vector<8x8xbf16>
    %cst_26 = arith.constant dense<0.000000e+00> : vector<8x8xf32>
    %95 = tpu.matmul %94, %84, %cst_26 {dimension_numbers = #tpu.dot_dimension_numbers<[1], [0], [0], [1], [0, 0, 1, 1], [], []>} : vector<8x8xbf16>, vector<8x8xbf16>, vector<8x8xf32> -> vector<8x8xf32>
    %96 = tpu.reciprocal %93 {approx = true} : vector<8x1xf32> -> vector<8x1xf32>
    %97 = vector.broadcast %96 : vector<8x1xf32> to vector<8x8xf32>
    %98 = arith.mulf %95, %97 : vector<8x8xf32>
    %99 = tpu.concatenate %32, %54, %76, %98 in 1 : vector<8x8xf32>, vector<8x8xf32>, vector<8x8xf32>, vector<8x8xf32> -> vector<8x32xf32>
    %100 = arith.truncf %99 : vector<8x32xf32> to vector<8x32xbf16>
    %c0_27 = arith.constant 0 : index
    %c0_28 = arith.constant 0 : index
    %101 = vector.load %arg4[%c0_27, %c0_28] : memref<32x32xbf16, #tpu.memory_space<vmem>>, vector<32x32xbf16>
    %cst_29 = arith.constant dense<0.000000e+00> : vector<8x32xf32>
    %102 = tpu.matmul %100, %101, %cst_29 {dimension_numbers = #tpu.dot_dimension_numbers<[1], [0], [0], [1], [0, 0, 1, 1], [], []>} : vector<8x32xbf16>, vector<32x32xbf16>, vector<8x32xf32> -> vector<8x32xf32>
    %c0_30 = arith.constant 0 : index
    %c0_31 = arith.constant 0 : index
    %103 = vector.load %arg5[%c0_30, %c0_31] : memref<1x32xf32, #tpu.memory_space<vmem>>, vector<1x32xf32>
    %104 = vector.broadcast %103 : vector<1x32xf32> to vector<8x32xf32>
    %105 = arith.addf %102, %104 : vector<8x32xf32>
    %106 = arith.addf %105, %0 : vector<8x32xf32>
    %c0_32 = arith.constant 0 : index
    %c0_33 = arith.constant 0 : index
    %107 = vector.load %arg7[%c0_32, %c0_33] : memref<1x32xf32, #tpu.memory_space<vmem>>, vector<1x32xf32>
    %c0_34 = arith.constant 0 : index
    %c0_35 = arith.constant 0 : index
    %108 = vector.load %arg8[%c0_34, %c0_35] : memref<1x32xf32, #tpu.memory_space<vmem>>, vector<1x32xf32>
    %cst_36 = arith.constant dense<0.000000e+00> : vector<8xf32>
    %109 = vector.multi_reduction <add>, %106, %cst_36 [1] : vector<8x32xf32> to vector<8xf32>
    %110 = vector.shape_cast %109 : vector<8xf32> to vector<8x1xf32>
    %cst_37 = arith.constant 3.200000e+01 : f32
    %111 = vector.broadcast %cst_37 : f32 to vector<8x1xf32>
    %112 = arith.divf %110, %111 : vector<8x1xf32>
    %113 = vector.broadcast %112 : vector<8x1xf32> to vector<8x32xf32>
    %114 = arith.subf %106, %113 : vector<8x32xf32>
    %115 = arith.mulf %114, %114 : vector<8x32xf32>
    %cst_38 = arith.constant dense<0.000000e+00> : vector<8xf32>
    %116 = vector.multi_reduction <add>, %115, %cst_38 [1] : vector<8x32xf32> to vector<8xf32>
    %117 = vector.shape_cast %116 : vector<8xf32> to vector<8x1xf32>
    %cst_39 = arith.constant 3.200000e+01 : f32
    %118 = vector.broadcast %cst_39 : f32 to vector<8x1xf32>
    %119 = arith.divf %117, %118 : vector<8x1xf32>
    %120 = vector.broadcast %112 : vector<8x1xf32> to vector<8x32xf32>
    %121 = arith.subf %106, %120 : vector<8x32xf32>
    %cst_40 = arith.constant 9.99999974E-6 : f32
    %122 = vector.broadcast %cst_40 : f32 to vector<8x1xf32>
    %123 = arith.addf %119, %122 : vector<8x1xf32>
    %124 = math.rsqrt %123 : vector<8x1xf32>
    %125 = vector.broadcast %124 : vector<8x1xf32> to vector<8x32xf32>
    %126 = arith.mulf %121, %125 : vector<8x32xf32>
    %127 = vector.broadcast %107 : vector<1x32xf32> to vector<8x32xf32>
    %128 = arith.mulf %126, %127 : vector<8x32xf32>
    %129 = vector.broadcast %108 : vector<1x32xf32> to vector<8x32xf32>
    %130 = arith.addf %128, %129 : vector<8x32xf32>
    %c0_41 = arith.constant 0 : index
    %c0_42 = arith.constant 0 : index
    %131 = vector.load %arg9[%c0_41, %c0_42] : memref<8x32xf32, #tpu.memory_space<vmem>>, vector<8x32xf32>
    tpu.vector_store %arg9[%c0_41, %c0_42], %130 {strides = array<i32>} : memref<8x32xf32, #tpu.memory_space<vmem>>, vector<8x32xf32>,
    return
  }
  func.func @transform_0(%arg0: i32) -> (i32, i32) {
    %c0_i32 = arith.constant 0 : i32
    %c0_i32_0 = arith.constant 0 : i32
    return %arg0, %c0_i32 : i32, i32
  }
  func.func @transform_1(%arg0: i32) -> (i32, i32) {
    %c0_i32 = arith.constant 0 : i32
    %c0_i32_0 = arith.constant 0 : i32
    %c0_i32_1 = arith.constant 0 : i32
    return %c0_i32, %c0_i32_0 : i32, i32
  }
  func.func @transform_2(%arg0: i32) -> (i32, i32) {
    %c0_i32 = arith.constant 0 : i32
    %c0_i32_0 = arith.constant 0 : i32
    %c0_i32_1 = arith.constant 0 : i32
    return %c0_i32, %c0_i32_0 : i32, i32
  }
  func.func @transform_3(%arg0: i32) -> (i32, i32) {
    %c0_i32 = arith.constant 0 : i32
    %c0_i32_0 = arith.constant 0 : i32
    %c0_i32_1 = arith.constant 0 : i32
    return %c0_i32, %c0_i32_0 : i32, i32
  }
  func.func @transform_4(%arg0: i32) -> (i32, i32) {
    %c0_i32 = arith.constant 0 : i32
    %c0_i32_0 = arith.constant 0 : i32
    %c0_i32_1 = arith.constant 0 : i32
    return %c0_i32, %c0_i32_0 : i32, i32
  }
  func.func @transform_5(%arg0: i32) -> (i32, i32) {
    %c0_i32 = arith.constant 0 : i32
    %c0_i32_0 = arith.constant 0 : i32
    %c0_i32_1 = arith.constant 0 : i32
    return %c0_i32, %c0_i32_0 : i32, i32
  }
  func.func @transform_6(%arg0: i32) -> (i32, i32) {
    %c0_i32 = arith.constant 0 : i32
    %c0_i32_0 = arith.constant 0 : i32
    %c0_i32_1 = arith.constant 0 : i32
    return %c0_i32, %c0_i32_0 : i32, i32
  }
  func.func @transform_7(%arg0: i32) -> (i32, i32) {
    %c0_i32 = arith.constant 0 : i32
    %c0_i32_0 = arith.constant 0 : i32
    %c0_i32_1 = arith.constant 0 : i32
    return %c0_i32, %c0_i32_0 : i32, i32
  }
  func.func @transform_8(%arg0: i32) -> (i32, i32) {
    %c0_i32 = arith.constant 0 : i32
    %c0_i32_0 = arith.constant 0 : i32
    return %arg0, %c0_i32 : i32, i32
  }
}

module attributes {stable_mosaic.version = 11 : i64} {
  func.func @_linear_kernel(%arg0: i32, %arg1: i32, %arg2: i32, %arg3: memref<8x32xf32, #tpu.memory_space<vmem>>, %arg4: memref<32x128xbf16, #tpu.memory_space<vmem>>, %arg5: memref<1x128xf32, #tpu.memory_space<vmem>>, %arg6: memref<8x128xf32, #tpu.memory_space<vmem>>) attributes {dimension_semantics = [#tpu.dimension_semantics<parallel>, #tpu.dimension_semantics<parallel>, #tpu.dimension_semantics<arbitrary>], iteration_bounds = array<i64: 2, 1, 1>, scalar_prefetch = 0 : i64, scratch_operands = 0 : i64, tpu.core_type = #tpu.core_type<tc>, window_params = [{transform_indices = @transform_0, window_bounds = array<i64: 8, 32>}, {transform_indices = @transform_1, window_bounds = array<i64: 32, 128>}, {transform_indices = @transform_2, window_bounds = array<i64: 1, 128>}, {transform_indices = @transform_3, window_bounds = array<i64: 8, 128>}]} {
    %c0_i32 = arith.constant 0 : i32
    %0 = arith.cmpi eq, %arg2, %c0_i32 : i32
    %1 = arith.extui %0 : i1 to i32
    %c0_i32_0 = arith.constant 0 : i32
    %2 = arith.cmpi ne, %1, %c0_i32_0 : i32
    scf.if %2 {
      %cst_10 = arith.constant 0.000000e+00 : f32
      %13 = vector.broadcast %cst_10 : f32 to vector<8x128xf32>
      %c0_11 = arith.constant 0 : index
      %c0_12 = arith.constant 0 : index
      %14 = vector.load %arg6[%c0_11, %c0_12] : memref<8x128xf32, #tpu.memory_space<vmem>>, vector<8x128xf32>
      tpu.vector_store %arg6[%c0_11, %c0_12], %13 {strides = array<i32>} : memref<8x128xf32, #tpu.memory_space<vmem>>, vector<8x128xf32>,
    } else {
    }
    %c0 = arith.constant 0 : index
    %c0_1 = arith.constant 0 : index
    %3 = vector.load %arg6[%c0, %c0_1] : memref<8x128xf32, #tpu.memory_space<vmem>>, vector<8x128xf32>
    %c0_2 = arith.constant 0 : index
    %c0_3 = arith.constant 0 : index
    %4 = vector.load %arg3[%c0_2, %c0_3] : memref<8x32xf32, #tpu.memory_space<vmem>>, vector<8x32xf32>
    %5 = arith.truncf %4 : vector<8x32xf32> to vector<8x32xbf16>
    %c0_4 = arith.constant 0 : index
    %c0_5 = arith.constant 0 : index
    %6 = vector.load %arg4[%c0_4, %c0_5] : memref<32x128xbf16, #tpu.memory_space<vmem>>, vector<32x128xbf16>
    %cst = arith.constant dense<0.000000e+00> : vector<8x128xf32>
    %7 = tpu.matmul %5, %6, %cst {dimension_numbers = #tpu.dot_dimension_numbers<[1], [0], [0], [1], [0, 0, 1, 1], [], []>} : vector<8x32xbf16>, vector<32x128xbf16>, vector<8x128xf32> -> vector<8x128xf32>
    %8 = arith.addf %3, %7 : vector<8x128xf32>
    %c0_6 = arith.constant 0 : index
    %c0_7 = arith.constant 0 : index
    %9 = vector.load %arg6[%c0_6, %c0_7] : memref<8x128xf32, #tpu.memory_space<vmem>>, vector<8x128xf32>
    tpu.vector_store %arg6[%c0_6, %c0_7], %8 {strides = array<i32>} : memref<8x128xf32, #tpu.memory_space<vmem>>, vector<8x128xf32>,
    %c0_i32_8 = arith.constant 0 : i32
    %10 = arith.cmpi eq, %arg2, %c0_i32_8 : i32
    %11 = arith.extui %10 : i1 to i32
    %c0_i32_9 = arith.constant 0 : i32
    %12 = arith.cmpi ne, %11, %c0_i32_9 : i32
    scf.if %12 {
      %c0_10 = arith.constant 0 : index
      %c0_11 = arith.constant 0 : index
      %13 = vector.load %arg6[%c0_10, %c0_11] : memref<8x128xf32, #tpu.memory_space<vmem>>, vector<8x128xf32>
      %c0_12 = arith.constant 0 : index
      %c0_13 = arith.constant 0 : index
      %14 = vector.load %arg5[%c0_12, %c0_13] : memref<1x128xf32, #tpu.memory_space<vmem>>, vector<1x128xf32>
      %15 = vector.broadcast %14 : vector<1x128xf32> to vector<8x128xf32>
      %16 = arith.addf %13, %15 : vector<8x128xf32>
      %c0_14 = arith.constant 0 : index
      %c0_15 = arith.constant 0 : index
      %17 = vector.load %arg6[%c0_14, %c0_15] : memref<8x128xf32, #tpu.memory_space<vmem>>, vector<8x128xf32>
      tpu.vector_store %arg6[%c0_14, %c0_15], %16 {strides = array<i32>} : memref<8x128xf32, #tpu.memory_space<vmem>>, vector<8x128xf32>,
    } else {
    }
    return
  }
  func.func @transform_0(%arg0: i32, %arg1: i32, %arg2: i32) -> (i32, i32) {
    %c0_i32 = arith.constant 0 : i32
    return %arg0, %arg2 : i32, i32
  }
  func.func @transform_1(%arg0: i32, %arg1: i32, %arg2: i32) -> (i32, i32) {
    %c0_i32 = arith.constant 0 : i32
    return %arg2, %arg1 : i32, i32
  }
  func.func @transform_2(%arg0: i32, %arg1: i32, %arg2: i32) -> (i32, i32) {
    %c0_i32 = arith.constant 0 : i32
    %c0_i32_0 = arith.constant 0 : i32
    return %c0_i32, %arg1 : i32, i32
  }
  func.func @transform_3(%arg0: i32, %arg1: i32, %arg2: i32) -> (i32, i32) {
    %c0_i32 = arith.constant 0 : i32
    return %arg0, %arg1 : i32, i32
  }
}

module attributes {stable_mosaic.version = 11 : i64} {
  func.func @_cross_attn_block_kernel(%arg0: i32, %arg1: memref<8x32xf32, #tpu.memory_space<vmem>>, %arg2: memref<1x16x32xf32, #tpu.memory_space<vmem>>, %arg3: memref<32x32xbf16, #tpu.memory_space<vmem>>, %arg4: memref<1x32xf32, #tpu.memory_space<vmem>>, %arg5: memref<32x64xbf16, #tpu.memory_space<vmem>>, %arg6: memref<1x64xf32, #tpu.memory_space<vmem>>, %arg7: memref<32x32xbf16, #tpu.memory_space<vmem>>, %arg8: memref<1x32xf32, #tpu.memory_space<vmem>>, %arg9: memref<1x32xf32, #tpu.memory_space<vmem>>, %arg10: memref<1x32xf32, #tpu.memory_space<vmem>>, %arg11: memref<8x32xf32, #tpu.memory_space<vmem>>) attributes {dimension_semantics = [#tpu.dimension_semantics<parallel>], iteration_bounds = array<i64: 2>, scalar_prefetch = 0 : i64, scratch_operands = 0 : i64, tpu.core_type = #tpu.core_type<tc>, window_params = [{transform_indices = @transform_0, window_bounds = array<i64: 8, 32>}, {transform_indices = @transform_1, window_bounds = array<i64: 1, 16, 32>}, {pipeline_mode = #tpu.pipeline_mode<synchronous>, transform_indices = @transform_2, window_bounds = array<i64: 32, 32>}, {pipeline_mode = #tpu.pipeline_mode<synchronous>, transform_indices = @transform_3, window_bounds = array<i64: 1, 32>}, {pipeline_mode = #tpu.pipeline_mode<synchronous>, transform_indices = @transform_4, window_bounds = array<i64: 32, 64>}, {pipeline_mode = #tpu.pipeline_mode<synchronous>, transform_indices = @transform_5, window_bounds = array<i64: 1, 64>}, {pipeline_mode = #tpu.pipeline_mode<synchronous>, transform_indices = @transform_6, window_bounds = array<i64: 32, 32>}, {pipeline_mode = #tpu.pipeline_mode<synchronous>, transform_indices = @transform_7, window_bounds = array<i64: 1, 32>}, {pipeline_mode = #tpu.pipeline_mode<synchronous>, transform_indices = @transform_8, window_bounds = array<i64: 1, 32>}, {pipeline_mode = #tpu.pipeline_mode<synchronous>, transform_indices = @transform_9, window_bounds = array<i64: 1, 32>}, {transform_indices = @transform_10, window_bounds = array<i64: 8, 32>}]} {
    %c0 = arith.constant 0 : index
    %c0_0 = arith.constant 0 : index
    %0 = vector.load %arg1[%c0, %c0_0] : memref<8x32xf32, #tpu.memory_space<vmem>>, vector<8x32xf32>
    %c0_1 = arith.constant 0 : index
    %c0_2 = arith.constant 0 : index
    %c0_3 = arith.constant 0 : index
    %1 = vector.load %arg2[%c0_1, %c0_2, %c0_3] : memref<1x16x32xf32, #tpu.memory_space<vmem>>, vector<1x16x32xf32>
    %2 = vector.shape_cast %1 : vector<1x16x32xf32> to vector<16x32xf32>
    %3 = arith.truncf %0 : vector<8x32xf32> to vector<8x32xbf16>
    %c0_4 = arith.constant 0 : index
    %c0_5 = arith.constant 0 : index
    %4 = vector.load %arg3[%c0_4, %c0_5] : memref<32x32xbf16, #tpu.memory_space<vmem>>, vector<32x32xbf16>
    %cst = arith.constant dense<0.000000e+00> : vector<8x32xf32>
    %5 = tpu.matmul %3, %4, %cst {dimension_numbers = #tpu.dot_dimension_numbers<[1], [0], [0], [1], [0, 0, 1, 1], [], []>} : vector<8x32xbf16>, vector<32x32xbf16>, vector<8x32xf32> -> vector<8x32xf32>
    %c0_6 = arith.constant 0 : index
    %c0_7 = arith.constant 0 : index
    %6 = vector.load %arg4[%c0_6, %c0_7] : memref<1x32xf32, #tpu.memory_space<vmem>>, vector<1x32xf32>
    %7 = vector.broadcast %6 : vector<1x32xf32> to vector<8x32xf32>
    %8 = arith.addf %5, %7 : vector<8x32xf32>
    %9 = arith.truncf %2 : vector<16x32xf32> to vector<16x32xbf16>
    %c0_8 = arith.constant 0 : index
    %c0_9 = arith.constant 0 : index
    %10 = vector.load %arg5[%c0_8, %c0_9] : memref<32x64xbf16, #tpu.memory_space<vmem>>, vector<32x64xbf16>
    %cst_10 = arith.constant dense<0.000000e+00> : vector<16x64xf32>
    %11 = tpu.matmul %9, %10, %cst_10 {dimension_numbers = #tpu.dot_dimension_numbers<[1], [0], [0], [1], [0, 0, 1, 1], [], []>} : vector<16x32xbf16>, vector<32x64xbf16>, vector<16x64xf32> -> vector<16x64xf32>
    %c0_11 = arith.constant 0 : index
    %c0_12 = arith.constant 0 : index
    %12 = vector.load %arg6[%c0_11, %c0_12] : memref<1x64xf32, #tpu.memory_space<vmem>>, vector<1x64xf32>
    %13 = vector.broadcast %12 : vector<1x64xf32> to vector<16x64xf32>
    %14 = arith.addf %11, %13 : vector<16x64xf32>
    %15 = tpu.iota {dimensions = array<i32: 1>} : vector<1x16xi32>
    %c10_i32 = arith.constant 10 : i32
    %16 = vector.broadcast %c10_i32 : i32 to vector<1x16xi32>
    %17 = arith.cmpi slt, %15, %16 : vector<1x16xi32>
    %cst_13 = arith.constant 0.000000e+00 : f32
    %cst_14 = arith.constant -1.000000e+30 : f32
    %18 = vector.broadcast %cst_13 : f32 to vector<1x16xf32>
    %19 = vector.broadcast %cst_14 : f32 to vector<1x16xf32>
    %20 = arith.select %17, %18, %19 : vector<1x16xi1>, vector<1x16xf32>
    %21 = vector.extract_strided_slice %14 {offsets = [0, 0], sizes = [16, 32], strides = [1, 1]} : vector<16x64xf32> to vector<16x32xf32>
    %22 = vector.extract_strided_slice %14 {offsets = [0, 32], sizes = [16, 32], strides = [1, 1]} : vector<16x64xf32> to vector<16x32xf32>
    %23 = vector.extract_strided_slice %8 {offsets = [0, 0], sizes = [8, 8], strides = [1, 1]} : vector<8x32xf32> to vector<8x8xf32>
    %cst_15 = arith.constant 0.353553385 : f32
    %24 = vector.broadcast %cst_15 : f32 to vector<8x8xf32>
    %25 = arith.mulf %23, %24 : vector<8x8xf32>
    %26 = arith.truncf %25 : vector<8x8xf32> to vector<8x8xbf16>
    %27 = vector.extract_strided_slice %21 {offsets = [0, 0], sizes = [16, 8], strides = [1, 1]} : vector<16x32xf32> to vector<16x8xf32>
    %28 = arith.truncf %27 : vector<16x8xf32> to vector<16x8xbf16>
    %29 = vector.extract_strided_slice %22 {offsets = [0, 0], sizes = [16, 8], strides = [1, 1]} : vector<16x32xf32> to vector<16x8xf32>
    %30 = arith.truncf %29 : vector<16x8xf32> to vector<16x8xbf16>
    "tpu.trace_start"() <{level = 10 : i32, message = "qd,kd->qk"}> : () -> ()
    %cst_16 = arith.constant dense<0.000000e+00> : vector<8x16xf32>
    %31 = tpu.matmul %26, %28, %cst_16 {dimension_numbers = #tpu.dot_dimension_numbers<[1], [1], [0], [0], [0, 0, 1, 0], [], []>} : vector<8x8xbf16>, vector<16x8xbf16>, vector<8x16xf32> -> vector<8x16xf32>
    "tpu.trace_stop"() : () -> ()
    %32 = vector.broadcast %20 : vector<1x16xf32> to vector<8x16xf32>
    %33 = arith.addf %31, %32 : vector<8x16xf32>
    %cst_17 = arith.constant dense<0xFF800000> : vector<8xf32>
    %34 = vector.multi_reduction <maximumf>, %33, %cst_17 [1] : vector<8x16xf32> to vector<8xf32>
    %35 = vector.shape_cast %34 : vector<8xf32> to vector<8x1xf32>
    %36 = vector.broadcast %35 : vector<8x1xf32> to vector<8x16xf32>
    %37 = arith.subf %33, %36 : vector<8x16xf32>
    %38 = math.exp %37 : vector<8x16xf32>
    %cst_18 = arith.constant dense<0.000000e+00> : vector<8xf32>
    %39 = vector.multi_reduction <add>, %38, %cst_18 [1] : vector<8x16xf32> to vector<8xf32>
    %40 = vector.shape_cast %39 : vector<8xf32> to vector<8x1xf32>
    %41 = arith.truncf %38 : vector<8x16xf32> to vector<8x16xbf16>
    %cst_19 = arith.constant dense<0.000000e+00> : vector<8x8xf32>
    %42 = tpu.matmul %41, %30, %cst_19 {dimension_numbers = #tpu.dot_dimension_numbers<[1], [0], [0], [1], [0, 0, 1, 1], [], []>} : vector<8x16xbf16>, vector<16x8xbf16>, vector<8x8xf32> -> vector<8x8xf32>
    %43 = tpu.reciprocal %40 {approx = true} : vector<8x1xf32> -> vector<8x1xf32>
    %44 = vector.broadcast %43 : vector<8x1xf32> to vector<8x8xf32>
    %45 = arith.mulf %42, %44 : vector<8x8xf32>
    %46 = vector.extract_strided_slice %8 {offsets = [0, 8], sizes = [8, 8], strides = [1, 1]} : vector<8x32xf32> to vector<8x8xf32>
    %cst_20 = arith.constant 0.353553385 : f32
    %47 = vector.broadcast %cst_20 : f32 to vector<8x8xf32>
    %48 = arith.mulf %46, %47 : vector<8x8xf32>
    %49 = arith.truncf %48 : vector<8x8xf32> to vector<8x8xbf16>
    %50 = vector.extract_strided_slice %21 {offsets = [0, 8], sizes = [16, 8], strides = [1, 1]} : vector<16x32xf32> to vector<16x8xf32>
    %51 = arith.truncf %50 : vector<16x8xf32> to vector<16x8xbf16>
    %52 = vector.extract_strided_slice %22 {offsets = [0, 8], sizes = [16, 8], strides = [1, 1]} : vector<16x32xf32> to vector<16x8xf32>
    %53 = arith.truncf %52 : vector<16x8xf32> to vector<16x8xbf16>
    "tpu.trace_start"() <{level = 10 : i32, message = "qd,kd->qk"}> : () -> ()
    %cst_21 = arith.constant dense<0.000000e+00> : vector<8x16xf32>
    %54 = tpu.matmul %49, %51, %cst_21 {dimension_numbers = #tpu.dot_dimension_numbers<[1], [1], [0], [0], [0, 0, 1, 0], [], []>} : vector<8x8xbf16>, vector<16x8xbf16>, vector<8x16xf32> -> vector<8x16xf32>
    "tpu.trace_stop"() : () -> ()
    %55 = vector.broadcast %20 : vector<1x16xf32> to vector<8x16xf32>
    %56 = arith.addf %54, %55 : vector<8x16xf32>
    %cst_22 = arith.constant dense<0xFF800000> : vector<8xf32>
    %57 = vector.multi_reduction <maximumf>, %56, %cst_22 [1] : vector<8x16xf32> to vector<8xf32>
    %58 = vector.shape_cast %57 : vector<8xf32> to vector<8x1xf32>
    %59 = vector.broadcast %58 : vector<8x1xf32> to vector<8x16xf32>
    %60 = arith.subf %56, %59 : vector<8x16xf32>
    %61 = math.exp %60 : vector<8x16xf32>
    %cst_23 = arith.constant dense<0.000000e+00> : vector<8xf32>
    %62 = vector.multi_reduction <add>, %61, %cst_23 [1] : vector<8x16xf32> to vector<8xf32>
    %63 = vector.shape_cast %62 : vector<8xf32> to vector<8x1xf32>
    %64 = arith.truncf %61 : vector<8x16xf32> to vector<8x16xbf16>
    %cst_24 = arith.constant dense<0.000000e+00> : vector<8x8xf32>
    %65 = tpu.matmul %64, %53, %cst_24 {dimension_numbers = #tpu.dot_dimension_numbers<[1], [0], [0], [1], [0, 0, 1, 1], [], []>} : vector<8x16xbf16>, vector<16x8xbf16>, vector<8x8xf32> -> vector<8x8xf32>
    %66 = tpu.reciprocal %63 {approx = true} : vector<8x1xf32> -> vector<8x1xf32>
    %67 = vector.broadcast %66 : vector<8x1xf32> to vector<8x8xf32>
    %68 = arith.mulf %65, %67 : vector<8x8xf32>
    %69 = vector.extract_strided_slice %8 {offsets = [0, 16], sizes = [8, 8], strides = [1, 1]} : vector<8x32xf32> to vector<8x8xf32>
    %cst_25 = arith.constant 0.353553385 : f32
    %70 = vector.broadcast %cst_25 : f32 to vector<8x8xf32>
    %71 = arith.mulf %69, %70 : vector<8x8xf32>
    %72 = arith.truncf %71 : vector<8x8xf32> to vector<8x8xbf16>
    %73 = vector.extract_strided_slice %21 {offsets = [0, 16], sizes = [16, 8], strides = [1, 1]} : vector<16x32xf32> to vector<16x8xf32>
    %74 = arith.truncf %73 : vector<16x8xf32> to vector<16x8xbf16>
    %75 = vector.extract_strided_slice %22 {offsets = [0, 16], sizes = [16, 8], strides = [1, 1]} : vector<16x32xf32> to vector<16x8xf32>
    %76 = arith.truncf %75 : vector<16x8xf32> to vector<16x8xbf16>
    "tpu.trace_start"() <{level = 10 : i32, message = "qd,kd->qk"}> : () -> ()
    %cst_26 = arith.constant dense<0.000000e+00> : vector<8x16xf32>
    %77 = tpu.matmul %72, %74, %cst_26 {dimension_numbers = #tpu.dot_dimension_numbers<[1], [1], [0], [0], [0, 0, 1, 0], [], []>} : vector<8x8xbf16>, vector<16x8xbf16>, vector<8x16xf32> -> vector<8x16xf32>
    "tpu.trace_stop"() : () -> ()
    %78 = vector.broadcast %20 : vector<1x16xf32> to vector<8x16xf32>
    %79 = arith.addf %77, %78 : vector<8x16xf32>
    %cst_27 = arith.constant dense<0xFF800000> : vector<8xf32>
    %80 = vector.multi_reduction <maximumf>, %79, %cst_27 [1] : vector<8x16xf32> to vector<8xf32>
    %81 = vector.shape_cast %80 : vector<8xf32> to vector<8x1xf32>
    %82 = vector.broadcast %81 : vector<8x1xf32> to vector<8x16xf32>
    %83 = arith.subf %79, %82 : vector<8x16xf32>
    %84 = math.exp %83 : vector<8x16xf32>
    %cst_28 = arith.constant dense<0.000000e+00> : vector<8xf32>
    %85 = vector.multi_reduction <add>, %84, %cst_28 [1] : vector<8x16xf32> to vector<8xf32>
    %86 = vector.shape_cast %85 : vector<8xf32> to vector<8x1xf32>
    %87 = arith.truncf %84 : vector<8x16xf32> to vector<8x16xbf16>
    %cst_29 = arith.constant dense<0.000000e+00> : vector<8x8xf32>
    %88 = tpu.matmul %87, %76, %cst_29 {dimension_numbers = #tpu.dot_dimension_numbers<[1], [0], [0], [1], [0, 0, 1, 1], [], []>} : vector<8x16xbf16>, vector<16x8xbf16>, vector<8x8xf32> -> vector<8x8xf32>
    %89 = tpu.reciprocal %86 {approx = true} : vector<8x1xf32> -> vector<8x1xf32>
    %90 = vector.broadcast %89 : vector<8x1xf32> to vector<8x8xf32>
    %91 = arith.mulf %88, %90 : vector<8x8xf32>
    %92 = vector.extract_strided_slice %8 {offsets = [0, 24], sizes = [8, 8], strides = [1, 1]} : vector<8x32xf32> to vector<8x8xf32>
    %cst_30 = arith.constant 0.353553385 : f32
    %93 = vector.broadcast %cst_30 : f32 to vector<8x8xf32>
    %94 = arith.mulf %92, %93 : vector<8x8xf32>
    %95 = arith.truncf %94 : vector<8x8xf32> to vector<8x8xbf16>
    %96 = vector.extract_strided_slice %21 {offsets = [0, 24], sizes = [16, 8], strides = [1, 1]} : vector<16x32xf32> to vector<16x8xf32>
    %97 = arith.truncf %96 : vector<16x8xf32> to vector<16x8xbf16>
    %98 = vector.extract_strided_slice %22 {offsets = [0, 24], sizes = [16, 8], strides = [1, 1]} : vector<16x32xf32> to vector<16x8xf32>
    %99 = arith.truncf %98 : vector<16x8xf32> to vector<16x8xbf16>
    "tpu.trace_start"() <{level = 10 : i32, message = "qd,kd->qk"}> : () -> ()
    %cst_31 = arith.constant dense<0.000000e+00> : vector<8x16xf32>
    %100 = tpu.matmul %95, %97, %cst_31 {dimension_numbers = #tpu.dot_dimension_numbers<[1], [1], [0], [0], [0, 0, 1, 0], [], []>} : vector<8x8xbf16>, vector<16x8xbf16>, vector<8x16xf32> -> vector<8x16xf32>
    "tpu.trace_stop"() : () -> ()
    %101 = vector.broadcast %20 : vector<1x16xf32> to vector<8x16xf32>
    %102 = arith.addf %100, %101 : vector<8x16xf32>
    %cst_32 = arith.constant dense<0xFF800000> : vector<8xf32>
    %103 = vector.multi_reduction <maximumf>, %102, %cst_32 [1] : vector<8x16xf32> to vector<8xf32>
    %104 = vector.shape_cast %103 : vector<8xf32> to vector<8x1xf32>
    %105 = vector.broadcast %104 : vector<8x1xf32> to vector<8x16xf32>
    %106 = arith.subf %102, %105 : vector<8x16xf32>
    %107 = math.exp %106 : vector<8x16xf32>
    %cst_33 = arith.constant dense<0.000000e+00> : vector<8xf32>
    %108 = vector.multi_reduction <add>, %107, %cst_33 [1] : vector<8x16xf32> to vector<8xf32>
    %109 = vector.shape_cast %108 : vector<8xf32> to vector<8x1xf32>
    %110 = arith.truncf %107 : vector<8x16xf32> to vector<8x16xbf16>
    %cst_34 = arith.constant dense<0.000000e+00> : vector<8x8xf32>
    %111 = tpu.matmul %110, %99, %cst_34 {dimension_numbers = #tpu.dot_dimension_numbers<[1], [0], [0], [1], [0, 0, 1, 1], [], []>} : vector<8x16xbf16>, vector<16x8xbf16>, vector<8x8xf32> -> vector<8x8xf32>
    %112 = tpu.reciprocal %109 {approx = true} : vector<8x1xf32> -> vector<8x1xf32>
    %113 = vector.broadcast %112 : vector<8x1xf32> to vector<8x8xf32>
    %114 = arith.mulf %111, %113 : vector<8x8xf32>
    %115 = tpu.concatenate %45, %68, %91, %114 in 1 : vector<8x8xf32>, vector<8x8xf32>, vector<8x8xf32>, vector<8x8xf32> -> vector<8x32xf32>
    %116 = arith.truncf %115 : vector<8x32xf32> to vector<8x32xbf16>
    %c0_35 = arith.constant 0 : index
    %c0_36 = arith.constant 0 : index
    %117 = vector.load %arg7[%c0_35, %c0_36] : memref<32x32xbf16, #tpu.memory_space<vmem>>, vector<32x32xbf16>
    %cst_37 = arith.constant dense<0.000000e+00> : vector<8x32xf32>
    %118 = tpu.matmul %116, %117, %cst_37 {dimension_numbers = #tpu.dot_dimension_numbers<[1], [0], [0], [1], [0, 0, 1, 1], [], []>} : vector<8x32xbf16>, vector<32x32xbf16>, vector<8x32xf32> -> vector<8x32xf32>
    %c0_38 = arith.constant 0 : index
    %c0_39 = arith.constant 0 : index
    %119 = vector.load %arg8[%c0_38, %c0_39] : memref<1x32xf32, #tpu.memory_space<vmem>>, vector<1x32xf32>
    %120 = vector.broadcast %119 : vector<1x32xf32> to vector<8x32xf32>
    %121 = arith.addf %118, %120 : vector<8x32xf32>
    %122 = arith.addf %121, %0 : vector<8x32xf32>
    %c0_40 = arith.constant 0 : index
    %c0_41 = arith.constant 0 : index
    %123 = vector.load %arg9[%c0_40, %c0_41] : memref<1x32xf32, #tpu.memory_space<vmem>>, vector<1x32xf32>
    %c0_42 = arith.constant 0 : index
    %c0_43 = arith.constant 0 : index
    %124 = vector.load %arg10[%c0_42, %c0_43] : memref<1x32xf32, #tpu.memory_space<vmem>>, vector<1x32xf32>
    %cst_44 = arith.constant dense<0.000000e+00> : vector<8xf32>
    %125 = vector.multi_reduction <add>, %122, %cst_44 [1] : vector<8x32xf32> to vector<8xf32>
    %126 = vector.shape_cast %125 : vector<8xf32> to vector<8x1xf32>
    %cst_45 = arith.constant 3.200000e+01 : f32
    %127 = vector.broadcast %cst_45 : f32 to vector<8x1xf32>
    %128 = arith.divf %126, %127 : vector<8x1xf32>
    %129 = vector.broadcast %128 : vector<8x1xf32> to vector<8x32xf32>
    %130 = arith.subf %122, %129 : vector<8x32xf32>
    %131 = arith.mulf %130, %130 : vector<8x32xf32>
    %cst_46 = arith.constant dense<0.000000e+00> : vector<8xf32>
    %132 = vector.multi_reduction <add>, %131, %cst_46 [1] : vector<8x32xf32> to vector<8xf32>
    %133 = vector.shape_cast %132 : vector<8xf32> to vector<8x1xf32>
    %cst_47 = arith.constant 3.200000e+01 : f32
    %134 = vector.broadcast %cst_47 : f32 to vector<8x1xf32>
    %135 = arith.divf %133, %134 : vector<8x1xf32>
    %136 = vector.broadcast %128 : vector<8x1xf32> to vector<8x32xf32>
    %137 = arith.subf %122, %136 : vector<8x32xf32>
    %cst_48 = arith.constant 9.99999974E-6 : f32
    %138 = vector.broadcast %cst_48 : f32 to vector<8x1xf32>
    %139 = arith.addf %135, %138 : vector<8x1xf32>
    %140 = math.rsqrt %139 : vector<8x1xf32>
    %141 = vector.broadcast %140 : vector<8x1xf32> to vector<8x32xf32>
    %142 = arith.mulf %137, %141 : vector<8x32xf32>
    %143 = vector.broadcast %123 : vector<1x32xf32> to vector<8x32xf32>
    %144 = arith.mulf %142, %143 : vector<8x32xf32>
    %145 = vector.broadcast %124 : vector<1x32xf32> to vector<8x32xf32>
    %146 = arith.addf %144, %145 : vector<8x32xf32>
    %c0_49 = arith.constant 0 : index
    %c0_50 = arith.constant 0 : index
    %147 = vector.load %arg11[%c0_49, %c0_50] : memref<8x32xf32, #tpu.memory_space<vmem>>, vector<8x32xf32>
    tpu.vector_store %arg11[%c0_49, %c0_50], %146 {strides = array<i32>} : memref<8x32xf32, #tpu.memory_space<vmem>>, vector<8x32xf32>,
    return
  }
  func.func @transform_0(%arg0: i32) -> (i32, i32) {
    %c0_i32 = arith.constant 0 : i32
    %c0_i32_0 = arith.constant 0 : i32
    return %arg0, %c0_i32 : i32, i32
  }
  func.func @transform_1(%arg0: i32) -> (i32, i32, i32) {
    %c0_i32 = arith.constant 0 : i32
    %c0_i32_0 = arith.constant 0 : i32
    %c0_i32_1 = arith.constant 0 : i32
    return %arg0, %c0_i32, %c0_i32_0 : i32, i32, i32
  }
  func.func @transform_2(%arg0: i32) -> (i32, i32) {
    %c0_i32 = arith.constant 0 : i32
    %c0_i32_0 = arith.constant 0 : i32
    %c0_i32_1 = arith.constant 0 : i32
    return %c0_i32, %c0_i32_0 : i32, i32
  }
  func.func @transform_3(%arg0: i32) -> (i32, i32) {
    %c0_i32 = arith.constant 0 : i32
    %c0_i32_0 = arith.constant 0 : i32
    %c0_i32_1 = arith.constant 0 : i32
    return %c0_i32, %c0_i32_0 : i32, i32
  }
  func.func @transform_4(%arg0: i32) -> (i32, i32) {
    %c0_i32 = arith.constant 0 : i32
    %c0_i32_0 = arith.constant 0 : i32
    %c0_i32_1 = arith.constant 0 : i32
    return %c0_i32, %c0_i32_0 : i32, i32
  }
  func.func @transform_5(%arg0: i32) -> (i32, i32) {
    %c0_i32 = arith.constant 0 : i32
    %c0_i32_0 = arith.constant 0 : i32
    %c0_i32_1 = arith.constant 0 : i32
    return %c0_i32, %c0_i32_0 : i32, i32
  }
  func.func @transform_6(%arg0: i32) -> (i32, i32) {
    %c0_i32 = arith.constant 0 : i32
    %c0_i32_0 = arith.constant 0 : i32
    %c0_i32_1 = arith.constant 0 : i32
    return %c0_i32, %c0_i32_0 : i32, i32
  }
  func.func @transform_7(%arg0: i32) -> (i32, i32) {
    %c0_i32 = arith.constant 0 : i32
    %c0_i32_0 = arith.constant 0 : i32
    %c0_i32_1 = arith.constant 0 : i32
    return %c0_i32, %c0_i32_0 : i32, i32
  }
  func.func @transform_8(%arg0: i32) -> (i32, i32) {
    %c0_i32 = arith.constant 0 : i32
    %c0_i32_0 = arith.constant 0 : i32
    %c0_i32_1 = arith.constant 0 : i32
    return %c0_i32, %c0_i32_0 : i32, i32
  }
  func.func @transform_9(%arg0: i32) -> (i32, i32) {
    %c0_i32 = arith.constant 0 : i32
    %c0_i32_0 = arith.constant 0 : i32
    %c0_i32_1 = arith.constant 0 : i32
    return %c0_i32, %c0_i32_0 : i32, i32
  }
  func.func @transform_10(%arg0: i32) -> (i32, i32) {
    %c0_i32 = arith.constant 0 : i32
    %c0_i32_0 = arith.constant 0 : i32
    return %arg0, %c0_i32 : i32, i32
  }
}

module attributes {stable_mosaic.version = 11 : i64} {
  func.func @_ffn_block_kernel(%arg0: i32, %arg1: memref<8x32xf32, #tpu.memory_space<vmem>>, %arg2: memref<32x64xbf16, #tpu.memory_space<vmem>>, %arg3: memref<1x64xf32, #tpu.memory_space<vmem>>, %arg4: memref<64x32xbf16, #tpu.memory_space<vmem>>, %arg5: memref<1x32xf32, #tpu.memory_space<vmem>>, %arg6: memref<1x32xf32, #tpu.memory_space<vmem>>, %arg7: memref<1x32xf32, #tpu.memory_space<vmem>>, %arg8: memref<8x32xf32, #tpu.memory_space<vmem>>) attributes {dimension_semantics = [#tpu.dimension_semantics<parallel>], iteration_bounds = array<i64: 2>, scalar_prefetch = 0 : i64, scratch_operands = 0 : i64, tpu.core_type = #tpu.core_type<tc>, window_params = [{transform_indices = @transform_0, window_bounds = array<i64: 8, 32>}, {pipeline_mode = #tpu.pipeline_mode<synchronous>, transform_indices = @transform_1, window_bounds = array<i64: 32, 64>}, {pipeline_mode = #tpu.pipeline_mode<synchronous>, transform_indices = @transform_2, window_bounds = array<i64: 1, 64>}, {pipeline_mode = #tpu.pipeline_mode<synchronous>, transform_indices = @transform_3, window_bounds = array<i64: 64, 32>}, {pipeline_mode = #tpu.pipeline_mode<synchronous>, transform_indices = @transform_4, window_bounds = array<i64: 1, 32>}, {pipeline_mode = #tpu.pipeline_mode<synchronous>, transform_indices = @transform_5, window_bounds = array<i64: 1, 32>}, {pipeline_mode = #tpu.pipeline_mode<synchronous>, transform_indices = @transform_6, window_bounds = array<i64: 1, 32>}, {transform_indices = @transform_7, window_bounds = array<i64: 8, 32>}]} {
    %c0 = arith.constant 0 : index
    %c0_0 = arith.constant 0 : index
    %0 = vector.load %arg1[%c0, %c0_0] : memref<8x32xf32, #tpu.memory_space<vmem>>, vector<8x32xf32>
    %1 = arith.truncf %0 : vector<8x32xf32> to vector<8x32xbf16>
    %c0_1 = arith.constant 0 : index
    %c0_2 = arith.constant 0 : index
    %2 = vector.load %arg2[%c0_1, %c0_2] : memref<32x64xbf16, #tpu.memory_space<vmem>>, vector<32x64xbf16>
    %cst = arith.constant dense<0.000000e+00> : vector<8x64xf32>
    %3 = tpu.matmul %1, %2, %cst {dimension_numbers = #tpu.dot_dimension_numbers<[1], [0], [0], [1], [0, 0, 1, 1], [], []>} : vector<8x32xbf16>, vector<32x64xbf16>, vector<8x64xf32> -> vector<8x64xf32>
    %c0_3 = arith.constant 0 : index
    %c0_4 = arith.constant 0 : index
    %4 = vector.load %arg3[%c0_3, %c0_4] : memref<1x64xf32, #tpu.memory_space<vmem>>, vector<1x64xf32>
    %5 = vector.broadcast %4 : vector<1x64xf32> to vector<8x64xf32>
    %6 = arith.addf %3, %5 : vector<8x64xf32>
    %cst_5 = arith.constant 0.000000e+00 : f32
    %7 = vector.broadcast %cst_5 : f32 to vector<8x64xf32>
    %8 = arith.maximumf %6, %7 : vector<8x64xf32>
    %9 = arith.truncf %8 : vector<8x64xf32> to vector<8x64xbf16>
    %c0_6 = arith.constant 0 : index
    %c0_7 = arith.constant 0 : index
    %10 = vector.load %arg4[%c0_6, %c0_7] : memref<64x32xbf16, #tpu.memory_space<vmem>>, vector<64x32xbf16>
    %cst_8 = arith.constant dense<0.000000e+00> : vector<8x32xf32>
    %11 = tpu.matmul %9, %10, %cst_8 {dimension_numbers = #tpu.dot_dimension_numbers<[1], [0], [0], [1], [0, 0, 1, 1], [], []>} : vector<8x64xbf16>, vector<64x32xbf16>, vector<8x32xf32> -> vector<8x32xf32>
    %c0_9 = arith.constant 0 : index
    %c0_10 = arith.constant 0 : index
    %12 = vector.load %arg5[%c0_9, %c0_10] : memref<1x32xf32, #tpu.memory_space<vmem>>, vector<1x32xf32>
    %13 = vector.broadcast %12 : vector<1x32xf32> to vector<8x32xf32>
    %14 = arith.addf %11, %13 : vector<8x32xf32>
    %15 = arith.addf %14, %0 : vector<8x32xf32>
    %c0_11 = arith.constant 0 : index
    %c0_12 = arith.constant 0 : index
    %16 = vector.load %arg6[%c0_11, %c0_12] : memref<1x32xf32, #tpu.memory_space<vmem>>, vector<1x32xf32>
    %c0_13 = arith.constant 0 : index
    %c0_14 = arith.constant 0 : index
    %17 = vector.load %arg7[%c0_13, %c0_14] : memref<1x32xf32, #tpu.memory_space<vmem>>, vector<1x32xf32>
    %cst_15 = arith.constant dense<0.000000e+00> : vector<8xf32>
    %18 = vector.multi_reduction <add>, %15, %cst_15 [1] : vector<8x32xf32> to vector<8xf32>
    %19 = vector.shape_cast %18 : vector<8xf32> to vector<8x1xf32>
    %cst_16 = arith.constant 3.200000e+01 : f32
    %20 = vector.broadcast %cst_16 : f32 to vector<8x1xf32>
    %21 = arith.divf %19, %20 : vector<8x1xf32>
    %22 = vector.broadcast %21 : vector<8x1xf32> to vector<8x32xf32>
    %23 = arith.subf %15, %22 : vector<8x32xf32>
    %24 = arith.mulf %23, %23 : vector<8x32xf32>
    %cst_17 = arith.constant dense<0.000000e+00> : vector<8xf32>
    %25 = vector.multi_reduction <add>, %24, %cst_17 [1] : vector<8x32xf32> to vector<8xf32>
    %26 = vector.shape_cast %25 : vector<8xf32> to vector<8x1xf32>
    %cst_18 = arith.constant 3.200000e+01 : f32
    %27 = vector.broadcast %cst_18 : f32 to vector<8x1xf32>
    %28 = arith.divf %26, %27 : vector<8x1xf32>
    %29 = vector.broadcast %21 : vector<8x1xf32> to vector<8x32xf32>
    %30 = arith.subf %15, %29 : vector<8x32xf32>
    %cst_19 = arith.constant 9.99999974E-6 : f32
    %31 = vector.broadcast %cst_19 : f32 to vector<8x1xf32>
    %32 = arith.addf %28, %31 : vector<8x1xf32>
    %33 = math.rsqrt %32 : vector<8x1xf32>
    %34 = vector.broadcast %33 : vector<8x1xf32> to vector<8x32xf32>
    %35 = arith.mulf %30, %34 : vector<8x32xf32>
    %36 = vector.broadcast %16 : vector<1x32xf32> to vector<8x32xf32>
    %37 = arith.mulf %35, %36 : vector<8x32xf32>
    %38 = vector.broadcast %17 : vector<1x32xf32> to vector<8x32xf32>
    %39 = arith.addf %37, %38 : vector<8x32xf32>
    %c0_20 = arith.constant 0 : index
    %c0_21 = arith.constant 0 : index
    %40 = vector.load %arg8[%c0_20, %c0_21] : memref<8x32xf32, #tpu.memory_space<vmem>>, vector<8x32xf32>
    tpu.vector_store %arg8[%c0_20, %c0_21], %39 {strides = array<i32>} : memref<8x32xf32, #tpu.memory_space<vmem>>, vector<8x32xf32>,
    return
  }
  func.func @transform_0(%arg0: i32) -> (i32, i32) {
    %c0_i32 = arith.constant 0 : i32
    %c0_i32_0 = arith.constant 0 : i32
    return %arg0, %c0_i32 : i32, i32
  }
  func.func @transform_1(%arg0: i32) -> (i32, i32) {
    %c0_i32 = arith.constant 0 : i32
    %c0_i32_0 = arith.constant 0 : i32
    %c0_i32_1 = arith.constant 0 : i32
    return %c0_i32, %c0_i32_0 : i32, i32
  }
  func.func @transform_2(%arg0: i32) -> (i32, i32) {
    %c0_i32 = arith.constant 0 : i32
    %c0_i32_0 = arith.constant 0 : i32
    %c0_i32_1 = arith.constant 0 : i32
    return %c0_i32, %c0_i32_0 : i32, i32
  }
  func.func @transform_3(%arg0: i32) -> (i32, i32) {
    %c0_i32 = arith.constant 0 : i32
    %c0_i32_0 = arith.constant 0 : i32
    %c0_i32_1 = arith.constant 0 : i32
    return %c0_i32, %c0_i32_0 : i32, i32
  }
  func.func @transform_4(%arg0: i32) -> (i32, i32) {
    %c0_i32 = arith.constant 0 : i32
    %c0_i32_0 = arith.constant 0 : i32
    %c0_i32_1 = arith.constant 0 : i32
    return %c0_i32, %c0_i32_0 : i32, i32
  }
  func.func @transform_5(%arg0: i32) -> (i32, i32) {
    %c0_i32 = arith.constant 0 : i32
    %c0_i32_0 = arith.constant 0 : i32
    %c0_i32_1 = arith.constant 0 : i32
    return %c0_i32, %c0_i32_0 : i32, i32
  }
  func.func @transform_6(%arg0: i32) -> (i32, i32) {
    %c0_i32 = arith.constant 0 : i32
    %c0_i32_0 = arith.constant 0 : i32
    %c0_i32_1 = arith.constant 0 : i32
    return %c0_i32, %c0_i32_0 : i32, i32
  }
  func.func @transform_7(%arg0: i32) -> (i32, i32) {
    %c0_i32 = arith.constant 0 : i32
    %c0_i32_0 = arith.constant 0 : i32
    return %arg0, %c0_i32 : i32, i32
  }
}

</mosaic_0001>

<llo_original>
// kernel: transformer_decoder_forward.13
$region0: #{transformer_decoder_forward.13}
  #allocation0 [shape = 'u32[]', space=smem, size = 0x4, offset = 0x4, fixed_abs, tag = 'smem constant byte address 0x4 - core index']
  #allocation1 [shape = 'u32[144,128]{1,0:T(1,128)}', space=vmem, size = 0x12000, scoped, tag = 'internal scratch']
  %s0 = inlined_call_operand.vmem [shape: f32[16,32], index: 0, kind: input, shape index: {}]
  %s1 = inlined_call_operand.vmem [shape: bf16[32,128], index: 1, kind: input, shape index: {}]
  %s2 = inlined_call_operand.vmem [shape: f32[1,128], index: 2, kind: input, shape index: {}]
  %s3 = inlined_call_operand.vmem [shape: f32[16,128], index: 3, kind: output, shape index: {}]
  %s4 = sld [smem:[#allocation0]]
  $region53: #{transformer_decoder_forward.13} parent=0
    _
  %s6 = ssub.s32 1, %s4
  %s7 = scalar_select 0, %s6, %s4
  loop: start=0, step=1, limit=4
  $region2: #{transformer_decoder_forward.13} parent=0 // loop_pre_header
    _
  $region3: #{transformer_decoder_forward.13} parent=0 // loop_header
    %s9 = sphi 0, %s13
    %p10 = scmp.ge.s32.totalorder %s9, 4
    %s16 = sphi 0, %s35
    %s17 = sphi 0, %s31
    %s18 = sphi 0, %s27
    %s19 = sphi 0, %s16
    %s20 = sphi 0, %s17
    %s21 = sphi 0, %s18
    %s22 = sphi 0, %s19
    %s23 = sphi 0, %s20
    %s24 = sphi 0, %s21
    %s40 = sphi 0, %s42
    %s43 = sphi 0, %s40
    %s44 = sphi 0, %s43
    %s60 = sphi 0, %s44
    %s68 = sphi 0, %s70
    %s71 = sphi 0, %s68
    %s72 = sphi 0, %s71
    %s88 = sphi 0, %s72
    %s94 = sphi 0, %s96
    %s97 = sphi 0, %s94
    %s98 = sphi 0, %s97
    %s114 = sphi 0, %s98
    %s122 = sphi 0, %s124
    %s125 = sphi 0, %s122
    %s126 = sphi 0, %s125
    %s142 = sphi 0, %s126
  $region4: #{transformer_decoder_forward.13} parent=0 // loop_header_branch
    %12 = sbr.rel (%p10) target = $region8
  $region5: #{transformer_decoder_forward.13} parent=0 // loop_body
    %s14 = ssub.s32 %s9, 1
    %s15 = ssub.s32 %s9, 2
    %s25 = sadd.s32 1, %s18
    %p26 = scmp.ge.s32.totalorder %s25, 1
    %s27 = scalar_select %p26, 0, %s25
    %s28 = sadd.s32 1, %s17
    %s29 = scalar_select %p26, %s28, %s17
    %p30 = scmp.ge.s32.totalorder %s29, 1
    %s31 = scalar_select %p30, 0, %s29
    %s32 = sadd.s32 1, %s16
    %s33 = scalar_select %p30, %s32, %s16
    %p34 = scmp.ge.s32.totalorder %s33, 2
    %s35 = scalar_select %p34, 0, %s33
    %s36 = ssub.s32 %s16, %s35
    %s37 = ssub.s32 %s18, %s27
    %s38 = sor.u32 %s36, %s37
    %p39 = scmp.eq.s32.totalorder %s38, 0
    %s41 = sadd.s32 %s40, 1
    %s42 = scalar_select %p39, %s40, %s41
    %p45 = pneg %p39
    %p46 = scmp.eq.s32.totalorder %s9, 1
    %p47 = por %p45, %p46
    %p48 = scmp.ne.s32.totalorder %s40, %s43
    %p49 = scmp.eq.s32.totalorder %s9, 0
    %p50 = por %p48, %p49
    %p51 = scmp.ne.s32.totalorder %s40, %s43
    %p52 = scmp.eq.s32.totalorder %s14, 1
    %p53 = por %p51, %p52
    %p54 = scmp.ne.s32.totalorder %s43, %s44
    %p55 = scmp.eq.s32.totalorder %s14, 0
    %p56 = por %p54, %p55
    %p57 = scmp.ne.s32.totalorder %s43, %s44
    %p58 = scmp.eq.s32.totalorder %s15, 1
    %p59 = por %p57, %p58
    %p61 = scmp.ne.s32.totalorder %s44, %s60
    %p62 = scmp.eq.s32.totalorder %s15, 0
    %p63 = por %p61, %p62
    %s64 = ssub.s32 %s18, %s27
    %s65 = ssub.s32 %s17, %s31
    %s66 = sor.u32 %s64, %s65
    %p67 = scmp.eq.s32.totalorder %s66, 0
    %s69 = sadd.s32 %s68, 1
    %s70 = scalar_select %p67, %s68, %s69
    %p73 = pneg %p67
    %p74 = scmp.eq.s32.totalorder %s9, 1
    %p75 = por %p73, %p74
    %p76 = scmp.ne.s32.totalorder %s68, %s71
    %p77 = scmp.eq.s32.totalorder %s9, 0
    %p78 = por %p76, %p77
    %p79 = scmp.ne.s32.totalorder %s68, %s71
    %p80 = scmp.eq.s32.totalorder %s14, 1
    %p81 = por %p79, %p80
    %p82 = scmp.ne.s32.totalorder %s71, %s72
    %p83 = scmp.eq.s32.totalorder %s14, 0
    %p84 = por %p82, %p83
    %p85 = scmp.ne.s32.totalorder %s71, %s72
    %p86 = scmp.eq.s32.totalorder %s15, 1
    %p87 = por %p85, %p86
    %p89 = scmp.ne.s32.totalorder %s72, %s88
    %p90 = scmp.eq.s32.totalorder %s15, 0
    %p91 = por %p89, %p90
    %s92 = ssub.s32 %s17, %s31
    %p93 = scmp.eq.s32.totalorder %s92, 0
    %s95 = sadd.s32 %s94, 1
    %s96 = scalar_select %p93, %s94, %s95
    %p99 = pneg %p93
    %p100 = scmp.eq.s32.totalorder %s9, 1
    %p101 = por %p99, %p100
    %p102 = scmp.ne.s32.totalorder %s94, %s97
    %p103 = scmp.eq.s32.totalorder %s9, 0
    %p104 = por %p102, %p103
    %p105 = scmp.ne.s32.totalorder %s94, %s97
    %p106 = scmp.eq.s32.totalorder %s14, 1
    %p107 = por %p105, %p106
    %p108 = scmp.ne.s32.totalorder %s97, %s98
    %p109 = scmp.eq.s32.totalorder %s14, 0
    %p110 = por %p108, %p109
    %p111 = scmp.ne.s32.totalorder %s97, %s98
    %p112 = scmp.eq.s32.totalorder %s15, 1
    %p113 = por %p111, %p112
    %p115 = scmp.ne.s32.totalorder %s98, %s114
    %p116 = scmp.eq.s32.totalorder %s15, 0
    %p117 = por %p115, %p116
    %s118 = ssub.s32 %s16, %s35
    %s119 = ssub.s32 %s17, %s31
    %s120 = sor.u32 %s118, %s119
    %p121 = scmp.eq.s32.totalorder %s120, 0
    %s123 = sadd.s32 %s122, 1
    %s124 = scalar_select %p121, %s122, %s123
    %p127 = pneg %p121
    %p128 = scmp.eq.s32.totalorder %s9, 1
    %p129 = por %p127, %p128
    %p130 = scmp.ne.s32.totalorder %s122, %s125
    %p131 = scmp.eq.s32.totalorder %s9, 0
    %p132 = por %p130, %p131
    %p133 = scmp.ne.s32.totalorder %s122, %s125
    %p134 = scmp.eq.s32.totalorder %s14, 1
    %p135 = por %p133, %p134
    %p136 = scmp.ne.s32.totalorder %s125, %s126
    %p137 = scmp.eq.s32.totalorder %s14, 0
    %p138 = por %p136, %p137
    %p139 = scmp.ne.s32.totalorder %s125, %s126
    %p140 = scmp.eq.s32.totalorder %s15, 1
    %p141 = por %p139, %p140
    %p143 = scmp.ne.s32.totalorder %s126, %s142
    %p144 = scmp.eq.s32.totalorder %s15, 0
    %p145 = por %p143, %p144
    %p146 = scmp.le.s32.totalorder 1, %s9
    %p147 = scmp.lt.s32.totalorder %s9, 3
    %p148 = pnand %p146, %p147
    %p149 = pneg %p148
    // Predicated region
    $region9: #{transformer_decoder_forward.13} parent=5 // pred_check
      _
    $region10: #{transformer_decoder_forward.13} parent=5 // pred_check_branch
      %151 = sbr.rel (%p148) target = $region12
    $region11: #{transformer_decoder_forward.13} parent=5 // pred_region
      %s152 = ssub.s32 %s9, 1
      // Predicated region
      $region13: #{transformer_decoder_forward.13} parent=11 // pred_check
        %p153 = pneg %p84
      $region14: #{transformer_decoder_forward.13} parent=11 // pred_check_branch
        %155 = sbr.rel (%p153) target = $region16
      $region15: #{transformer_decoder_forward.13} parent=11 // pred_region
        %s156 = smul.u32 4, %s21
        %p157 = scmp.lt.s32.totalorder %s156, 3
        %s158 = scalar_select %p157, %s156, 3
        %p159 = scmp.lt.s32.totalorder %s20, 0
        %s160 = scalar_select %p159, %s20, 0
        %s161 = sadd.s32 %s160, %s158
        %s162 = smul.addr %s161, 4
        %s163 = scalar_lea.vmem %s1, %s162
        %s164 = smul.u32 4, %s21
      $region16: #{transformer_decoder_forward.13} parent=11 // pred_fallthru
        _
      // Predicated region
      $region17: #{transformer_decoder_forward.13} parent=11 // pred_check
        %p165 = pneg %p110
      $region18: #{transformer_decoder_forward.13} parent=11 // pred_check_branch
        %167 = sbr.rel (%p165) target = $region20
      $region19: #{transformer_decoder_forward.13} parent=11 // pred_region
        %p168 = scmp.lt.s32.totalorder %s20, 0
        %s169 = scalar_select %p168, %s20, 0
        %s170 = scalar_lea.vmem %s2, %s169
      $region20: #{transformer_decoder_forward.13} parent=11 // pred_fallthru
        _
    $region12: #{transformer_decoder_forward.13} parent=5 // pred_fallthru
      _
    %p171 = scmp.lt.s32.totalorder %s9, 2
    // Predicated region
    $region21: #{transformer_decoder_forward.13} parent=5 // pred_check
      %p172 = pneg %p171
    $region22: #{transformer_decoder_forward.13} parent=5 // pred_check_branch
      %174 = sbr.rel (%p172) target = $region24
    $region23: #{transformer_decoder_forward.13} parent=5 // pred_region
      // Predicated region
      $region25: #{transformer_decoder_forward.13} parent=23 // pred_check
        %p175 = pneg %p50
      $region26: #{transformer_decoder_forward.13} parent=23 // pred_check_branch
        %177 = sbr.rel (%p175) target = $region28
      $region27: #{transformer_decoder_forward.13} parent=23 // pred_region
        %p178 = scmp.lt.s32.totalorder %s16, 1
        %s179 = scalar_select %p178, %s16, 1
        %p180 = scmp.lt.s32.totalorder %s18, 0
        %s181 = scalar_select %p180, %s18, 0
        %s182 = sadd.s32 %s181, %s179
        %s183 = smul.addr %s182, 8
        %s184 = scalar_lea.vmem %s0, %s183
      $region28: #{transformer_decoder_forward.13} parent=23 // pred_fallthru
        _
    $region24: #{transformer_decoder_forward.13} parent=5 // pred_fallthru
      _
    %p185 = scmp.le.s32.totalorder 1, %s9
    %p186 = scmp.lt.s32.totalorder %s9, 3
    %p187 = pnand %p185, %p186
    %p188 = pneg %p187
    // Predicated region
    $region29: #{transformer_decoder_forward.13} parent=5 // pred_check
      _
    $region30: #{transformer_decoder_forward.13} parent=5 // pred_check_branch
      %190 = sbr.rel (%p187) target = $region32
    $region31: #{transformer_decoder_forward.13} parent=5 // pred_region
      %s191 = ssub.s32 %s9, 1
      %p192 = scmp.lt.s32.totalorder %s19, 1
      %s193 = scalar_select %p192, %s19, 1
      %p194 = scmp.lt.s32.totalorder %s21, 0
      %s195 = scalar_select %p194, %s21, 0
      %s196 = sadd.s32 %s195, %s193
      %s197 = smul.addr %s196, 8
      %s198 = scalar_lea.vmem %s0, %s197
      %p199 = pneg %p56
      %p200 = pneg %p53
      %s201 = smul.u32 4, %s21
      %p202 = scmp.lt.s32.totalorder %s201, 3
      %s203 = scalar_select %p202, %s201, 3
      %p204 = scmp.lt.s32.totalorder %s20, 0
      %s205 = scalar_select %p204, %s20, 0
      %s206 = sadd.s32 %s205, %s203
      %s207 = smul.addr %s206, 4
      %s208 = scalar_lea.vmem %s1, %s207
      %p209 = pneg %p84
      %p210 = pneg %p81
      %p211 = scmp.lt.s32.totalorder %s20, 0
      %s212 = scalar_select %p211, %s20, 0
      %s213 = scalar_lea.vmem %s2, %s212
      %p214 = pneg %p110
      %p215 = pneg %p107
      %p216 = pneg %p138
      %p217 = pneg %p135
      %p218 = scmp.lt.s32.totalorder %s19, 1
      %s219 = scalar_select %p218, %s19, 1
      %p220 = scmp.lt.s32.totalorder %s20, 0
      %s221 = scalar_select %p220, %s20, 0
      %s222 = sadd.s32 %s221, %s219
      %s223 = smul.addr %s222, 8
      %s224 = scalar_lea.vmem %s3, %s223
      %p225 = scmp.lt.s32.totalorder %s19, 1
      %s226 = scalar_select %p225, %s19, 1
      %p227 = scmp.lt.s32.totalorder %s21, 0
      %s228 = scalar_select %p227, %s21, 0
      %s229 = sadd.s32 %s228, %s226
      %s230 = smul.addr %s229, 8
      %s231 = scalar_lea.vmem %s0, %s230
      %s232 = smul.u32 4, %s21
      %p233 = scmp.lt.s32.totalorder %s232, 3
      %s234 = scalar_select %p233, %s232, 3
      %p235 = scmp.lt.s32.totalorder %s20, 0
      %s236 = scalar_select %p235, %s20, 0
      %s237 = sadd.s32 %s236, %s234
      %s238 = smul.addr %s237, 4
      %s239 = scalar_lea.vmem %s1, %s238
      %s240 = smul.u32 4, %s21
      %p241 = scmp.lt.s32.totalorder %s20, 0
      %s242 = scalar_select %p241, %s20, 0
      %s243 = scalar_lea.vmem %s2, %s242
      %p244 = scmp.lt.s32.totalorder %s19, 1
      %s245 = scalar_select %p244, %s19, 1
      %p246 = scmp.lt.s32.totalorder %s20, 0
      %s247 = scalar_select %p246, %s20, 0
      %s248 = sadd.s32 %s247, %s245
      %s249 = smul.addr %s248, 8
      %s250 = scalar_lea.vmem %s3, %s249
      %p252 = scmp.eq.s32.totalorder %s21, 0
      // Predicated region
      $region33: #{transformer_decoder_forward.13} parent=31 // pred_check
        %p253 = pneg %p252
      $region34: #{transformer_decoder_forward.13} parent=31 // pred_check_branch
        %255 = sbr.rel (%p253) target = $region36
      $region35: #{transformer_decoder_forward.13} parent=31 // pred_region
        %256 = vst [vmem:[%s250] sm:$0xff] 0.0
      $region36: #{transformer_decoder_forward.13} parent=31 // pred_fallthru
        _
      %v257 = vld [vmem:[%s250] sm:$0xff]
      %v258 = vld [vmem:[%s231] sm:$0xff]
      %v259 = vpack.c.bf16 %v258, %v258
      %v260 = vld [vmem:[%s239] sm:$0xf]
      %v261 = vld [vmem:[%s239 + $0x4] sm:$0xf]
      %v262 = vld [vmem:[%s239 + $0x8] sm:$0xf]
      %v263 = vld [vmem:[%s239 + $0xc] sm:$0xf]
      %v268 = vunpack.c.l.b16 %v260
      %v269 = vunpack.c.l.b16 %v261
      %v270 = vunpack.c.l.b16 %v262
      %v271 = vunpack.c.l.b16 %v263
      %v272 = vpack.c.b16 %v269, %v268
      %v273 = vpack.c.b16 %v271, %v270
      %vm276 = vcmask 261120
      %v278 = vsel %vm276, %v259, 0
      %280 = vmatprep.subr.bf16.mxu0 0
      %281 = vmatpush1.bf16.msra.mxu0 %v272
      %282 = vmatprep.subr.bf16.mxu0 0
      %283 = vmatpush1.bf16.msra.mxu0 %v273
      %284 = vmatprep.subr.bf16.mxu0 0
      %285 = vmatpush1.bf16.msra.mxu0 0
      %286 = vmatprep.subr.bf16.mxu0 0
      %287 = vmatpush1.bf16.msra.mxu0 0
      %288 = vmatprep.subr.bf16.mxu0 0
      %289 = vmatpush1.bf16.msra.mxu0 0
      %290 = vmatprep.subr.bf16.mxu0 0
      %291 = vmatpush1.bf16.msra.mxu0 0
      %292 = vmatprep.subr.bf16.mxu0 0
      %293 = vmatpush1.bf16.msra.mxu0 0
      %294 = vmatprep.subr.bf16.mxu0 0
      %295 = vmatpush1.bf16.msra.mxu0 0
      %296 = vmatprep.subr.bf16.mxu0 0
      %297 = vmatpush1.bf16.msra.mxu0 0
      %298 = vmatprep.subr.bf16.mxu0 0
      %299 = vmatpush1.bf16.msra.mxu0 0
      %300 = vmatprep.subr.bf16.mxu0 0
      %301 = vmatpush1.bf16.msra.mxu0 0
      %302 = vmatprep.subr.bf16.mxu0 0
      %303 = vmatpush1.bf16.msra.mxu0 0
      %304 = vmatprep.subr.bf16.mxu0 0
      %305 = vmatpush1.bf16.msra.mxu0 0
      %306 = vmatprep.subr.bf16.mxu0 0
      %307 = vmatpush1.bf16.msra.mxu0 0
      %308 = vmatprep.subr.bf16.mxu0 0
      %309 = vmatpush1.bf16.msra.mxu0 0
      %310 = vmatprep.subr.bf16.mxu0 0
      %311 = vmatpush1.bf16.msra.mxu0 0
      %312 = vmatprep.mubr.bf16.mxu0 0
      %313 = vmatmul.mubr.bf16.gmra.mrb[0].mxu0 %v278
      %v314 = vpop.f32.mrb[0].mxu0
      %v315 = vadd.f32 0.0, %v314
      %v316 = vpop.f32.mrb[0].mxu0
      %v317 = vpop.f32.mrb[0].mxu0
      %v318 = vpop.f32.mrb[0].mxu0
      %319 = vdwg.mxu0
      %v320 = vadd.f32 %v257, %v315
      %321 = vst [vmem:[%s250] sm:$0xff] %v320
      // Predicated region
      $region37: #{transformer_decoder_forward.13} parent=31 // pred_check
        %p322 = pneg %p252
      $region38: #{transformer_decoder_forward.13} parent=31 // pred_check_branch
        %324 = sbr.rel (%p322) target = $region40
      $region39: #{transformer_decoder_forward.13} parent=31 // pred_region
        %v325 = vld [vmem:[%s250] sm:$0xff]
        %v326 = vld [vmem:[%s243] sm:$0x1]
        %v328 = vlaneseq
        %v329 = vshrl.u32 %v328, 7
        %v330 = vsub.s32 0, %v329
        %v331 = vrot.slane %v326, %v330
        %v333 = vadd.f32 %v325, %v331
        %334 = vst [vmem:[%s250] sm:$0xff] %v333
      $region40: #{transformer_decoder_forward.13} parent=31 // pred_fallthru
        _
      %p335 = scmp.lt.s32.totalorder %s19, 1
      %s336 = scalar_select %p335, %s19, 1
      %p337 = scmp.lt.s32.totalorder %s20, 0
      %s338 = scalar_select %p337, %s20, 0
      %s339 = sadd.s32 %s338, %s336
      %s340 = smul.addr %s339, 8
      %s341 = scalar_lea.vmem %s3, %s340
      // Predicated region
      $region41: #{transformer_decoder_forward.13} parent=31 // pred_check
        %p342 = pneg %p135
      $region42: #{transformer_decoder_forward.13} parent=31 // pred_check_branch
        %344 = sbr.rel (%p342) target = $region44
      $region43: #{transformer_decoder_forward.13} parent=31 // pred_region
        _
      $region44: #{transformer_decoder_forward.13} parent=31 // pred_fallthru
        _
    $region32: #{transformer_decoder_forward.13} parent=5 // pred_fallthru
      _
    %p345 = scmp.le.s32.totalorder 2, %s9
    // Predicated region
    $region45: #{transformer_decoder_forward.13} parent=5 // pred_check
      %p346 = pneg %p345
    $region46: #{transformer_decoder_forward.13} parent=5 // pred_check_branch
      %348 = sbr.rel (%p346) target = $region48
    $region47: #{transformer_decoder_forward.13} parent=5 // pred_region
      %s349 = ssub.s32 %s9, 2
      // Predicated region
      $region49: #{transformer_decoder_forward.13} parent=47 // pred_check
        %p350 = pneg %p141
      $region50: #{transformer_decoder_forward.13} parent=47 // pred_check_branch
        %352 = sbr.rel (%p350) target = $region52
      $region51: #{transformer_decoder_forward.13} parent=47 // pred_region
        %p353 = scmp.lt.s32.totalorder %s22, 1
        %s354 = scalar_select %p353, %s22, 1
        %p355 = scmp.lt.s32.totalorder %s23, 0
        %s356 = scalar_select %p355, %s23, 0
        %s357 = sadd.s32 %s356, %s354
        %s358 = smul.addr %s357, 8
        %s359 = scalar_lea.vmem %s3, %s358
      $region52: #{transformer_decoder_forward.13} parent=47 // pred_fallthru
        _
    $region48: #{transformer_decoder_forward.13} parent=5 // pred_fallthru
      _
  $region6: #{transformer_decoder_forward.13} parent=0 // loop_footer
    %s13 = sadd.s32 1, %s9
  $region7: #{transformer_decoder_forward.13} parent=0 // loop_footer_branch
    %8 = sbr.rel target = $region3
  $region8: #{transformer_decoder_forward.13} parent=0 // loop_exit
    _

// kernel: transformer_decoder_forward.9
$region0: #{transformer_decoder_forward.9}
  #allocation0 [shape = 'u32[]', space=smem, size = 0x4, offset = 0x4, fixed_abs, tag = 'smem constant byte address 0x4 - core index']
  #allocation1 [shape = 'u32[144,128]{1,0:T(1,128)}', space=vmem, size = 0x12000, scoped, tag = 'internal scratch']
  %s0 = inlined_call_operand.vmem [shape: f32[16,32], index: 0, kind: input, shape index: {}]
  %s1 = inlined_call_operand.vmem [shape: bf16[32,64], index: 1, kind: input, shape index: {}]
  %s2 = inlined_call_operand.vmem [shape: f32[1,64], index: 2, kind: input, shape index: {}]
  %s3 = inlined_call_operand.vmem [shape: bf16[64,32], index: 3, kind: input, shape index: {}]
  %s4 = inlined_call_operand.vmem [shape: f32[1,32], index: 4, kind: input, shape index: {}]
  %s5 = inlined_call_operand.vmem [shape: f32[1,32], index: 5, kind: input, shape index: {}]
  %s6 = inlined_call_operand.vmem [shape: f32[1,32], index: 6, kind: input, shape index: {}]
  %s7 = inlined_call_operand.vmem [shape: f32[16,32], index: 7, kind: output, shape index: {}]
  %s8 = sld [smem:[#allocation0]]
  $region61: #{transformer_decoder_forward.9} parent=0
    _
  %s10 = ssub.s32 1, %s8
  %s11 = scalar_select 0, %s10, %s8
  loop: start=0, step=1, limit=4
  $region2: #{transformer_decoder_forward.9} parent=0 // loop_pre_header
    _
  $region3: #{transformer_decoder_forward.9} parent=0 // loop_header
    %s13 = sphi 0, %s17
    %p14 = scmp.ge.s32.totalorder %s13, 4
    %s23 = sphi 0, %s25
    %s26 = sphi 0, %s23
    %s27 = sphi 0, %s26
    %s43 = sphi 0, %s27
    %s47 = sphi 0, %s47
    %s49 = sphi 0, %s47
    %s50 = sphi 0, %s49
    %s64 = sphi 0, %s50
    %s68 = sphi 0, %s68
    %s70 = sphi 0, %s68
    %s71 = sphi 0, %s70
    %s85 = sphi 0, %s71
    %s89 = sphi 0, %s89
    %s91 = sphi 0, %s89
    %s92 = sphi 0, %s91
    %s106 = sphi 0, %s92
    %s110 = sphi 0, %s110
    %s112 = sphi 0, %s110
    %s113 = sphi 0, %s112
    %s127 = sphi 0, %s113
    %s131 = sphi 0, %s131
    %s133 = sphi 0, %s131
    %s134 = sphi 0, %s133
    %s148 = sphi 0, %s134
    %s152 = sphi 0, %s152
    %s154 = sphi 0, %s152
    %s155 = sphi 0, %s154
    %s169 = sphi 0, %s155
    %s175 = sphi 0, %s177
    %s178 = sphi 0, %s175
    %s179 = sphi 0, %s178
    %s195 = sphi 0, %s179
  $region4: #{transformer_decoder_forward.9} parent=0 // loop_header_branch
    %16 = sbr.rel (%p14) target = $region8
  $region5: #{transformer_decoder_forward.9} parent=0 // loop_body
    %s18 = ssub.s32 %s13, 1
    %s19 = ssub.s32 %s13, 2
    %s20 = sadd.s32 %s13, 1
    %s21 = ssub.s32 %s13, %s20
    %p22 = scmp.eq.s32.totalorder %s21, 0
    %s24 = sadd.s32 %s23, 1
    %s25 = scalar_select %p22, %s23, %s24
    %p28 = pneg %p22
    %p29 = scmp.eq.s32.totalorder %s13, 1
    %p30 = por %p28, %p29
    %p31 = scmp.ne.s32.totalorder %s23, %s26
    %p32 = scmp.eq.s32.totalorder %s13, 0
    %p33 = por %p31, %p32
    %p34 = scmp.ne.s32.totalorder %s23, %s26
    %p35 = scmp.eq.s32.totalorder %s18, 1
    %p36 = por %p34, %p35
    %p37 = scmp.ne.s32.totalorder %s26, %s27
    %p38 = scmp.eq.s32.totalorder %s18, 0
    %p39 = por %p37, %p38
    %p40 = scmp.ne.s32.totalorder %s26, %s27
    %p41 = scmp.eq.s32.totalorder %s19, 1
    %p42 = por %p40, %p41
    %p44 = scmp.ne.s32.totalorder %s27, %s43
    %p45 = scmp.eq.s32.totalorder %s19, 0
    %p46 = por %p44, %p45
    %s48 = sadd.s32 %s47, 1
    %p51 = scmp.eq.s32.totalorder %s13, 1
    %p52 = scmp.ne.s32.totalorder %s47, %s49
    %p53 = scmp.eq.s32.totalorder %s13, 0
    %p54 = por %p52, %p53
    %p55 = scmp.ne.s32.totalorder %s47, %s49
    %p56 = scmp.eq.s32.totalorder %s18, 1
    %p57 = por %p55, %p56
    %p58 = scmp.ne.s32.totalorder %s49, %s50
    %p59 = scmp.eq.s32.totalorder %s18, 0
    %p60 = por %p58, %p59
    %p61 = scmp.ne.s32.totalorder %s49, %s50
    %p62 = scmp.eq.s32.totalorder %s19, 1
    %p63 = por %p61, %p62
    %p65 = scmp.ne.s32.totalorder %s50, %s64
    %p66 = scmp.eq.s32.totalorder %s19, 0
    %p67 = por %p65, %p66
    %s69 = sadd.s32 %s68, 1
    %p72 = scmp.eq.s32.totalorder %s13, 1
    %p73 = scmp.ne.s32.totalorder %s68, %s70
    %p74 = scmp.eq.s32.totalorder %s13, 0
    %p75 = por %p73, %p74
    %p76 = scmp.ne.s32.totalorder %s68, %s70
    %p77 = scmp.eq.s32.totalorder %s18, 1
    %p78 = por %p76, %p77
    %p79 = scmp.ne.s32.totalorder %s70, %s71
    %p80 = scmp.eq.s32.totalorder %s18, 0
    %p81 = por %p79, %p80
    %p82 = scmp.ne.s32.totalorder %s70, %s71
    %p83 = scmp.eq.s32.totalorder %s19, 1
    %p84 = por %p82, %p83
    %p86 = scmp.ne.s32.totalorder %s71, %s85
    %p87 = scmp.eq.s32.totalorder %s19, 0
    %p88 = por %p86, %p87
    %s90 = sadd.s32 %s89, 1
    %p93 = scmp.eq.s32.totalorder %s13, 1
    %p94 = scmp.ne.s32.totalorder %s89, %s91
    %p95 = scmp.eq.s32.totalorder %s13, 0
    %p96 = por %p94, %p95
    %p97 = scmp.ne.s32.totalorder %s89, %s91
    %p98 = scmp.eq.s32.totalorder %s18, 1
    %p99 = por %p97, %p98
    %p100 = scmp.ne.s32.totalorder %s91, %s92
    %p101 = scmp.eq.s32.totalorder %s18, 0
    %p102 = por %p100, %p101
    %p103 = scmp.ne.s32.totalorder %s91, %s92
    %p104 = scmp.eq.s32.totalorder %s19, 1
    %p105 = por %p103, %p104
    %p107 = scmp.ne.s32.totalorder %s92, %s106
    %p108 = scmp.eq.s32.totalorder %s19, 0
    %p109 = por %p107, %p108
    %s111 = sadd.s32 %s110, 1
    %p114 = scmp.eq.s32.totalorder %s13, 1
    %p115 = scmp.ne.s32.totalorder %s110, %s112
    %p116 = scmp.eq.s32.totalorder %s13, 0
    %p117 = por %p115, %p116
    %p118 = scmp.ne.s32.totalorder %s110, %s112
    %p119 = scmp.eq.s32.totalorder %s18, 1
    %p120 = por %p118, %p119
    %p121 = scmp.ne.s32.totalorder %s112, %s113
    %p122 = scmp.eq.s32.totalorder %s18, 0
    %p123 = por %p121, %p122
    %p124 = scmp.ne.s32.totalorder %s112, %s113
    %p125 = scmp.eq.s32.totalorder %s19, 1
    %p126 = por %p124, %p125
    %p128 = scmp.ne.s32.totalorder %s113, %s127
    %p129 = scmp.eq.s32.totalorder %s19, 0
    %p130 = por %p128, %p129
    %s132 = sadd.s32 %s131, 1
    %p135 = scmp.eq.s32.totalorder %s13, 1
    %p136 = scmp.ne.s32.totalorder %s131, %s133
    %p137 = scmp.eq.s32.totalorder %s13, 0
    %p138 = por %p136, %p137
    %p139 = scmp.ne.s32.totalorder %s131, %s133
    %p140 = scmp.eq.s32.totalorder %s18, 1
    %p141 = por %p139, %p140
    %p142 = scmp.ne.s32.totalorder %s133, %s134
    %p143 = scmp.eq.s32.totalorder %s18, 0
    %p144 = por %p142, %p143
    %p145 = scmp.ne.s32.totalorder %s133, %s134
    %p146 = scmp.eq.s32.totalorder %s19, 1
    %p147 = por %p145, %p146
    %p149 = scmp.ne.s32.totalorder %s134, %s148
    %p150 = scmp.eq.s32.totalorder %s19, 0
    %p151 = por %p149, %p150
    %s153 = sadd.s32 %s152, 1
    %p156 = scmp.eq.s32.totalorder %s13, 1
    %p157 = scmp.ne.s32.totalorder %s152, %s154
    %p158 = scmp.eq.s32.totalorder %s13, 0
    %p159 = por %p157, %p158
    %p160 = scmp.ne.s32.totalorder %s152, %s154
    %p161 = scmp.eq.s32.totalorder %s18, 1
    %p162 = por %p160, %p161
    %p163 = scmp.ne.s32.totalorder %s154, %s155
    %p164 = scmp.eq.s32.totalorder %s18, 0
    %p165 = por %p163, %p164
    %p166 = scmp.ne.s32.totalorder %s154, %s155
    %p167 = scmp.eq.s32.totalorder %s19, 1
    %p168 = por %p166, %p167
    %p170 = scmp.ne.s32.totalorder %s155, %s169
    %p171 = scmp.eq.s32.totalorder %s19, 0
    %p172 = por %p170, %p171
    %s173 = ssub.s32 %s13, %s20
    %p174 = scmp.eq.s32.totalorder %s173, 0
    %s176 = sadd.s32 %s175, 1
    %s177 = scalar_select %p174, %s175, %s176
    %p180 = pneg %p174
    %p181 = scmp.eq.s32.totalorder %s13, 1
    %p182 = por %p180, %p181
    %p183 = scmp.ne.s32.totalorder %s175, %s178
    %p184 = scmp.eq.s32.totalorder %s13, 0
    %p185 = por %p183, %p184
    %p186 = scmp.ne.s32.totalorder %s175, %s178
    %p187 = scmp.eq.s32.totalorder %s18, 1
    %p188 = por %p186, %p187
    %p189 = scmp.ne.s32.totalorder %s178, %s179
    %p190 = scmp.eq.s32.totalorder %s18, 0
    %p191 = por %p189, %p190
    %p192 = scmp.ne.s32.totalorder %s178, %s179
    %p193 = scmp.eq.s32.totalorder %s19, 1
    %p194 = por %p192, %p193
    %p196 = scmp.ne.s32.totalorder %s179, %s195
    %p197 = scmp.eq.s32.totalorder %s19, 0
    %p198 = por %p196, %p197
    %p199 = scmp.le.s32.totalorder 1, %s13
    %p200 = scmp.lt.s32.totalorder %s13, 3
    %p201 = pnand %p199, %p200
    %p202 = pneg %p201
    // Predicated region
    $region9: #{transformer_decoder_forward.9} parent=5 // pred_check
      _
    $region10: #{transformer_decoder_forward.9} parent=5 // pred_check_branch
      %204 = sbr.rel (%p201) target = $region12
    $region11: #{transformer_decoder_forward.9} parent=5 // pred_region
      %s205 = ssub.s32 %s13, 1
      // Predicated region
      $region13: #{transformer_decoder_forward.9} parent=11 // pred_check
        %p206 = pneg %p60
      $region14: #{transformer_decoder_forward.9} parent=11 // pred_check_branch
        %208 = sbr.rel (%p206) target = $region16
      $region15: #{transformer_decoder_forward.9} parent=11 // pred_region
        _
      $region16: #{transformer_decoder_forward.9} parent=11 // pred_fallthru
        _
      // Predicated region
      $region17: #{transformer_decoder_forward.9} parent=11 // pred_check
        %p209 = pneg %p81
      $region18: #{transformer_decoder_forward.9} parent=11 // pred_check_branch
        %211 = sbr.rel (%p209) target = $region20
      $region19: #{transformer_decoder_forward.9} parent=11 // pred_region
        _
      $region20: #{transformer_decoder_forward.9} parent=11 // pred_fallthru
        _
      // Predicated region
      $region21: #{transformer_decoder_forward.9} parent=11 // pred_check
        %p212 = pneg %p102
      $region22: #{transformer_decoder_forward.9} parent=11 // pred_check_branch
        %214 = sbr.rel (%p212) target = $region24
      $region23: #{transformer_decoder_forward.9} parent=11 // pred_region
        _
      $region24: #{transformer_decoder_forward.9} parent=11 // pred_fallthru
        _
      // Predicated region
      $region25: #{transformer_decoder_forward.9} parent=11 // pred_check
        %p215 = pneg %p123
      $region26: #{transformer_decoder_forward.9} parent=11 // pred_check_branch
        %217 = sbr.rel (%p215) target = $region28
      $region27: #{transformer_decoder_forward.9} parent=11 // pred_region
        _
      $region28: #{transformer_decoder_forward.9} parent=11 // pred_fallthru
        _
      // Predicated region
      $region29: #{transformer_decoder_forward.9} parent=11 // pred_check
        %p218 = pneg %p144
      $region30: #{transformer_decoder_forward.9} parent=11 // pred_check_branch
        %220 = sbr.rel (%p218) target = $region32
      $region31: #{transformer_decoder_forward.9} parent=11 // pred_region
        _
      $region32: #{transformer_decoder_forward.9} parent=11 // pred_fallthru
        _
      // Predicated region
      $region33: #{transformer_decoder_forward.9} parent=11 // pred_check
        %p221 = pneg %p165
      $region34: #{transformer_decoder_forward.9} parent=11 // pred_check_branch
        %223 = sbr.rel (%p221) target = $region36
      $region35: #{transformer_decoder_forward.9} parent=11 // pred_region
        _
      $region36: #{transformer_decoder_forward.9} parent=11 // pred_fallthru
        _
    $region12: #{transformer_decoder_forward.9} parent=5 // pred_fallthru
      _
    %p224 = scmp.lt.s32.totalorder %s13, 2
    // Predicated region
    $region37: #{transformer_decoder_forward.9} parent=5 // pred_check
      %p225 = pneg %p224
    $region38: #{transformer_decoder_forward.9} parent=5 // pred_check_branch
      %227 = sbr.rel (%p225) target = $region40
    $region39: #{transformer_decoder_forward.9} parent=5 // pred_region
      // Predicated region
      $region41: #{transformer_decoder_forward.9} parent=39 // pred_check
        %p228 = pneg %p33
      $region42: #{transformer_decoder_forward.9} parent=39 // pred_check_branch
        %230 = sbr.rel (%p228) target = $region44
      $region43: #{transformer_decoder_forward.9} parent=39 // pred_region
        %p231 = scmp.lt.s32.totalorder %s13, 1
        %s232 = scalar_select %p231, %s13, 1
        %s233 = smul.addr %s232, 8
        %s234 = scalar_lea.vmem %s0, %s233
      $region44: #{transformer_decoder_forward.9} parent=39 // pred_fallthru
        _
    $region40: #{transformer_decoder_forward.9} parent=5 // pred_fallthru
      _
    %p235 = scmp.le.s32.totalorder 1, %s13
    %p236 = scmp.lt.s32.totalorder %s13, 3
    %p237 = pnand %p235, %p236
    %p238 = pneg %p237
    // Predicated region
    $region45: #{transformer_decoder_forward.9} parent=5 // pred_check
      _
    $region46: #{transformer_decoder_forward.9} parent=5 // pred_check_branch
      %240 = sbr.rel (%p237) target = $region48
    $region47: #{transformer_decoder_forward.9} parent=5 // pred_region
      %s241 = ssub.s32 %s13, 1
      %p242 = scmp.lt.s32.totalorder %s18, 1
      %s243 = scalar_select %p242, %s18, 1
      %s244 = smul.addr %s243, 8
      %s245 = scalar_lea.vmem %s0, %s244
      %p246 = pneg %p39
      %p247 = pneg %p36
      %p248 = pneg %p60
      %p249 = pneg %p57
      %p250 = pneg %p81
      %p251 = pneg %p78
      %p252 = pneg %p102
      %p253 = pneg %p99
      %p254 = pneg %p123
      %p255 = pneg %p120
      %p256 = pneg %p144
      %p257 = pneg %p141
      %p258 = pneg %p165
      %p259 = pneg %p162
      %p260 = pneg %p191
      %p261 = pneg %p188
      %p262 = scmp.lt.s32.totalorder %s18, 1
      %s263 = scalar_select %p262, %s18, 1
      %s264 = smul.addr %s263, 8
      %s265 = scalar_lea.vmem %s7, %s264
      %p266 = scmp.lt.s32.totalorder %s18, 1
      %s267 = scalar_select %p266, %s18, 1
      %s268 = smul.addr %s267, 8
      %s269 = scalar_lea.vmem %s0, %s268
      %p270 = scmp.lt.s32.totalorder %s18, 1
      %s271 = scalar_select %p270, %s18, 1
      %s272 = smul.addr %s271, 8
      %s273 = scalar_lea.vmem %s7, %s272
      %v275 = vld [vmem:[%s269] sm:$0xff]
      %v276 = vpack.c.bf16 %v275, %v275
      %v277 = vld [vmem:[%s1] sm:$0xf]
      %v278 = vld [vmem:[%s1 + $0x4] sm:$0xf]
      %v279 = vld [vmem:[%s1 + $0x8] sm:$0xf]
      %v280 = vld [vmem:[%s1 + $0xc] sm:$0xf]
      %v281 = vld [vmem:[%s2] sm:$0x1]
      %v283 = vlaneseq
      %v284 = vshrl.u32 %v283, 7
      %v285 = vsub.s32 0, %v284
      %v286 = vrot.slane %v281, %v285
      %v292 = vunpack.c.l.b16 %v277
      %v293 = vunpack.c.l.b16 %v278
      %v294 = vunpack.c.l.b16 %v279
      %v295 = vunpack.c.l.b16 %v280
      %v296 = vpack.c.b16 %v293, %v292
      %v297 = vpack.c.b16 %v295, %v294
      %vm300 = vcmask 261120
      %v302 = vsel %vm300, %v276, 0
      %304 = vmatprep.subr.bf16.mxu0 0
      %305 = vmatpush1.bf16.msra.mxu0 %v296
      %306 = vmatprep.subr.bf16.mxu0 0
      %307 = vmatpush1.bf16.msra.mxu0 %v297
      %308 = vmatprep.subr.bf16.mxu0 0
      %309 = vmatpush1.bf16.msra.mxu0 0
      %310 = vmatprep.subr.bf16.mxu0 0
      %311 = vmatpush1.bf16.msra.mxu0 0
      %312 = vmatprep.subr.bf16.mxu0 0
      %313 = vmatpush1.bf16.msra.mxu0 0
      %314 = vmatprep.subr.bf16.mxu0 0
      %315 = vmatpush1.bf16.msra.mxu0 0
      %316 = vmatprep.subr.bf16.mxu0 0
      %317 = vmatpush1.bf16.msra.mxu0 0
      %318 = vmatprep.subr.bf16.mxu0 0
      %319 = vmatpush1.bf16.msra.mxu0 0
      %320 = vmatprep.subr.bf16.mxu0 0
      %321 = vmatpush1.bf16.msra.mxu0 0
      %322 = vmatprep.subr.bf16.mxu0 0
      %323 = vmatpush1.bf16.msra.mxu0 0
      %324 = vmatprep.subr.bf16.mxu0 0
      %325 = vmatpush1.bf16.msra.mxu0 0
      %326 = vmatprep.subr.bf16.mxu0 0
      %327 = vmatpush1.bf16.msra.mxu0 0
      %328 = vmatprep.subr.bf16.mxu0 0
      %329 = vmatpush1.bf16.msra.mxu0 0
      %330 = vmatprep.subr.bf16.mxu0 0
      %331 = vmatpush1.bf16.msra.mxu0 0
      %332 = vmatprep.subr.bf16.mxu0 0
      %333 = vmatpush1.bf16.msra.mxu0 0
      %334 = vmatprep.subr.bf16.mxu0 0
      %335 = vmatpush1.bf16.msra.mxu0 0
      %336 = vmatprep.mubr.bf16.mxu0 0
      %337 = vmatmul.mubr.bf16.gmra.mrb[0].mxu0 %v302
      %v338 = vpop.f32.mrb[0].mxu0
      %v339 = vadd.f32 %v286, %v338
      %v340 = vpop.f32.mrb[0].mxu0
      %v341 = vpop.f32.mrb[0].mxu0
      %v342 = vpop.f32.mrb[0].mxu0
      %343 = vdwg.mxu0
      %v344 = vmax.f32 %v339, 0.0
      %v345 = vpack.c.bf16 %v344, %v344
      %v346 = vld [vmem:[%s3] sm:$0xf]
      %v347 = vld [vmem:[%s3 + $0x4] sm:$0xf]
      %v348 = vld [vmem:[%s3 + $0x8] sm:$0xf]
      %v349 = vld [vmem:[%s3 + $0xc] sm:$0xf]
      %v350 = vld [vmem:[%s3 + $0x10] sm:$0xf]
      %v351 = vld [vmem:[%s3 + $0x14] sm:$0xf]
      %v352 = vld [vmem:[%s3 + $0x18] sm:$0xf]
      %v353 = vld [vmem:[%s3 + $0x1c] sm:$0xf]
      %v354 = vld [vmem:[%s4] sm:$0x1]
      %v356 = vlaneseq
      %v357 = vshrl.u32 %v356, 7
      %v358 = vsub.s32 0, %v357
      %v359 = vrot.slane %v354, %v358
      %v369 = vunpack.c.l.b16 %v346
      %v370 = vunpack.c.l.b16 %v347
      %v371 = vunpack.c.l.b16 %v348
      %v372 = vunpack.c.l.b16 %v349
      %v373 = vunpack.c.l.b16 %v350
      %v374 = vunpack.c.l.b16 %v351
      %v375 = vunpack.c.l.b16 %v352
      %v376 = vunpack.c.l.b16 %v353
      %v377 = vpack.c.b16 %v370, %v369
      %v378 = vpack.c.b16 %v372, %v371
      %v379 = vpack.c.b16 %v374, %v373
      %v380 = vpack.c.b16 %v376, %v375
      %vm385 = vcmask 523264
      %v387 = vsel %vm385, %v345, 0
      %389 = vmatprep.subr.bf16.mxu0 0
      %390 = vmatpush1.bf16.msra.mxu0 %v377
      %391 = vmatprep.subr.bf16.mxu0 0
      %392 = vmatpush1.bf16.msra.mxu0 %v378
      %393 = vmatprep.subr.bf16.mxu0 0
      %394 = vmatpush1.bf16.msra.mxu0 %v379
      %395 = vmatprep.subr.bf16.mxu0 0
      %396 = vmatpush1.bf16.msra.mxu0 %v380
      %397 = vmatprep.subr.bf16.mxu0 0
      %398 = vmatpush1.bf16.msra.mxu0 0
      %399 = vmatprep.subr.bf16.mxu0 0
      %400 = vmatpush1.bf16.msra.mxu0 0
      %401 = vmatprep.subr.bf16.mxu0 0
      %402 = vmatpush1.bf16.msra.mxu0 0
      %403 = vmatprep.subr.bf16.mxu0 0
      %404 = vmatpush1.bf16.msra.mxu0 0
      %405 = vmatprep.subr.bf16.mxu0 0
      %406 = vmatpush1.bf16.msra.mxu0 0
      %407 = vmatprep.subr.bf16.mxu0 0
      %408 = vmatpush1.bf16.msra.mxu0 0
      %409 = vmatprep.subr.bf16.mxu0 0
      %410 = vmatpush1.bf16.msra.mxu0 0
      %411 = vmatprep.subr.bf16.mxu0 0
      %412 = vmatpush1.bf16.msra.mxu0 0
      %413 = vmatprep.subr.bf16.mxu0 0
      %414 = vmatpush1.bf16.msra.mxu0 0
      %415 = vmatprep.subr.bf16.mxu0 0
      %416 = vmatpush1.bf16.msra.mxu0 0
      %417 = vmatprep.subr.bf16.mxu0 0
      %418 = vmatpush1.bf16.msra.mxu0 0
      %419 = vmatprep.subr.bf16.mxu0 0
      %420 = vmatpush1.bf16.msra.mxu0 0
      %421 = vmatprep.mubr.bf16.mxu0 0
      %422 = vmatmul.mubr.bf16.gmra.mrb[0].mxu0 %v387
      %v423 = vpop.f32.mrb[0].mxu0
      %v424 = vadd.f32 %v359, %v423
      %v425 = vpop.f32.mrb[0].mxu0
      %v426 = vpop.f32.mrb[0].mxu0
      %v427 = vpop.f32.mrb[0].mxu0
      %428 = vdwg.mxu0
      %v429 = vadd.f32 %v424, %v275
      %v430 = vld [vmem:[%s5] sm:$0x1]
      %v431 = vld [vmem:[%s6] sm:$0x1]
      %v432 = vsel %vm300, %v429, 0.0
      %433 = vadd.xlane.f32.xlu0 %v432
      %v434 = vpop.xlane.xlu0 %433
      %v435 = vrcp.pop 32.0
      %v436 = vmul.f32 %v434, %v435
      %v437 = vsub.f32 %v429, %v436
      %v438 = vmul.f32 %v437, %v437
      %v439 = vsel %vm300, %v438, 0.0
      %440 = vadd.xlane.f32.xlu0 %v439
      %v441 = vpop.xlane.xlu0 %440
      %v442 = vmul.f32 %v441, %v435
      %v443 = vadd.f32 %v442, 1e-05
      %v444 = vrsqrt.pop %v443
      %v445 = vmul.f32 %v437, %v444
      %v447 = vlaneseq
      %v448 = vshrl.u32 %v447, 7
      %v449 = vsub.s32 0, %v448
      %v450 = vrot.slane %v430, %v449
      %v452 = vmul.f32 %v445, %v450
      %v454 = vlaneseq
      %v455 = vshrl.u32 %v454, 7
      %v456 = vsub.s32 0, %v455
      %v457 = vrot.slane %v431, %v456
      %v459 = vadd.f32 %v452, %v457
      %460 = vst.msk [vmem:[%s273] sm:$0xff] %vm300, %v459
      %p461 = scmp.lt.s32.totalorder %s18, 1
      %s462 = scalar_select %p461, %s18, 1
      %s463 = smul.addr %s462, 8
      %s464 = scalar_lea.vmem %s7, %s463
      // Predicated region
      $region49: #{transformer_decoder_forward.9} parent=47 // pred_check
        %p465 = pneg %p188
      $region50: #{transformer_decoder_forward.9} parent=47 // pred_check_branch
        %467 = sbr.rel (%p465) target = $region52
      $region51: #{transformer_decoder_forward.9} parent=47 // pred_region
        _
      $region52: #{transformer_decoder_forward.9} parent=47 // pred_fallthru
        _
    $region48: #{transformer_decoder_forward.9} parent=5 // pred_fallthru
      _
    %p468 = scmp.le.s32.totalorder 2, %s13
    // Predicated region
    $region53: #{transformer_decoder_forward.9} parent=5 // pred_check
      %p469 = pneg %p468
    $region54: #{transformer_decoder_forward.9} parent=5 // pred_check_branch
      %471 = sbr.rel (%p469) target = $region56
    $region55: #{transformer_decoder_forward.9} parent=5 // pred_region
      %s472 = ssub.s32 %s13, 2
      // Predicated region
      $region57: #{transformer_decoder_forward.9} parent=55 // pred_check
        %p473 = pneg %p194
      $region58: #{transformer_decoder_forward.9} parent=55 // pred_check_branch
        %475 = sbr.rel (%p473) target = $region60
      $region59: #{transformer_decoder_forward.9} parent=55 // pred_region
        %p476 = scmp.lt.s32.totalorder %s19, 1
        %s477 = scalar_select %p476, %s19, 1
        %s478 = smul.addr %s477, 8
        %s479 = scalar_lea.vmem %s7, %s478
      $region60: #{transformer_decoder_forward.9} parent=55 // pred_fallthru
        _
    $region56: #{transformer_decoder_forward.9} parent=5 // pred_fallthru
      _
  $region6: #{transformer_decoder_forward.9} parent=0 // loop_footer
    %s17 = sadd.s32 1, %s13
  $region7: #{transformer_decoder_forward.9} parent=0 // loop_footer_branch
    %12 = sbr.rel target = $region3
  $region8: #{transformer_decoder_forward.9} parent=0 // loop_exit
    _

// kernel: transformer_decoder_forward.7
$region0: #{transformer_decoder_forward.7}
  #allocation0 [shape = 'u32[]', space=smem, size = 0x4, offset = 0x4, fixed_abs, tag = 'smem constant byte address 0x4 - core index']
  #allocation1 [shape = 'u32[144,128]{1,0:T(1,128)}', space=vmem, size = 0x12000, scoped, tag = 'internal scratch']
  %s0 = inlined_call_operand.vmem [shape: f32[16,32], index: 0, kind: input, shape index: {}]
  %s1 = inlined_call_operand.vmem [shape: bf16[32,96], index: 1, kind: input, shape index: {}]
  %s2 = inlined_call_operand.vmem [shape: f32[1,96], index: 2, kind: input, shape index: {}]
  %s3 = inlined_call_operand.vmem [shape: bf16[32,32], index: 3, kind: input, shape index: {}]
  %s4 = inlined_call_operand.vmem [shape: f32[1,32], index: 4, kind: input, shape index: {}]
  %s5 = inlined_call_operand.vmem [shape: f32[8,8], index: 5, kind: input, shape index: {}]
  %s6 = inlined_call_operand.vmem [shape: f32[1,32], index: 6, kind: input, shape index: {}]
  %s7 = inlined_call_operand.vmem [shape: f32[1,32], index: 7, kind: input, shape index: {}]
  %s8 = inlined_call_operand.vmem [shape: f32[16,32], index: 8, kind: output, shape index: {}]
  %s9 = sld [smem:[#allocation0]]
  $region65: #{transformer_decoder_forward.7} parent=0
    _
  %s11 = ssub.s32 1, %s9
  %s12 = scalar_select 0, %s11, %s9
  loop: start=0, step=1, limit=4
  $region2: #{transformer_decoder_forward.7} parent=0 // loop_pre_header
    _
  $region3: #{transformer_decoder_forward.7} parent=0 // loop_header
    %s14 = sphi 0, %s18
    %p15 = scmp.ge.s32.totalorder %s14, 4
    %s24 = sphi 0, %s26
    %s27 = sphi 0, %s24
    %s28 = sphi 0, %s27
    %s44 = sphi 0, %s28
    %s48 = sphi 0, %s48
    %s50 = sphi 0, %s48
    %s51 = sphi 0, %s50
    %s65 = sphi 0, %s51
    %s69 = sphi 0, %s69
    %s71 = sphi 0, %s69
    %s72 = sphi 0, %s71
    %s86 = sphi 0, %s72
    %s90 = sphi 0, %s90
    %s92 = sphi 0, %s90
    %s93 = sphi 0, %s92
    %s107 = sphi 0, %s93
    %s111 = sphi 0, %s111
    %s113 = sphi 0, %s111
    %s114 = sphi 0, %s113
    %s128 = sphi 0, %s114
    %s132 = sphi 0, %s132
    %s134 = sphi 0, %s132
    %s135 = sphi 0, %s134
    %s149 = sphi 0, %s135
    %s153 = sphi 0, %s153
    %s155 = sphi 0, %s153
    %s156 = sphi 0, %s155
    %s170 = sphi 0, %s156
    %s174 = sphi 0, %s174
    %s176 = sphi 0, %s174
    %s177 = sphi 0, %s176
    %s191 = sphi 0, %s177
    %s197 = sphi 0, %s199
    %s200 = sphi 0, %s197
    %s201 = sphi 0, %s200
    %s217 = sphi 0, %s201
  $region4: #{transformer_decoder_forward.7} parent=0 // loop_header_branch
    %17 = sbr.rel (%p15) target = $region8
  $region5: #{transformer_decoder_forward.7} parent=0 // loop_body
    %s19 = ssub.s32 %s14, 1
    %s20 = ssub.s32 %s14, 2
    %s21 = sadd.s32 %s14, 1
    %s22 = ssub.s32 %s14, %s21
    %p23 = scmp.eq.s32.totalorder %s22, 0
    %s25 = sadd.s32 %s24, 1
    %s26 = scalar_select %p23, %s24, %s25
    %p29 = pneg %p23
    %p30 = scmp.eq.s32.totalorder %s14, 1
    %p31 = por %p29, %p30
    %p32 = scmp.ne.s32.totalorder %s24, %s27
    %p33 = scmp.eq.s32.totalorder %s14, 0
    %p34 = por %p32, %p33
    %p35 = scmp.ne.s32.totalorder %s24, %s27
    %p36 = scmp.eq.s32.totalorder %s19, 1
    %p37 = por %p35, %p36
    %p38 = scmp.ne.s32.totalorder %s27, %s28
    %p39 = scmp.eq.s32.totalorder %s19, 0
    %p40 = por %p38, %p39
    %p41 = scmp.ne.s32.totalorder %s27, %s28
    %p42 = scmp.eq.s32.totalorder %s20, 1
    %p43 = por %p41, %p42
    %p45 = scmp.ne.s32.totalorder %s28, %s44
    %p46 = scmp.eq.s32.totalorder %s20, 0
    %p47 = por %p45, %p46
    %s49 = sadd.s32 %s48, 1
    %p52 = scmp.eq.s32.totalorder %s14, 1
    %p53 = scmp.ne.s32.totalorder %s48, %s50
    %p54 = scmp.eq.s32.totalorder %s14, 0
    %p55 = por %p53, %p54
    %p56 = scmp.ne.s32.totalorder %s48, %s50
    %p57 = scmp.eq.s32.totalorder %s19, 1
    %p58 = por %p56, %p57
    %p59 = scmp.ne.s32.totalorder %s50, %s51
    %p60 = scmp.eq.s32.totalorder %s19, 0
    %p61 = por %p59, %p60
    %p62 = scmp.ne.s32.totalorder %s50, %s51
    %p63 = scmp.eq.s32.totalorder %s20, 1
    %p64 = por %p62, %p63
    %p66 = scmp.ne.s32.totalorder %s51, %s65
    %p67 = scmp.eq.s32.totalorder %s20, 0
    %p68 = por %p66, %p67
    %s70 = sadd.s32 %s69, 1
    %p73 = scmp.eq.s32.totalorder %s14, 1
    %p74 = scmp.ne.s32.totalorder %s69, %s71
    %p75 = scmp.eq.s32.totalorder %s14, 0
    %p76 = por %p74, %p75
    %p77 = scmp.ne.s32.totalorder %s69, %s71
    %p78 = scmp.eq.s32.totalorder %s19, 1
    %p79 = por %p77, %p78
    %p80 = scmp.ne.s32.totalorder %s71, %s72
    %p81 = scmp.eq.s32.totalorder %s19, 0
    %p82 = por %p80, %p81
    %p83 = scmp.ne.s32.totalorder %s71, %s72
    %p84 = scmp.eq.s32.totalorder %s20, 1
    %p85 = por %p83, %p84
    %p87 = scmp.ne.s32.totalorder %s72, %s86
    %p88 = scmp.eq.s32.totalorder %s20, 0
    %p89 = por %p87, %p88
    %s91 = sadd.s32 %s90, 1
    %p94 = scmp.eq.s32.totalorder %s14, 1
    %p95 = scmp.ne.s32.totalorder %s90, %s92
    %p96 = scmp.eq.s32.totalorder %s14, 0
    %p97 = por %p95, %p96
    %p98 = scmp.ne.s32.totalorder %s90, %s92
    %p99 = scmp.eq.s32.totalorder %s19, 1
    %p100 = por %p98, %p99
    %p101 = scmp.ne.s32.totalorder %s92, %s93
    %p102 = scmp.eq.s32.totalorder %s19, 0
    %p103 = por %p101, %p102
    %p104 = scmp.ne.s32.totalorder %s92, %s93
    %p105 = scmp.eq.s32.totalorder %s20, 1
    %p106 = por %p104, %p105
    %p108 = scmp.ne.s32.totalorder %s93, %s107
    %p109 = scmp.eq.s32.totalorder %s20, 0
    %p110 = por %p108, %p109
    %s112 = sadd.s32 %s111, 1
    %p115 = scmp.eq.s32.totalorder %s14, 1
    %p116 = scmp.ne.s32.totalorder %s111, %s113
    %p117 = scmp.eq.s32.totalorder %s14, 0
    %p118 = por %p116, %p117
    %p119 = scmp.ne.s32.totalorder %s111, %s113
    %p120 = scmp.eq.s32.totalorder %s19, 1
    %p121 = por %p119, %p120
    %p122 = scmp.ne.s32.totalorder %s113, %s114
    %p123 = scmp.eq.s32.totalorder %s19, 0
    %p124 = por %p122, %p123
    %p125 = scmp.ne.s32.totalorder %s113, %s114
    %p126 = scmp.eq.s32.totalorder %s20, 1
    %p127 = por %p125, %p126
    %p129 = scmp.ne.s32.totalorder %s114, %s128
    %p130 = scmp.eq.s32.totalorder %s20, 0
    %p131 = por %p129, %p130
    %s133 = sadd.s32 %s132, 1
    %p136 = scmp.eq.s32.totalorder %s14, 1
    %p137 = scmp.ne.s32.totalorder %s132, %s134
    %p138 = scmp.eq.s32.totalorder %s14, 0
    %p139 = por %p137, %p138
    %p140 = scmp.ne.s32.totalorder %s132, %s134
    %p141 = scmp.eq.s32.totalorder %s19, 1
    %p142 = por %p140, %p141
    %p143 = scmp.ne.s32.totalorder %s134, %s135
    %p144 = scmp.eq.s32.totalorder %s19, 0
    %p145 = por %p143, %p144
    %p146 = scmp.ne.s32.totalorder %s134, %s135
    %p147 = scmp.eq.s32.totalorder %s20, 1
    %p148 = por %p146, %p147
    %p150 = scmp.ne.s32.totalorder %s135, %s149
    %p151 = scmp.eq.s32.totalorder %s20, 0
    %p152 = por %p150, %p151
    %s154 = sadd.s32 %s153, 1
    %p157 = scmp.eq.s32.totalorder %s14, 1
    %p158 = scmp.ne.s32.totalorder %s153, %s155
    %p159 = scmp.eq.s32.totalorder %s14, 0
    %p160 = por %p158, %p159
    %p161 = scmp.ne.s32.totalorder %s153, %s155
    %p162 = scmp.eq.s32.totalorder %s19, 1
    %p163 = por %p161, %p162
    %p164 = scmp.ne.s32.totalorder %s155, %s156
    %p165 = scmp.eq.s32.totalorder %s19, 0
    %p166 = por %p164, %p165
    %p167 = scmp.ne.s32.totalorder %s155, %s156
    %p168 = scmp.eq.s32.totalorder %s20, 1
    %p169 = por %p167, %p168
    %p171 = scmp.ne.s32.totalorder %s156, %s170
    %p172 = scmp.eq.s32.totalorder %s20, 0
    %p173 = por %p171, %p172
    %s175 = sadd.s32 %s174, 1
    %p178 = scmp.eq.s32.totalorder %s14, 1
    %p179 = scmp.ne.s32.totalorder %s174, %s176
    %p180 = scmp.eq.s32.totalorder %s14, 0
    %p181 = por %p179, %p180
    %p182 = scmp.ne.s32.totalorder %s174, %s176
    %p183 = scmp.eq.s32.totalorder %s19, 1
    %p184 = por %p182, %p183
    %p185 = scmp.ne.s32.totalorder %s176, %s177
    %p186 = scmp.eq.s32.totalorder %s19, 0
    %p187 = por %p185, %p186
    %p188 = scmp.ne.s32.totalorder %s176, %s177
    %p189 = scmp.eq.s32.totalorder %s20, 1
    %p190 = por %p188, %p189
    %p192 = scmp.ne.s32.totalorder %s177, %s191
    %p193 = scmp.eq.s32.totalorder %s20, 0
    %p194 = por %p192, %p193
    %s195 = ssub.s32 %s14, %s21
    %p196 = scmp.eq.s32.totalorder %s195, 0
    %s198 = sadd.s32 %s197, 1
    %s199 = scalar_select %p196, %s197, %s198
    %p202 = pneg %p196
    %p203 = scmp.eq.s32.totalorder %s14, 1
    %p204 = por %p202, %p203
    %p205 = scmp.ne.s32.totalorder %s197, %s200
    %p206 = scmp.eq.s32.totalorder %s14, 0
    %p207 = por %p205, %p206
    %p208 = scmp.ne.s32.totalorder %s197, %s200
    %p209 = scmp.eq.s32.totalorder %s19, 1
    %p210 = por %p208, %p209
    %p211 = scmp.ne.s32.totalorder %s200, %s201
    %p212 = scmp.eq.s32.totalorder %s19, 0
    %p213 = por %p211, %p212
    %p214 = scmp.ne.s32.totalorder %s200, %s201
    %p215 = scmp.eq.s32.totalorder %s20, 1
    %p216 = por %p214, %p215
    %p218 = scmp.ne.s32.totalorder %s201, %s217
    %p219 = scmp.eq.s32.totalorder %s20, 0
    %p220 = por %p218, %p219
    %p221 = scmp.le.s32.totalorder 1, %s14
    %p222 = scmp.lt.s32.totalorder %s14, 3
    %p223 = pnand %p221, %p222
    %p224 = pneg %p223
    // Predicated region
    $region9: #{transformer_decoder_forward.7} parent=5 // pred_check
      _
    $region10: #{transformer_decoder_forward.7} parent=5 // pred_check_branch
      %226 = sbr.rel (%p223) target = $region12
    $region11: #{transformer_decoder_forward.7} parent=5 // pred_region
      %s227 = ssub.s32 %s14, 1
      // Predicated region
      $region13: #{transformer_decoder_forward.7} parent=11 // pred_check
        %p228 = pneg %p61
      $region14: #{transformer_decoder_forward.7} parent=11 // pred_check_branch
        %230 = sbr.rel (%p228) target = $region16
      $region15: #{transformer_decoder_forward.7} parent=11 // pred_region
        _
      $region16: #{transformer_decoder_forward.7} parent=11 // pred_fallthru
        _
      // Predicated region
      $region17: #{transformer_decoder_forward.7} parent=11 // pred_check
        %p231 = pneg %p82
      $region18: #{transformer_decoder_forward.7} parent=11 // pred_check_branch
        %233 = sbr.rel (%p231) target = $region20
      $region19: #{transformer_decoder_forward.7} parent=11 // pred_region
        _
      $region20: #{transformer_decoder_forward.7} parent=11 // pred_fallthru
        _
      // Predicated region
      $region21: #{transformer_decoder_forward.7} parent=11 // pred_check
        %p234 = pneg %p103
      $region22: #{transformer_decoder_forward.7} parent=11 // pred_check_branch
        %236 = sbr.rel (%p234) target = $region24
      $region23: #{transformer_decoder_forward.7} parent=11 // pred_region
        _
      $region24: #{transformer_decoder_forward.7} parent=11 // pred_fallthru
        _
      // Predicated region
      $region25: #{transformer_decoder_forward.7} parent=11 // pred_check
        %p237 = pneg %p124
      $region26: #{transformer_decoder_forward.7} parent=11 // pred_check_branch
        %239 = sbr.rel (%p237) target = $region28
      $region27: #{transformer_decoder_forward.7} parent=11 // pred_region
        _
      $region28: #{transformer_decoder_forward.7} parent=11 // pred_fallthru
        _
      // Predicated region
      $region29: #{transformer_decoder_forward.7} parent=11 // pred_check
        %p240 = pneg %p145
      $region30: #{transformer_decoder_forward.7} parent=11 // pred_check_branch
        %242 = sbr.rel (%p240) target = $region32
      $region31: #{transformer_decoder_forward.7} parent=11 // pred_region
        _
      $region32: #{transformer_decoder_forward.7} parent=11 // pred_fallthru
        _
      // Predicated region
      $region33: #{transformer_decoder_forward.7} parent=11 // pred_check
        %p243 = pneg %p166
      $region34: #{transformer_decoder_forward.7} parent=11 // pred_check_branch
        %245 = sbr.rel (%p243) target = $region36
      $region35: #{transformer_decoder_forward.7} parent=11 // pred_region
        _
      $region36: #{transformer_decoder_forward.7} parent=11 // pred_fallthru
        _
      // Predicated region
      $region37: #{transformer_decoder_forward.7} parent=11 // pred_check
        %p246 = pneg %p187
      $region38: #{transformer_decoder_forward.7} parent=11 // pred_check_branch
        %248 = sbr.rel (%p246) target = $region40
      $region39: #{transformer_decoder_forward.7} parent=11 // pred_region
        _
      $region40: #{transformer_decoder_forward.7} parent=11 // pred_fallthru
        _
    $region12: #{transformer_decoder_forward.7} parent=5 // pred_fallthru
      _
    %p249 = scmp.lt.s32.totalorder %s14, 2
    // Predicated region
    $region41: #{transformer_decoder_forward.7} parent=5 // pred_check
      %p250 = pneg %p249
    $region42: #{transformer_decoder_forward.7} parent=5 // pred_check_branch
      %252 = sbr.rel (%p250) target = $region44
    $region43: #{transformer_decoder_forward.7} parent=5 // pred_region
      // Predicated region
      $region45: #{transformer_decoder_forward.7} parent=43 // pred_check
        %p253 = pneg %p34
      $region46: #{transformer_decoder_forward.7} parent=43 // pred_check_branch
        %255 = sbr.rel (%p253) target = $region48
      $region47: #{transformer_decoder_forward.7} parent=43 // pred_region
        %p256 = scmp.lt.s32.totalorder %s14, 1
        %s257 = scalar_select %p256, %s14, 1
        %s258 = smul.addr %s257, 8
        %s259 = scalar_lea.vmem %s0, %s258
      $region48: #{transformer_decoder_forward.7} parent=43 // pred_fallthru
        _
    $region44: #{transformer_decoder_forward.7} parent=5 // pred_fallthru
      _
    %p260 = scmp.le.s32.totalorder 1, %s14
    %p261 = scmp.lt.s32.totalorder %s14, 3
    %p262 = pnand %p260, %p261
    %p263 = pneg %p262
    // Predicated region
    $region49: #{transformer_decoder_forward.7} parent=5 // pred_check
      _
    $region50: #{transformer_decoder_forward.7} parent=5 // pred_check_branch
      %265 = sbr.rel (%p262) target = $region52
    $region51: #{transformer_decoder_forward.7} parent=5 // pred_region
      %s266 = ssub.s32 %s14, 1
      %p267 = scmp.lt.s32.totalorder %s19, 1
      %s268 = scalar_select %p267, %s19, 1
      %s269 = smul.addr %s268, 8
      %s270 = scalar_lea.vmem %s0, %s269
      %p271 = pneg %p40
      %p272 = pneg %p37
      %p273 = pneg %p61
      %p274 = pneg %p58
      %p275 = pneg %p82
      %p276 = pneg %p79
      %p277 = pneg %p103
      %p278 = pneg %p100
      %p279 = pneg %p124
      %p280 = pneg %p121
      %p281 = pneg %p145
      %p282 = pneg %p142
      %p283 = pneg %p166
      %p284 = pneg %p163
      %p285 = pneg %p187
      %p286 = pneg %p184
      %p287 = pneg %p213
      %p288 = pneg %p210
      %p289 = scmp.lt.s32.totalorder %s19, 1
      %s290 = scalar_select %p289, %s19, 1
      %s291 = smul.addr %s290, 8
      %s292 = scalar_lea.vmem %s8, %s291
      %p293 = scmp.lt.s32.totalorder %s19, 1
      %s294 = scalar_select %p293, %s19, 1
      %s295 = smul.addr %s294, 8
      %s296 = scalar_lea.vmem %s0, %s295
      %p297 = scmp.lt.s32.totalorder %s19, 1
      %s298 = scalar_select %p297, %s19, 1
      %s299 = smul.addr %s298, 8
      %s300 = scalar_lea.vmem %s8, %s299
      %v302 = vld [vmem:[%s296] sm:$0xff]
      %v303 = vpack.c.bf16 %v302, %v302
      %v304 = vld [vmem:[%s1] sm:$0xf]
      %v305 = vld [vmem:[%s1 + $0x4] sm:$0xf]
      %v306 = vld [vmem:[%s1 + $0x8] sm:$0xf]
      %v307 = vld [vmem:[%s1 + $0xc] sm:$0xf]
      %v308 = vld [vmem:[%s2] sm:$0x1]
      %v310 = vlaneseq
      %v311 = vshrl.u32 %v310, 7
      %v312 = vsub.s32 0, %v311
      %v313 = vrot.slane %v308, %v312
      %v319 = vunpack.c.l.b16 %v304
      %v320 = vunpack.c.l.b16 %v305
      %v321 = vunpack.c.l.b16 %v306
      %v322 = vunpack.c.l.b16 %v307
      %v323 = vpack.c.b16 %v320, %v319
      %v324 = vpack.c.b16 %v322, %v321
      %vm327 = vcmask 261120
      %v329 = vsel %vm327, %v303, 0
      %331 = vmatprep.subr.bf16.mxu0 0
      %332 = vmatpush1.bf16.msra.mxu0 %v323
      %333 = vmatprep.subr.bf16.mxu0 0
      %334 = vmatpush1.bf16.msra.mxu0 %v324
      %335 = vmatprep.subr.bf16.mxu0 0
      %336 = vmatpush1.bf16.msra.mxu0 0
      %337 = vmatprep.subr.bf16.mxu0 0
      %338 = vmatpush1.bf16.msra.mxu0 0
      %339 = vmatprep.subr.bf16.mxu0 0
      %340 = vmatpush1.bf16.msra.mxu0 0
      %341 = vmatprep.subr.bf16.mxu0 0
      %342 = vmatpush1.bf16.msra.mxu0 0
      %343 = vmatprep.subr.bf16.mxu0 0
      %344 = vmatpush1.bf16.msra.mxu0 0
      %345 = vmatprep.subr.bf16.mxu0 0
      %346 = vmatpush1.bf16.msra.mxu0 0
      %347 = vmatprep.subr.bf16.mxu0 0
      %348 = vmatpush1.bf16.msra.mxu0 0
      %349 = vmatprep.subr.bf16.mxu0 0
      %350 = vmatpush1.bf16.msra.mxu0 0
      %351 = vmatprep.subr.bf16.mxu0 0
      %352 = vmatpush1.bf16.msra.mxu0 0
      %353 = vmatprep.subr.bf16.mxu0 0
      %354 = vmatpush1.bf16.msra.mxu0 0
      %355 = vmatprep.subr.bf16.mxu0 0
      %356 = vmatpush1.bf16.msra.mxu0 0
      %357 = vmatprep.subr.bf16.mxu0 0
      %358 = vmatpush1.bf16.msra.mxu0 0
      %359 = vmatprep.subr.bf16.mxu0 0
      %360 = vmatpush1.bf16.msra.mxu0 0
      %361 = vmatprep.subr.bf16.mxu0 0
      %362 = vmatpush1.bf16.msra.mxu0 0
      %363 = vmatprep.mubr.bf16.mxu0 0
      %364 = vmatmul.mubr.bf16.gmra.mrb[0].mxu0 %v329
      %v365 = vpop.f32.mrb[0].mxu0
      %v366 = vadd.f32 %v313, %v365
      %v367 = vpop.f32.mrb[0].mxu0
      %v368 = vpop.f32.mrb[0].mxu0
      %v369 = vpop.f32.mrb[0].mxu0
      %370 = vdwg.mxu0
      %v371 = vld [vmem:[%s5] sm:$0xff]
      %v372 = vmul.f32 %v366, 0.35355338
      %v373 = vpack.c.bf16 %v372, %v372
      %v374 = vpack.c.bf16 %v366, %v366
      %376 = vrot.lane.b32.xlu0 %v374, 96
      %v377 = vpop.permute.xlu0 %376
      %vm378 = vcmask 64512
      %v380 = vsel %vm378, %v373, 0
      %v383 = vsel %vm378, %v377, 0
      %385 = vmatprep.subr.bf16.mxu0 0
      %386 = vmatpush1.bf16.xpose.msra.mxu0 %v383
      %387 = vmatprep.subr.bf16.mxu0 0
      %388 = vmatpush1.bf16.xpose.msra.mxu0 0
      %389 = vmatprep.subr.bf16.mxu0 0
      %390 = vmatpush1.bf16.xpose.msra.mxu0 0
      %391 = vmatprep.subr.bf16.mxu0 0
      %392 = vmatpush1.bf16.xpose.msra.mxu0 0
      %393 = vmatprep.subr.bf16.mxu0 0
      %394 = vmatpush1.bf16.xpose.msra.mxu0 0
      %395 = vmatprep.subr.bf16.mxu0 0
      %396 = vmatpush1.bf16.xpose.msra.mxu0 0
      %397 = vmatprep.subr.bf16.mxu0 0
      %398 = vmatpush1.bf16.xpose.msra.mxu0 0
      %399 = vmatprep.subr.bf16.mxu0 0
      %400 = vmatpush1.bf16.xpose.msra.mxu0 0
      %401 = vmatprep.subr.bf16.mxu0 0
      %402 = vmatpush1.bf16.xpose.msra.mxu0 0
      %403 = vmatprep.subr.bf16.mxu0 0
      %404 = vmatpush1.bf16.xpose.msra.mxu0 0
      %405 = vmatprep.subr.bf16.mxu0 0
      %406 = vmatpush1.bf16.xpose.msra.mxu0 0
      %407 = vmatprep.subr.bf16.mxu0 0
      %408 = vmatpush1.bf16.xpose.msra.mxu0 0
      %409 = vmatprep.subr.bf16.mxu0 0
      %410 = vmatpush1.bf16.xpose.msra.mxu0 0
      %411 = vmatprep.subr.bf16.mxu0 0
      %412 = vmatpush1.bf16.xpose.msra.mxu0 0
      %413 = vmatprep.subr.bf16.mxu0 0
      %414 = vmatpush1.bf16.xpose.msra.mxu0 0
      %415 = vmatprep.subr.bf16.mxu0 0
      %416 = vmatpush1.bf16.xpose.msra.mxu0 0
      %417 = vmatprep.mubr.bf16.mxu0 0
      %418 = vmatmul.mubr.bf16.gmra.mrb[0].mxu0 %v380
      %v419 = vpop.f32.mrb[0].mxu0
      %v420 = vadd.f32 %v371, %v419
      %v421 = vpop.f32.mrb[0].mxu0
      %v422 = vpop.f32.mrb[0].mxu0
      %v423 = vpop.f32.mrb[0].mxu0
      %424 = vdwg.mxu0
      %v425 = vsel %vm378, %v420, -inf
      %426 = vmax.xlane.f32.xlu0 %v425
      %v427 = vpop.xlane.xlu0 %426
      %v428 = vsub.f32 %v420, %v427
      %v429 = vmul.f32 %v428, 1.442695
      %v430 = vpow.pop %v429
      %v431 = vsel %vm378, %v430, 0.0
      %432 = vadd.xlane.f32.xlu0 %v431
      %v433 = vpop.xlane.xlu0 %432
      %v434 = vpack.c.bf16 %v430, %v430
      %435 = vrot.lane.b32.xlu0 %v374, 64
      %v436 = vpop.permute.xlu0 %435
      %v438 = vsel %vm378, %v434, 0
      %vm440 = vcmask 1043456
      %v442 = vsel %vm440, %v436, 0
      %444 = vmatprep.subr.bf16.mxu0 0
      %445 = vmatpush1.bf16.msra.mxu0 %v442
      %446 = vmatprep.subr.bf16.mxu0 0
      %447 = vmatpush1.bf16.msra.mxu0 0
      %448 = vmatprep.subr.bf16.mxu0 0
      %449 = vmatpush1.bf16.msra.mxu0 0
      %450 = vmatprep.subr.bf16.mxu0 0
      %451 = vmatpush1.bf16.msra.mxu0 0
      %452 = vmatprep.subr.bf16.mxu0 0
      %453 = vmatpush1.bf16.msra.mxu0 0
      %454 = vmatprep.subr.bf16.mxu0 0
      %455 = vmatpush1.bf16.msra.mxu0 0
      %456 = vmatprep.subr.bf16.mxu0 0
      %457 = vmatpush1.bf16.msra.mxu0 0
      %458 = vmatprep.subr.bf16.mxu0 0
      %459 = vmatpush1.bf16.msra.mxu0 0
      %460 = vmatprep.subr.bf16.mxu0 0
      %461 = vmatpush1.bf16.msra.mxu0 0
      %462 = vmatprep.subr.bf16.mxu0 0
      %463 = vmatpush1.bf16.msra.mxu0 0
      %464 = vmatprep.subr.bf16.mxu0 0
      %465 = vmatpush1.bf16.msra.mxu0 0
      %466 = vmatprep.subr.bf16.mxu0 0
      %467 = vmatpush1.bf16.msra.mxu0 0
      %468 = vmatprep.subr.bf16.mxu0 0
      %469 = vmatpush1.bf16.msra.mxu0 0
      %470 = vmatprep.subr.bf16.mxu0 0
      %471 = vmatpush1.bf16.msra.mxu0 0
      %472 = vmatprep.subr.bf16.mxu0 0
      %473 = vmatpush1.bf16.msra.mxu0 0
      %474 = vmatprep.subr.bf16.mxu0 0
      %475 = vmatpush1.bf16.msra.mxu0 0
      %476 = vmatprep.mubr.bf16.mxu0 0
      %477 = vmatmul.mubr.bf16.gmra.mrb[0].mxu0 %v438
      %v478 = vpop.f32.mrb[0].mxu0
      %v479 = vadd.f32 0.0, %v478
      %v480 = vpop.f32.mrb[0].mxu0
      %v481 = vpop.f32.mrb[0].mxu0
      %v482 = vpop.f32.mrb[0].mxu0
      %483 = vdwg.mxu0
      %v484 = vrcp.pop %v433
      %v485 = vmul.f32 %v479, %v484
      %487 = vrot.lane.b32.xlu0 %v373, 120
      %v488 = vpop.permute.xlu0 %487
      %489 = vrot.lane.b32.xlu0 %v374, 88
      %v490 = vpop.permute.xlu0 %489
      %v492 = vsel %vm378, %v488, 0
      %v495 = vsel %vm378, %v490, 0
      %497 = vmatprep.subr.bf16.mxu0 0
      %498 = vmatpush1.bf16.xpose.msra.mxu0 %v495
      %499 = vmatprep.subr.bf16.mxu0 0
      %500 = vmatpush1.bf16.xpose.msra.mxu0 0
      %501 = vmatprep.subr.bf16.mxu0 0
      %502 = vmatpush1.bf16.xpose.msra.mxu0 0
      %503 = vmatprep.subr.bf16.mxu0 0
      %504 = vmatpush1.bf16.xpose.msra.mxu0 0
      %505 = vmatprep.subr.bf16.mxu0 0
      %506 = vmatpush1.bf16.xpose.msra.mxu0 0
      %507 = vmatprep.subr.bf16.mxu0 0
      %508 = vmatpush1.bf16.xpose.msra.mxu0 0
      %509 = vmatprep.subr.bf16.mxu0 0
      %510 = vmatpush1.bf16.xpose.msra.mxu0 0
      %511 = vmatprep.subr.bf16.mxu0 0
      %512 = vmatpush1.bf16.xpose.msra.mxu0 0
      %513 = vmatprep.subr.bf16.mxu0 0
      %514 = vmatpush1.bf16.xpose.msra.mxu0 0
      %515 = vmatprep.subr.bf16.mxu0 0
      %516 = vmatpush1.bf16.xpose.msra.mxu0 0
      %517 = vmatprep.subr.bf16.mxu0 0
      %518 = vmatpush1.bf16.xpose.msra.mxu0 0
      %519 = vmatprep.subr.bf16.mxu0 0
      %520 = vmatpush1.bf16.xpose.msra.mxu0 0
      %521 = vmatprep.subr.bf16.mxu0 0
      %522 = vmatpush1.bf16.xpose.msra.mxu0 0
      %523 = vmatprep.subr.bf16.mxu0 0
      %524 = vmatpush1.bf16.xpose.msra.mxu0 0
      %525 = vmatprep.subr.bf16.mxu0 0
      %526 = vmatpush1.bf16.xpose.msra.mxu0 0
      %527 = vmatprep.subr.bf16.mxu0 0
      %528 = vmatpush1.bf16.xpose.msra.mxu0 0
      %529 = vmatprep.mubr.bf16.mxu0 0
      %530 = vmatmul.mubr.bf16.gmra.mrb[0].mxu0 %v492
      %v531 = vpop.f32.mrb[0].mxu0
      %v532 = vadd.f32 %v371, %v531
      %v533 = vpop.f32.mrb[0].mxu0
      %v534 = vpop.f32.mrb[0].mxu0
      %v535 = vpop.f32.mrb[0].mxu0
      %536 = vdwg.mxu0
      %v537 = vsel %vm378, %v532, -inf
      %538 = vmax.xlane.f32.xlu0 %v537
      %v539 = vpop.xlane.xlu0 %538
      %v540 = vsub.f32 %v532, %v539
      %v541 = vmul.f32 %v540, 1.442695
      %v542 = vpow.pop %v541
      %v543 = vsel %vm378, %v542, 0.0
      %544 = vadd.xlane.f32.xlu0 %v543
      %v545 = vpop.xlane.xlu0 %544
      %v546 = vpack.c.bf16 %v542, %v542
      %547 = vrot.lane.b32.xlu0 %v374, 56
      %v548 = vpop.permute.xlu0 %547
      %v550 = vsel %vm378, %v546, 0
      %v553 = vsel %vm440, %v548, 0
      %555 = vmatprep.subr.bf16.mxu0 0
      %556 = vmatpush1.bf16.msra.mxu0 %v553
      %557 = vmatprep.subr.bf16.mxu0 0
      %558 = vmatpush1.bf16.msra.mxu0 0
      %559 = vmatprep.subr.bf16.mxu0 0
      %560 = vmatpush1.bf16.msra.mxu0 0
      %561 = vmatprep.subr.bf16.mxu0 0
      %562 = vmatpush1.bf16.msra.mxu0 0
      %563 = vmatprep.subr.bf16.mxu0 0
      %564 = vmatpush1.bf16.msra.mxu0 0
      %565 = vmatprep.subr.bf16.mxu0 0
      %566 = vmatpush1.bf16.msra.mxu0 0
      %567 = vmatprep.subr.bf16.mxu0 0
      %568 = vmatpush1.bf16.msra.mxu0 0
      %569 = vmatprep.subr.bf16.mxu0 0
      %570 = vmatpush1.bf16.msra.mxu0 0
      %571 = vmatprep.subr.bf16.mxu0 0
      %572 = vmatpush1.bf16.msra.mxu0 0
      %573 = vmatprep.subr.bf16.mxu0 0
      %574 = vmatpush1.bf16.msra.mxu0 0
      %575 = vmatprep.subr.bf16.mxu0 0
      %576 = vmatpush1.bf16.msra.mxu0 0
      %577 = vmatprep.subr.bf16.mxu0 0
      %578 = vmatpush1.bf16.msra.mxu0 0
      %579 = vmatprep.subr.bf16.mxu0 0
      %580 = vmatpush1.bf16.msra.mxu0 0
      %581 = vmatprep.subr.bf16.mxu0 0
      %582 = vmatpush1.bf16.msra.mxu0 0
      %583 = vmatprep.subr.bf16.mxu0 0
      %584 = vmatpush1.bf16.msra.mxu0 0
      %585 = vmatprep.subr.bf16.mxu0 0
      %586 = vmatpush1.bf16.msra.mxu0 0
      %587 = vmatprep.mubr.bf16.mxu0 0
      %588 = vmatmul.mubr.bf16.gmra.mrb[0].mxu0 %v550
      %v589 = vpop.f32.mrb[0].mxu0
      %v590 = vadd.f32 0.0, %v589
      %v591 = vpop.f32.mrb[0].mxu0
      %v592 = vpop.f32.mrb[0].mxu0
      %v593 = vpop.f32.mrb[0].mxu0
      %594 = vdwg.mxu0
      %v595 = vrcp.pop %v545
      %v596 = vmul.f32 %v590, %v595
      %597 = vrot.lane.b32.xlu0 %v373, 112
      %v598 = vpop.permute.xlu0 %597
      %599 = vrot.lane.b32.xlu0 %v374, 80
      %v600 = vpop.permute.xlu0 %599
      %v602 = vsel %vm378, %v598, 0
      %v605 = vsel %vm378, %v600, 0
      %607 = vmatprep.subr.bf16.mxu0 0
      %608 = vmatpush1.bf16.xpose.msra.mxu0 %v605
      %609 = vmatprep.subr.bf16.mxu0 0
      %610 = vmatpush1.bf16.xpose.msra.mxu0 0
      %611 = vmatprep.subr.bf16.mxu0 0
      %612 = vmatpush1.bf16.xpose.msra.mxu0 0
      %613 = vmatprep.subr.bf16.mxu0 0
      %614 = vmatpush1.bf16.xpose.msra.mxu0 0
      %615 = vmatprep.subr.bf16.mxu0 0
      %616 = vmatpush1.bf16.xpose.msra.mxu0 0
      %617 = vmatprep.subr.bf16.mxu0 0
      %618 = vmatpush1.bf16.xpose.msra.mxu0 0
      %619 = vmatprep.subr.bf16.mxu0 0
      %620 = vmatpush1.bf16.xpose.msra.mxu0 0
      %621 = vmatprep.subr.bf16.mxu0 0
      %622 = vmatpush1.bf16.xpose.msra.mxu0 0
      %623 = vmatprep.subr.bf16.mxu0 0
      %624 = vmatpush1.bf16.xpose.msra.mxu0 0
      %625 = vmatprep.subr.bf16.mxu0 0
      %626 = vmatpush1.bf16.xpose.msra.mxu0 0
      %627 = vmatprep.subr.bf16.mxu0 0
      %628 = vmatpush1.bf16.xpose.msra.mxu0 0
      %629 = vmatprep.subr.bf16.mxu0 0
      %630 = vmatpush1.bf16.xpose.msra.mxu0 0
      %631 = vmatprep.subr.bf16.mxu0 0
      %632 = vmatpush1.bf16.xpose.msra.mxu0 0
      %633 = vmatprep.subr.bf16.mxu0 0
      %634 = vmatpush1.bf16.xpose.msra.mxu0 0
      %635 = vmatprep.subr.bf16.mxu0 0
      %636 = vmatpush1.bf16.xpose.msra.mxu0 0
      %637 = vmatprep.subr.bf16.mxu0 0
      %638 = vmatpush1.bf16.xpose.msra.mxu0 0
      %639 = vmatprep.mubr.bf16.mxu0 0
      %640 = vmatmul.mubr.bf16.gmra.mrb[0].mxu0 %v602
      %v641 = vpop.f32.mrb[0].mxu0
      %v642 = vadd.f32 %v371, %v641
      %v643 = vpop.f32.mrb[0].mxu0
      %v644 = vpop.f32.mrb[0].mxu0
      %v645 = vpop.f32.mrb[0].mxu0
      %646 = vdwg.mxu0
      %v647 = vsel %vm378, %v642, -inf
      %648 = vmax.xlane.f32.xlu0 %v647
      %v649 = vpop.xlane.xlu0 %648
      %v650 = vsub.f32 %v642, %v649
      %v651 = vmul.f32 %v650, 1.442695
      %v652 = vpow.pop %v651
      %v653 = vsel %vm378, %v652, 0.0
      %654 = vadd.xlane.f32.xlu0 %v653
      %v655 = vpop.xlane.xlu0 %654
      %v656 = vpack.c.bf16 %v652, %v652
      %657 = vrot.lane.b32.xlu0 %v374, 48
      %v658 = vpop.permute.xlu0 %657
      %v660 = vsel %vm378, %v656, 0
      %v663 = vsel %vm440, %v658, 0
      %665 = vmatprep.subr.bf16.mxu0 0
      %666 = vmatpush1.bf16.msra.mxu0 %v663
      %667 = vmatprep.subr.bf16.mxu0 0
      %668 = vmatpush1.bf16.msra.mxu0 0
      %669 = vmatprep.subr.bf16.mxu0 0
      %670 = vmatpush1.bf16.msra.mxu0 0
      %671 = vmatprep.subr.bf16.mxu0 0
      %672 = vmatpush1.bf16.msra.mxu0 0
      %673 = vmatprep.subr.bf16.mxu0 0
      %674 = vmatpush1.bf16.msra.mxu0 0
      %675 = vmatprep.subr.bf16.mxu0 0
      %676 = vmatpush1.bf16.msra.mxu0 0
      %677 = vmatprep.subr.bf16.mxu0 0
      %678 = vmatpush1.bf16.msra.mxu0 0
      %679 = vmatprep.subr.bf16.mxu0 0
      %680 = vmatpush1.bf16.msra.mxu0 0
      %681 = vmatprep.subr.bf16.mxu0 0
      %682 = vmatpush1.bf16.msra.mxu0 0
      %683 = vmatprep.subr.bf16.mxu0 0
      %684 = vmatpush1.bf16.msra.mxu0 0
      %685 = vmatprep.subr.bf16.mxu0 0
      %686 = vmatpush1.bf16.msra.mxu0 0
      %687 = vmatprep.subr.bf16.mxu0 0
      %688 = vmatpush1.bf16.msra.mxu0 0
      %689 = vmatprep.subr.bf16.mxu0 0
      %690 = vmatpush1.bf16.msra.mxu0 0
      %691 = vmatprep.subr.bf16.mxu0 0
      %692 = vmatpush1.bf16.msra.mxu0 0
      %693 = vmatprep.subr.bf16.mxu0 0
      %694 = vmatpush1.bf16.msra.mxu0 0
      %695 = vmatprep.subr.bf16.mxu0 0
      %696 = vmatpush1.bf16.msra.mxu0 0
      %697 = vmatprep.mubr.bf16.mxu0 0
      %698 = vmatmul.mubr.bf16.gmra.mrb[0].mxu0 %v660
      %v699 = vpop.f32.mrb[0].mxu0
      %v700 = vadd.f32 0.0, %v699
      %v701 = vpop.f32.mrb[0].mxu0
      %v702 = vpop.f32.mrb[0].mxu0
      %v703 = vpop.f32.mrb[0].mxu0
      %704 = vdwg.mxu0
      %v705 = vrcp.pop %v655
      %v706 = vmul.f32 %v700, %v705
      %707 = vrot.lane.b32.xlu0 %v373, 104
      %v708 = vpop.permute.xlu0 %707
      %709 = vrot.lane.b32.xlu0 %v374, 72
      %v710 = vpop.permute.xlu0 %709
      %v712 = vsel %vm378, %v708, 0
      %v715 = vsel %vm378, %v710, 0
      %717 = vmatprep.subr.bf16.mxu0 0
      %718 = vmatpush1.bf16.xpose.msra.mxu0 %v715
      %719 = vmatprep.subr.bf16.mxu0 0
      %720 = vmatpush1.bf16.xpose.msra.mxu0 0
      %721 = vmatprep.subr.bf16.mxu0 0
      %722 = vmatpush1.bf16.xpose.msra.mxu0 0
      %723 = vmatprep.subr.bf16.mxu0 0
      %724 = vmatpush1.bf16.xpose.msra.mxu0 0
      %725 = vmatprep.subr.bf16.mxu0 0
      %726 = vmatpush1.bf16.xpose.msra.mxu0 0
      %727 = vmatprep.subr.bf16.mxu0 0
      %728 = vmatpush1.bf16.xpose.msra.mxu0 0
      %729 = vmatprep.subr.bf16.mxu0 0
      %730 = vmatpush1.bf16.xpose.msra.mxu0 0
      %731 = vmatprep.subr.bf16.mxu0 0
      %732 = vmatpush1.bf16.xpose.msra.mxu0 0
      %733 = vmatprep.subr.bf16.mxu0 0
      %734 = vmatpush1.bf16.xpose.msra.mxu0 0
      %735 = vmatprep.subr.bf16.mxu0 0
      %736 = vmatpush1.bf16.xpose.msra.mxu0 0
      %737 = vmatprep.subr.bf16.mxu0 0
      %738 = vmatpush1.bf16.xpose.msra.mxu0 0
      %739 = vmatprep.subr.bf16.mxu0 0
      %740 = vmatpush1.bf16.xpose.msra.mxu0 0
      %741 = vmatprep.subr.bf16.mxu0 0
      %742 = vmatpush1.bf16.xpose.msra.mxu0 0
      %743 = vmatprep.subr.bf16.mxu0 0
      %744 = vmatpush1.bf16.xpose.msra.mxu0 0
      %745 = vmatprep.subr.bf16.mxu0 0
      %746 = vmatpush1.bf16.xpose.msra.mxu0 0
      %747 = vmatprep.subr.bf16.mxu0 0
      %748 = vmatpush1.bf16.xpose.msra.mxu0 0
      %749 = vmatprep.mubr.bf16.mxu0 0
      %750 = vmatmul.mubr.bf16.gmra.mrb[0].mxu0 %v712
      %v751 = vpop.f32.mrb[0].mxu0
      %v752 = vadd.f32 %v371, %v751
      %v753 = vpop.f32.mrb[0].mxu0
      %v754 = vpop.f32.mrb[0].mxu0
      %v755 = vpop.f32.mrb[0].mxu0
      %756 = vdwg.mxu0
      %v757 = vsel %vm378, %v752, -inf
      %758 = vmax.xlane.f32.xlu0 %v757
      %v759 = vpop.xlane.xlu0 %758
      %v760 = vsub.f32 %v752, %v759
      %v761 = vmul.f32 %v760, 1.442695
      %v762 = vpow.pop %v761
      %v763 = vsel %vm378, %v762, 0.0
      %764 = vadd.xlane.f32.xlu0 %v763
      %v765 = vpop.xlane.xlu0 %764
      %v766 = vpack.c.bf16 %v762, %v762
      %767 = vrot.lane.b32.xlu0 %v374, 40
      %v768 = vpop.permute.xlu0 %767
      %v770 = vsel %vm378, %v766, 0
      %v773 = vsel %vm440, %v768, 0
      %775 = vmatprep.subr.bf16.mxu0 0
      %776 = vmatpush1.bf16.msra.mxu0 %v773
      %777 = vmatprep.subr.bf16.mxu0 0
      %778 = vmatpush1.bf16.msra.mxu0 0
      %779 = vmatprep.subr.bf16.mxu0 0
      %780 = vmatpush1.bf16.msra.mxu0 0
      %781 = vmatprep.subr.bf16.mxu0 0
      %782 = vmatpush1.bf16.msra.mxu0 0
      %783 = vmatprep.subr.bf16.mxu0 0
      %784 = vmatpush1.bf16.msra.mxu0 0
      %785 = vmatprep.subr.bf16.mxu0 0
      %786 = vmatpush1.bf16.msra.mxu0 0
      %787 = vmatprep.subr.bf16.mxu0 0
      %788 = vmatpush1.bf16.msra.mxu0 0
      %789 = vmatprep.subr.bf16.mxu0 0
      %790 = vmatpush1.bf16.msra.mxu0 0
      %791 = vmatprep.subr.bf16.mxu0 0
      %792 = vmatpush1.bf16.msra.mxu0 0
      %793 = vmatprep.subr.bf16.mxu0 0
      %794 = vmatpush1.bf16.msra.mxu0 0
      %795 = vmatprep.subr.bf16.mxu0 0
      %796 = vmatpush1.bf16.msra.mxu0 0
      %797 = vmatprep.subr.bf16.mxu0 0
      %798 = vmatpush1.bf16.msra.mxu0 0
      %799 = vmatprep.subr.bf16.mxu0 0
      %800 = vmatpush1.bf16.msra.mxu0 0
      %801 = vmatprep.subr.bf16.mxu0 0
      %802 = vmatpush1.bf16.msra.mxu0 0
      %803 = vmatprep.subr.bf16.mxu0 0
      %804 = vmatpush1.bf16.msra.mxu0 0
      %805 = vmatprep.subr.bf16.mxu0 0
      %806 = vmatpush1.bf16.msra.mxu0 0
      %807 = vmatprep.mubr.bf16.mxu0 0
      %808 = vmatmul.mubr.bf16.gmra.mrb[0].mxu0 %v770
      %v809 = vpop.f32.mrb[0].mxu0
      %v810 = vadd.f32 0.0, %v809
      %v811 = vpop.f32.mrb[0].mxu0
      %v812 = vpop.f32.mrb[0].mxu0
      %v813 = vpop.f32.mrb[0].mxu0
      %814 = vdwg.mxu0
      %v815 = vrcp.pop %v765
      %v816 = vmul.f32 %v810, %v815
      %818 = vrot.lane.b32.xlu0 %v596, 8
      %v819 = vpop.permute.xlu0 %818
      %822 = vrot.lane.b32.xlu0 %v706, 16
      %v823 = vpop.permute.xlu0 %822
      %826 = vrot.lane.b32.xlu0 %v816, 24
      %v827 = vpop.permute.xlu0 %826
      %v829 = vsel %vm378, %v485, %v819
      %vm830 = vcmask 130048
      %v831 = vsel %vm830, %v829, %v823
      %vm832 = vcmask 195584
      %v833 = vsel %vm832, %v831, %v827
      %v834 = vpack.c.bf16 %v833, %v833
      %v835 = vld [vmem:[%s3] sm:$0xf]
      %v836 = vld [vmem:[%s3 + $0x4] sm:$0xf]
      %v837 = vld [vmem:[%s3 + $0x8] sm:$0xf]
      %v838 = vld [vmem:[%s3 + $0xc] sm:$0xf]
      %v839 = vld [vmem:[%s4] sm:$0x1]
      %v841 = vlaneseq
      %v842 = vshrl.u32 %v841, 7
      %v843 = vsub.s32 0, %v842
      %v844 = vrot.slane %v839, %v843
      %v850 = vunpack.c.l.b16 %v835
      %v851 = vunpack.c.l.b16 %v836
      %v852 = vunpack.c.l.b16 %v837
      %v853 = vunpack.c.l.b16 %v838
      %v854 = vpack.c.b16 %v851, %v850
      %v855 = vpack.c.b16 %v853, %v852
      %v859 = vsel %vm327, %v834, 0
      %861 = vmatprep.subr.bf16.mxu0 0
      %862 = vmatpush1.bf16.msra.mxu0 %v854
      %863 = vmatprep.subr.bf16.mxu0 0
      %864 = vmatpush1.bf16.msra.mxu0 %v855
      %865 = vmatprep.subr.bf16.mxu0 0
      %866 = vmatpush1.bf16.msra.mxu0 0
      %867 = vmatprep.subr.bf16.mxu0 0
      %868 = vmatpush1.bf16.msra.mxu0 0
      %869 = vmatprep.subr.bf16.mxu0 0
      %870 = vmatpush1.bf16.msra.mxu0 0
      %871 = vmatprep.subr.bf16.mxu0 0
      %872 = vmatpush1.bf16.msra.mxu0 0
      %873 = vmatprep.subr.bf16.mxu0 0
      %874 = vmatpush1.bf16.msra.mxu0 0
      %875 = vmatprep.subr.bf16.mxu0 0
      %876 = vmatpush1.bf16.msra.mxu0 0
      %877 = vmatprep.subr.bf16.mxu0 0
      %878 = vmatpush1.bf16.msra.mxu0 0
      %879 = vmatprep.subr.bf16.mxu0 0
      %880 = vmatpush1.bf16.msra.mxu0 0
      %881 = vmatprep.subr.bf16.mxu0 0
      %882 = vmatpush1.bf16.msra.mxu0 0
      %883 = vmatprep.subr.bf16.mxu0 0
      %884 = vmatpush1.bf16.msra.mxu0 0
      %885 = vmatprep.subr.bf16.mxu0 0
      %886 = vmatpush1.bf16.msra.mxu0 0
      %887 = vmatprep.subr.bf16.mxu0 0
      %888 = vmatpush1.bf16.msra.mxu0 0
      %889 = vmatprep.subr.bf16.mxu0 0
      %890 = vmatpush1.bf16.msra.mxu0 0
      %891 = vmatprep.subr.bf16.mxu0 0
      %892 = vmatpush1.bf16.msra.mxu0 0
      %893 = vmatprep.mubr.bf16.mxu0 0
      %894 = vmatmul.mubr.bf16.gmra.mrb[0].mxu0 %v859
      %v895 = vpop.f32.mrb[0].mxu0
      %v896 = vadd.f32 %v844, %v895
      %v897 = vpop.f32.mrb[0].mxu0
      %v898 = vpop.f32.mrb[0].mxu0
      %v899 = vpop.f32.mrb[0].mxu0
      %900 = vdwg.mxu0
      %v901 = vadd.f32 %v896, %v302
      %v902 = vld [vmem:[%s6] sm:$0x1]
      %v903 = vld [vmem:[%s7] sm:$0x1]
      %v904 = vsel %vm327, %v901, 0.0
      %905 = vadd.xlane.f32.xlu0 %v904
      %v906 = vpop.xlane.xlu0 %905
      %v907 = vrcp.pop 32.0
      %v908 = vmul.f32 %v906, %v907
      %v909 = vsub.f32 %v901, %v908
      %v910 = vmul.f32 %v909, %v909
      %v911 = vsel %vm327, %v910, 0.0
      %912 = vadd.xlane.f32.xlu0 %v911
      %v913 = vpop.xlane.xlu0 %912
      %v914 = vmul.f32 %v913, %v907
      %v915 = vadd.f32 %v914, 1e-05
      %v916 = vrsqrt.pop %v915
      %v917 = vmul.f32 %v909, %v916
      %v919 = vlaneseq
      %v920 = vshrl.u32 %v919, 7
      %v921 = vsub.s32 0, %v920
      %v922 = vrot.slane %v902, %v921
      %v924 = vmul.f32 %v917, %v922
      %v926 = vlaneseq
      %v927 = vshrl.u32 %v926, 7
      %v928 = vsub.s32 0, %v927
      %v929 = vrot.slane %v903, %v928
      %v931 = vadd.f32 %v924, %v929
      %932 = vst.msk [vmem:[%s300] sm:$0xff] %vm327, %v931
      %p933 = scmp.lt.s32.totalorder %s19, 1
      %s934 = scalar_select %p933, %s19, 1
      %s935 = smul.addr %s934, 8
      %s936 = scalar_lea.vmem %s8, %s935
      // Predicated region
      $region53: #{transformer_decoder_forward.7} parent=51 // pred_check
        %p937 = pneg %p210
      $region54: #{transformer_decoder_forward.7} parent=51 // pred_check_branch
        %939 = sbr.rel (%p937) target = $region56
      $region55: #{transformer_decoder_forward.7} parent=51 // pred_region
        _
      $region56: #{transformer_decoder_forward.7} parent=51 // pred_fallthru
        _
    $region52: #{transformer_decoder_forward.7} parent=5 // pred_fallthru
      _
    %p940 = scmp.le.s32.totalorder 2, %s14
    // Predicated region
    $region57: #{transformer_decoder_forward.7} parent=5 // pred_check
      %p941 = pneg %p940
    $region58: #{transformer_decoder_forward.7} parent=5 // pred_check_branch
      %943 = sbr.rel (%p941) target = $region60
    $region59: #{transformer_decoder_forward.7} parent=5 // pred_region
      %s944 = ssub.s32 %s14, 2
      // Predicated region
      $region61: #{transformer_decoder_forward.7} parent=59 // pred_check
        %p945 = pneg %p216
      $region62: #{transformer_decoder_forward.7} parent=59 // pred_check_branch
        %947 = sbr.rel (%p945) target = $region64
      $region63: #{transformer_decoder_forward.7} parent=59 // pred_region
        %p948 = scmp.lt.s32.totalorder %s20, 1
        %s949 = scalar_select %p948, %s20, 1
        %s950 = smul.addr %s949, 8
        %s951 = scalar_lea.vmem %s8, %s950
      $region64: #{transformer_decoder_forward.7} parent=59 // pred_fallthru
        _
    $region60: #{transformer_decoder_forward.7} parent=5 // pred_fallthru
      _
  $region6: #{transformer_decoder_forward.7} parent=0 // loop_footer
    %s18 = sadd.s32 1, %s14
  $region7: #{transformer_decoder_forward.7} parent=0 // loop_footer_branch
    %13 = sbr.rel target = $region3
  $region8: #{transformer_decoder_forward.7} parent=0 // loop_exit
    _

// kernel: transformer_decoder_forward.8
$region0: #{transformer_decoder_forward.8}
  #allocation0 [shape = 'u32[]', space=smem, size = 0x4, offset = 0x4, fixed_abs, tag = 'smem constant byte address 0x4 - core index']
  #allocation1 [shape = 'u32[144,128]{1,0:T(1,128)}', space=vmem, size = 0x12000, scoped, tag = 'internal scratch']
  %s0 = inlined_call_operand.vmem [shape: f32[16,32], index: 0, kind: input, shape index: {}]
  %s1 = inlined_call_operand.vmem [shape: f32[2,16,32], index: 1, kind: input, shape index: {}]
  %s2 = inlined_call_operand.vmem [shape: bf16[32,32], index: 2, kind: input, shape index: {}]
  %s3 = inlined_call_operand.vmem [shape: f32[1,32], index: 3, kind: input, shape index: {}]
  %s4 = inlined_call_operand.vmem [shape: bf16[32,64], index: 4, kind: input, shape index: {}]
  %s5 = inlined_call_operand.vmem [shape: f32[1,64], index: 5, kind: input, shape index: {}]
  %s6 = inlined_call_operand.vmem [shape: bf16[32,32], index: 6, kind: input, shape index: {}]
  %s7 = inlined_call_operand.vmem [shape: f32[1,32], index: 7, kind: input, shape index: {}]
  %s8 = inlined_call_operand.vmem [shape: f32[1,32], index: 8, kind: input, shape index: {}]
  %s9 = inlined_call_operand.vmem [shape: f32[1,32], index: 9, kind: input, shape index: {}]
  %s10 = inlined_call_operand.vmem [shape: f32[16,32], index: 10, kind: output, shape index: {}]
  %s11 = sld [smem:[#allocation0]]
  $region73: #{transformer_decoder_forward.8} parent=0
    _
  %s13 = ssub.s32 1, %s11
  %s14 = scalar_select 0, %s13, %s11
  loop: start=0, step=1, limit=4
  $region2: #{transformer_decoder_forward.8} parent=0 // loop_pre_header
    _
  $region3: #{transformer_decoder_forward.8} parent=0 // loop_header
    %s16 = sphi 0, %s20
    %p17 = scmp.ge.s32.totalorder %s16, 4
    %s26 = sphi 0, %s28
    %s29 = sphi 0, %s26
    %s30 = sphi 0, %s29
    %s46 = sphi 0, %s30
    %s52 = sphi 0, %s54
    %s55 = sphi 0, %s52
    %s56 = sphi 0, %s55
    %s72 = sphi 0, %s56
    %s76 = sphi 0, %s76
    %s78 = sphi 0, %s76
    %s79 = sphi 0, %s78
    %s93 = sphi 0, %s79
    %s97 = sphi 0, %s97
    %s99 = sphi 0, %s97
    %s100 = sphi 0, %s99
    %s114 = sphi 0, %s100
    %s118 = sphi 0, %s118
    %s120 = sphi 0, %s118
    %s121 = sphi 0, %s120
    %s135 = sphi 0, %s121
    %s139 = sphi 0, %s139
    %s141 = sphi 0, %s139
    %s142 = sphi 0, %s141
    %s156 = sphi 0, %s142
    %s160 = sphi 0, %s160
    %s162 = sphi 0, %s160
    %s163 = sphi 0, %s162
    %s177 = sphi 0, %s163
    %s181 = sphi 0, %s181
    %s183 = sphi 0, %s181
    %s184 = sphi 0, %s183
    %s198 = sphi 0, %s184
    %s202 = sphi 0, %s202
    %s204 = sphi 0, %s202
    %s205 = sphi 0, %s204
    %s219 = sphi 0, %s205
    %s223 = sphi 0, %s223
    %s225 = sphi 0, %s223
    %s226 = sphi 0, %s225
    %s240 = sphi 0, %s226
    %s246 = sphi 0, %s248
    %s249 = sphi 0, %s246
    %s250 = sphi 0, %s249
    %s266 = sphi 0, %s250
  $region4: #{transformer_decoder_forward.8} parent=0 // loop_header_branch
    %19 = sbr.rel (%p17) target = $region8
  $region5: #{transformer_decoder_forward.8} parent=0 // loop_body
    %s21 = ssub.s32 %s16, 1
    %s22 = ssub.s32 %s16, 2
    %s23 = sadd.s32 %s16, 1
    %s24 = ssub.s32 %s16, %s23
    %p25 = scmp.eq.s32.totalorder %s24, 0
    %s27 = sadd.s32 %s26, 1
    %s28 = scalar_select %p25, %s26, %s27
    %p31 = pneg %p25
    %p32 = scmp.eq.s32.totalorder %s16, 1
    %p33 = por %p31, %p32
    %p34 = scmp.ne.s32.totalorder %s26, %s29
    %p35 = scmp.eq.s32.totalorder %s16, 0
    %p36 = por %p34, %p35
    %p37 = scmp.ne.s32.totalorder %s26, %s29
    %p38 = scmp.eq.s32.totalorder %s21, 1
    %p39 = por %p37, %p38
    %p40 = scmp.ne.s32.totalorder %s29, %s30
    %p41 = scmp.eq.s32.totalorder %s21, 0
    %p42 = por %p40, %p41
    %p43 = scmp.ne.s32.totalorder %s29, %s30
    %p44 = scmp.eq.s32.totalorder %s22, 1
    %p45 = por %p43, %p44
    %p47 = scmp.ne.s32.totalorder %s30, %s46
    %p48 = scmp.eq.s32.totalorder %s22, 0
    %p49 = por %p47, %p48
    %s50 = ssub.s32 %s16, %s23
    %p51 = scmp.eq.s32.totalorder %s50, 0
    %s53 = sadd.s32 %s52, 1
    %s54 = scalar_select %p51, %s52, %s53
    %p57 = pneg %p51
    %p58 = scmp.eq.s32.totalorder %s16, 1
    %p59 = por %p57, %p58
    %p60 = scmp.ne.s32.totalorder %s52, %s55
    %p61 = scmp.eq.s32.totalorder %s16, 0
    %p62 = por %p60, %p61
    %p63 = scmp.ne.s32.totalorder %s52, %s55
    %p64 = scmp.eq.s32.totalorder %s21, 1
    %p65 = por %p63, %p64
    %p66 = scmp.ne.s32.totalorder %s55, %s56
    %p67 = scmp.eq.s32.totalorder %s21, 0
    %p68 = por %p66, %p67
    %p69 = scmp.ne.s32.totalorder %s55, %s56
    %p70 = scmp.eq.s32.totalorder %s22, 1
    %p71 = por %p69, %p70
    %p73 = scmp.ne.s32.totalorder %s56, %s72
    %p74 = scmp.eq.s32.totalorder %s22, 0
    %p75 = por %p73, %p74
    %s77 = sadd.s32 %s76, 1
    %p80 = scmp.eq.s32.totalorder %s16, 1
    %p81 = scmp.ne.s32.totalorder %s76, %s78
    %p82 = scmp.eq.s32.totalorder %s16, 0
    %p83 = por %p81, %p82
    %p84 = scmp.ne.s32.totalorder %s76, %s78
    %p85 = scmp.eq.s32.totalorder %s21, 1
    %p86 = por %p84, %p85
    %p87 = scmp.ne.s32.totalorder %s78, %s79
    %p88 = scmp.eq.s32.totalorder %s21, 0
    %p89 = por %p87, %p88
    %p90 = scmp.ne.s32.totalorder %s78, %s79
    %p91 = scmp.eq.s32.totalorder %s22, 1
    %p92 = por %p90, %p91
    %p94 = scmp.ne.s32.totalorder %s79, %s93
    %p95 = scmp.eq.s32.totalorder %s22, 0
    %p96 = por %p94, %p95
    %s98 = sadd.s32 %s97, 1
    %p101 = scmp.eq.s32.totalorder %s16, 1
    %p102 = scmp.ne.s32.totalorder %s97, %s99
    %p103 = scmp.eq.s32.totalorder %s16, 0
    %p104 = por %p102, %p103
    %p105 = scmp.ne.s32.totalorder %s97, %s99
    %p106 = scmp.eq.s32.totalorder %s21, 1
    %p107 = por %p105, %p106
    %p108 = scmp.ne.s32.totalorder %s99, %s100
    %p109 = scmp.eq.s32.totalorder %s21, 0
    %p110 = por %p108, %p109
    %p111 = scmp.ne.s32.totalorder %s99, %s100
    %p112 = scmp.eq.s32.totalorder %s22, 1
    %p113 = por %p111, %p112
    %p115 = scmp.ne.s32.totalorder %s100, %s114
    %p116 = scmp.eq.s32.totalorder %s22, 0
    %p117 = por %p115, %p116
    %s119 = sadd.s32 %s118, 1
    %p122 = scmp.eq.s32.totalorder %s16, 1
    %p123 = scmp.ne.s32.totalorder %s118, %s120
    %p124 = scmp.eq.s32.totalorder %s16, 0
    %p125 = por %p123, %p124
    %p126 = scmp.ne.s32.totalorder %s118, %s120
    %p127 = scmp.eq.s32.totalorder %s21, 1
    %p128 = por %p126, %p127
    %p129 = scmp.ne.s32.totalorder %s120, %s121
    %p130 = scmp.eq.s32.totalorder %s21, 0
    %p131 = por %p129, %p130
    %p132 = scmp.ne.s32.totalorder %s120, %s121
    %p133 = scmp.eq.s32.totalorder %s22, 1
    %p134 = por %p132, %p133
    %p136 = scmp.ne.s32.totalorder %s121, %s135
    %p137 = scmp.eq.s32.totalorder %s22, 0
    %p138 = por %p136, %p137
    %s140 = sadd.s32 %s139, 1
    %p143 = scmp.eq.s32.totalorder %s16, 1
    %p144 = scmp.ne.s32.totalorder %s139, %s141
    %p145 = scmp.eq.s32.totalorder %s16, 0
    %p146 = por %p144, %p145
    %p147 = scmp.ne.s32.totalorder %s139, %s141
    %p148 = scmp.eq.s32.totalorder %s21, 1
    %p149 = por %p147, %p148
    %p150 = scmp.ne.s32.totalorder %s141, %s142
    %p151 = scmp.eq.s32.totalorder %s21, 0
    %p152 = por %p150, %p151
    %p153 = scmp.ne.s32.totalorder %s141, %s142
    %p154 = scmp.eq.s32.totalorder %s22, 1
    %p155 = por %p153, %p154
    %p157 = scmp.ne.s32.totalorder %s142, %s156
    %p158 = scmp.eq.s32.totalorder %s22, 0
    %p159 = por %p157, %p158
    %s161 = sadd.s32 %s160, 1
    %p164 = scmp.eq.s32.totalorder %s16, 1
    %p165 = scmp.ne.s32.totalorder %s160, %s162
    %p166 = scmp.eq.s32.totalorder %s16, 0
    %p167 = por %p165, %p166
    %p168 = scmp.ne.s32.totalorder %s160, %s162
    %p169 = scmp.eq.s32.totalorder %s21, 1
    %p170 = por %p168, %p169
    %p171 = scmp.ne.s32.totalorder %s162, %s163
    %p172 = scmp.eq.s32.totalorder %s21, 0
    %p173 = por %p171, %p172
    %p174 = scmp.ne.s32.totalorder %s162, %s163
    %p175 = scmp.eq.s32.totalorder %s22, 1
    %p176 = por %p174, %p175
    %p178 = scmp.ne.s32.totalorder %s163, %s177
    %p179 = scmp.eq.s32.totalorder %s22, 0
    %p180 = por %p178, %p179
    %s182 = sadd.s32 %s181, 1
    %p185 = scmp.eq.s32.totalorder %s16, 1
    %p186 = scmp.ne.s32.totalorder %s181, %s183
    %p187 = scmp.eq.s32.totalorder %s16, 0
    %p188 = por %p186, %p187
    %p189 = scmp.ne.s32.totalorder %s181, %s183
    %p190 = scmp.eq.s32.totalorder %s21, 1
    %p191 = por %p189, %p190
    %p192 = scmp.ne.s32.totalorder %s183, %s184
    %p193 = scmp.eq.s32.totalorder %s21, 0
    %p194 = por %p192, %p193
    %p195 = scmp.ne.s32.totalorder %s183, %s184
    %p196 = scmp.eq.s32.totalorder %s22, 1
    %p197 = por %p195, %p196
    %p199 = scmp.ne.s32.totalorder %s184, %s198
    %p200 = scmp.eq.s32.totalorder %s22, 0
    %p201 = por %p199, %p200
    %s203 = sadd.s32 %s202, 1
    %p206 = scmp.eq.s32.totalorder %s16, 1
    %p207 = scmp.ne.s32.totalorder %s202, %s204
    %p208 = scmp.eq.s32.totalorder %s16, 0
    %p209 = por %p207, %p208
    %p210 = scmp.ne.s32.totalorder %s202, %s204
    %p211 = scmp.eq.s32.totalorder %s21, 1
    %p212 = por %p210, %p211
    %p213 = scmp.ne.s32.totalorder %s204, %s205
    %p214 = scmp.eq.s32.totalorder %s21, 0
    %p215 = por %p213, %p214
    %p216 = scmp.ne.s32.totalorder %s204, %s205
    %p217 = scmp.eq.s32.totalorder %s22, 1
    %p218 = por %p216, %p217
    %p220 = scmp.ne.s32.totalorder %s205, %s219
    %p221 = scmp.eq.s32.totalorder %s22, 0
    %p222 = por %p220, %p221
    %s224 = sadd.s32 %s223, 1
    %p227 = scmp.eq.s32.totalorder %s16, 1
    %p228 = scmp.ne.s32.totalorder %s223, %s225
    %p229 = scmp.eq.s32.totalorder %s16, 0
    %p230 = por %p228, %p229
    %p231 = scmp.ne.s32.totalorder %s223, %s225
    %p232 = scmp.eq.s32.totalorder %s21, 1
    %p233 = por %p231, %p232
    %p234 = scmp.ne.s32.totalorder %s225, %s226
    %p235 = scmp.eq.s32.totalorder %s21, 0
    %p236 = por %p234, %p235
    %p237 = scmp.ne.s32.totalorder %s225, %s226
    %p238 = scmp.eq.s32.totalorder %s22, 1
    %p239 = por %p237, %p238
    %p241 = scmp.ne.s32.totalorder %s226, %s240
    %p242 = scmp.eq.s32.totalorder %s22, 0
    %p243 = por %p241, %p242
    %s244 = ssub.s32 %s16, %s23
    %p245 = scmp.eq.s32.totalorder %s244, 0
    %s247 = sadd.s32 %s246, 1
    %s248 = scalar_select %p245, %s246, %s247
    %p251 = pneg %p245
    %p252 = scmp.eq.s32.totalorder %s16, 1
    %p253 = por %p251, %p252
    %p254 = scmp.ne.s32.totalorder %s246, %s249
    %p255 = scmp.eq.s32.totalorder %s16, 0
    %p256 = por %p254, %p255
    %p257 = scmp.ne.s32.totalorder %s246, %s249
    %p258 = scmp.eq.s32.totalorder %s21, 1
    %p259 = por %p257, %p258
    %p260 = scmp.ne.s32.totalorder %s249, %s250
    %p261 = scmp.eq.s32.totalorder %s21, 0
    %p262 = por %p260, %p261
    %p263 = scmp.ne.s32.totalorder %s249, %s250
    %p264 = scmp.eq.s32.totalorder %s22, 1
    %p265 = por %p263, %p264
    %p267 = scmp.ne.s32.totalorder %s250, %s266
    %p268 = scmp.eq.s32.totalorder %s22, 0
    %p269 = por %p267, %p268
    %p270 = scmp.le.s32.totalorder 1, %s16
    %p271 = scmp.lt.s32.totalorder %s16, 3
    %p272 = pnand %p270, %p271
    %p273 = pneg %p272
    // Predicated region
    $region9: #{transformer_decoder_forward.8} parent=5 // pred_check
      _
    $region10: #{transformer_decoder_forward.8} parent=5 // pred_check_branch
      %275 = sbr.rel (%p272) target = $region12
    $region11: #{transformer_decoder_forward.8} parent=5 // pred_region
      %s276 = ssub.s32 %s16, 1
      // Predicated region
      $region13: #{transformer_decoder_forward.8} parent=11 // pred_check
        %p277 = pneg %p89
      $region14: #{transformer_decoder_forward.8} parent=11 // pred_check_branch
        %279 = sbr.rel (%p277) target = $region16
      $region15: #{transformer_decoder_forward.8} parent=11 // pred_region
        _
      $region16: #{transformer_decoder_forward.8} parent=11 // pred_fallthru
        _
      // Predicated region
      $region17: #{transformer_decoder_forward.8} parent=11 // pred_check
        %p280 = pneg %p110
      $region18: #{transformer_decoder_forward.8} parent=11 // pred_check_branch
        %282 = sbr.rel (%p280) target = $region20
      $region19: #{transformer_decoder_forward.8} parent=11 // pred_region
        _
      $region20: #{transformer_decoder_forward.8} parent=11 // pred_fallthru
        _
      // Predicated region
      $region21: #{transformer_decoder_forward.8} parent=11 // pred_check
        %p283 = pneg %p131
      $region22: #{transformer_decoder_forward.8} parent=11 // pred_check_branch
        %285 = sbr.rel (%p283) target = $region24
      $region23: #{transformer_decoder_forward.8} parent=11 // pred_region
        _
      $region24: #{transformer_decoder_forward.8} parent=11 // pred_fallthru
        _
      // Predicated region
      $region25: #{transformer_decoder_forward.8} parent=11 // pred_check
        %p286 = pneg %p152
      $region26: #{transformer_decoder_forward.8} parent=11 // pred_check_branch
        %288 = sbr.rel (%p286) target = $region28
      $region27: #{transformer_decoder_forward.8} parent=11 // pred_region
        _
      $region28: #{transformer_decoder_forward.8} parent=11 // pred_fallthru
        _
      // Predicated region
      $region29: #{transformer_decoder_forward.8} parent=11 // pred_check
        %p289 = pneg %p173
      $region30: #{transformer_decoder_forward.8} parent=11 // pred_check_branch
        %291 = sbr.rel (%p289) target = $region32
      $region31: #{transformer_decoder_forward.8} parent=11 // pred_region
        _
      $region32: #{transformer_decoder_forward.8} parent=11 // pred_fallthru
        _
      // Predicated region
      $region33: #{transformer_decoder_forward.8} parent=11 // pred_check
        %p292 = pneg %p194
      $region34: #{transformer_decoder_forward.8} parent=11 // pred_check_branch
        %294 = sbr.rel (%p292) target = $region36
      $region35: #{transformer_decoder_forward.8} parent=11 // pred_region
        _
      $region36: #{transformer_decoder_forward.8} parent=11 // pred_fallthru
        _
      // Predicated region
      $region37: #{transformer_decoder_forward.8} parent=11 // pred_check
        %p295 = pneg %p215
      $region38: #{transformer_decoder_forward.8} parent=11 // pred_check_branch
        %297 = sbr.rel (%p295) target = $region40
      $region39: #{transformer_decoder_forward.8} parent=11 // pred_region
        _
      $region40: #{transformer_decoder_forward.8} parent=11 // pred_fallthru
        _
      // Predicated region
      $region41: #{transformer_decoder_forward.8} parent=11 // pred_check
        %p298 = pneg %p236
      $region42: #{transformer_decoder_forward.8} parent=11 // pred_check_branch
        %300 = sbr.rel (%p298) target = $region44
      $region43: #{transformer_decoder_forward.8} parent=11 // pred_region
        _
      $region44: #{transformer_decoder_forward.8} parent=11 // pred_fallthru
        _
    $region12: #{transformer_decoder_forward.8} parent=5 // pred_fallthru
      _
    %p301 = scmp.lt.s32.totalorder %s16, 2
    // Predicated region
    $region45: #{transformer_decoder_forward.8} parent=5 // pred_check
      %p302 = pneg %p301
    $region46: #{transformer_decoder_forward.8} parent=5 // pred_check_branch
      %304 = sbr.rel (%p302) target = $region48
    $region47: #{transformer_decoder_forward.8} parent=5 // pred_region
      // Predicated region
      $region49: #{transformer_decoder_forward.8} parent=47 // pred_check
        %p305 = pneg %p36
      $region50: #{transformer_decoder_forward.8} parent=47 // pred_check_branch
        %307 = sbr.rel (%p305) target = $region52
      $region51: #{transformer_decoder_forward.8} parent=47 // pred_region
        %p308 = scmp.lt.s32.totalorder %s16, 1
        %s309 = scalar_select %p308, %s16, 1
        %s310 = smul.addr %s309, 8
        %s311 = scalar_lea.vmem %s0, %s310
      $region52: #{transformer_decoder_forward.8} parent=47 // pred_fallthru
        _
      // Predicated region
      $region53: #{transformer_decoder_forward.8} parent=47 // pred_check
        %p312 = pneg %p62
      $region54: #{transformer_decoder_forward.8} parent=47 // pred_check_branch
        %314 = sbr.rel (%p312) target = $region56
      $region55: #{transformer_decoder_forward.8} parent=47 // pred_region
        %p315 = scmp.lt.s32.totalorder %s16, 1
        %s316 = scalar_select %p315, %s16, 1
        %s317 = smul.addr %s316, 2
        %s318 = smul.addr %s317, 8
        %s319 = scalar_lea.vmem %s1, %s318
      $region56: #{transformer_decoder_forward.8} parent=47 // pred_fallthru
        _
    $region48: #{transformer_decoder_forward.8} parent=5 // pred_fallthru
      _
    %p320 = scmp.le.s32.totalorder 1, %s16
    %p321 = scmp.lt.s32.totalorder %s16, 3
    %p322 = pnand %p320, %p321
    %p323 = pneg %p322
    // Predicated region
    $region57: #{transformer_decoder_forward.8} parent=5 // pred_check
      _
    $region58: #{transformer_decoder_forward.8} parent=5 // pred_check_branch
      %325 = sbr.rel (%p322) target = $region60
    $region59: #{transformer_decoder_forward.8} parent=5 // pred_region
      %s326 = ssub.s32 %s16, 1
      %p327 = scmp.lt.s32.totalorder %s21, 1
      %s328 = scalar_select %p327, %s21, 1
      %s329 = smul.addr %s328, 8
      %s330 = scalar_lea.vmem %s0, %s329
      %p331 = pneg %p42
      %p332 = pneg %p39
      %p333 = scmp.lt.s32.totalorder %s21, 1
      %s334 = scalar_select %p333, %s21, 1
      %s335 = smul.addr %s334, 2
      %s336 = smul.addr %s335, 8
      %s337 = scalar_lea.vmem %s1, %s336
      %p338 = pneg %p68
      %p339 = pneg %p65
      %p340 = pneg %p89
      %p341 = pneg %p86
      %p342 = pneg %p110
      %p343 = pneg %p107
      %p344 = pneg %p131
      %p345 = pneg %p128
      %p346 = pneg %p152
      %p347 = pneg %p149
      %p348 = pneg %p173
      %p349 = pneg %p170
      %p350 = pneg %p194
      %p351 = pneg %p191
      %p352 = pneg %p215
      %p353 = pneg %p212
      %p354 = pneg %p236
      %p355 = pneg %p233
      %p356 = pneg %p262
      %p357 = pneg %p259
      %p358 = scmp.lt.s32.totalorder %s21, 1
      %s359 = scalar_select %p358, %s21, 1
      %s360 = smul.addr %s359, 8
      %s361 = scalar_lea.vmem %s10, %s360
      %p362 = scmp.lt.s32.totalorder %s21, 1
      %s363 = scalar_select %p362, %s21, 1
      %s364 = smul.addr %s363, 8
      %s365 = scalar_lea.vmem %s0, %s364
      %p366 = scmp.lt.s32.totalorder %s21, 1
      %s367 = scalar_select %p366, %s21, 1
      %s368 = smul.addr %s367, 2
      %s369 = smul.addr %s368, 8
      %s370 = scalar_lea.vmem %s1, %s369
      %p371 = scmp.lt.s32.totalorder %s21, 1
      %s372 = scalar_select %p371, %s21, 1
      %s373 = smul.addr %s372, 8
      %s374 = scalar_lea.vmem %s10, %s373
      %v376 = vld [vmem:[%s365] sm:$0xff]
      %v377 = vld [vmem:[%s370] sm:$0xff]
      %v378 = vld [vmem:[%s370 + $0x8] sm:$0xff]
      %v379 = vpack.c.bf16 %v376, %v376
      %v380 = vld [vmem:[%s2] sm:$0xf]
      %v381 = vld [vmem:[%s2 + $0x4] sm:$0xf]
      %v382 = vld [vmem:[%s2 + $0x8] sm:$0xf]
      %v383 = vld [vmem:[%s2 + $0xc] sm:$0xf]
      %v384 = vld [vmem:[%s3] sm:$0x1]
      %v386 = vlaneseq
      %v387 = vshrl.u32 %v386, 7
      %v388 = vsub.s32 0, %v387
      %v389 = vrot.slane %v384, %v388
      %v395 = vunpack.c.l.b16 %v380
      %v396 = vunpack.c.l.b16 %v381
      %v397 = vunpack.c.l.b16 %v382
      %v398 = vunpack.c.l.b16 %v383
      %v399 = vpack.c.b16 %v396, %v395
      %v400 = vpack.c.b16 %v398, %v397
      %vm403 = vcmask 261120
      %v405 = vsel %vm403, %v379, 0
      %407 = vmatprep.subr.bf16.mxu0 0
      %408 = vmatpush1.bf16.msra.mxu0 %v399
      %409 = vmatprep.subr.bf16.mxu0 0
      %410 = vmatpush1.bf16.msra.mxu0 %v400
      %411 = vmatprep.subr.bf16.mxu0 0
      %412 = vmatpush1.bf16.msra.mxu0 0
      %413 = vmatprep.subr.bf16.mxu0 0
      %414 = vmatpush1.bf16.msra.mxu0 0
      %415 = vmatprep.subr.bf16.mxu0 0
      %416 = vmatpush1.bf16.msra.mxu0 0
      %417 = vmatprep.subr.bf16.mxu0 0
      %418 = vmatpush1.bf16.msra.mxu0 0
      %419 = vmatprep.subr.bf16.mxu0 0
      %420 = vmatpush1.bf16.msra.mxu0 0
      %421 = vmatprep.subr.bf16.mxu0 0
      %422 = vmatpush1.bf16.msra.mxu0 0
      %423 = vmatprep.subr.bf16.mxu0 0
      %424 = vmatpush1.bf16.msra.mxu0 0
      %425 = vmatprep.subr.bf16.mxu0 0
      %426 = vmatpush1.bf16.msra.mxu0 0
      %427 = vmatprep.subr.bf16.mxu0 0
      %428 = vmatpush1.bf16.msra.mxu0 0
      %429 = vmatprep.subr.bf16.mxu0 0
      %430 = vmatpush1.bf16.msra.mxu0 0
      %431 = vmatprep.subr.bf16.mxu0 0
      %432 = vmatpush1.bf16.msra.mxu0 0
      %433 = vmatprep.subr.bf16.mxu0 0
      %434 = vmatpush1.bf16.msra.mxu0 0
      %435 = vmatprep.subr.bf16.mxu0 0
      %436 = vmatpush1.bf16.msra.mxu0 0
      %437 = vmatprep.subr.bf16.mxu0 0
      %438 = vmatpush1.bf16.msra.mxu0 0
      %439 = vmatprep.mubr.bf16.mxu0 0
      %440 = vmatmul.mubr.bf16.gmra.mrb[0].mxu0 %v405
      %v441 = vpop.f32.mrb[0].mxu0
      %v442 = vadd.f32 %v389, %v441
      %v443 = vpop.f32.mrb[0].mxu0
      %v444 = vpop.f32.mrb[0].mxu0
      %v445 = vpop.f32.mrb[0].mxu0
      %446 = vdwg.mxu0
      %v447 = vpack.c.bf16 %v378, %v377
      %v448 = vld [vmem:[%s4] sm:$0xf]
      %v449 = vld [vmem:[%s4 + $0x4] sm:$0xf]
      %v450 = vld [vmem:[%s4 + $0x8] sm:$0xf]
      %v451 = vld [vmem:[%s4 + $0xc] sm:$0xf]
      %v452 = vld [vmem:[%s5] sm:$0x1]
      %v454 = vlaneseq
      %v455 = vshrl.u32 %v454, 7
      %v456 = vsub.s32 0, %v455
      %v457 = vrot.slane %v452, %v456
      %v463 = vunpack.c.l.b16 %v448
      %v464 = vunpack.c.l.b16 %v449
      %v465 = vunpack.c.l.b16 %v450
      %v466 = vunpack.c.l.b16 %v451
      %v467 = vpack.c.b16 %v464, %v463
      %v468 = vpack.c.b16 %v466, %v465
      %v472 = vsel %vm403, %v447, 0
      %474 = vmatprep.subr.bf16.mxu0 0
      %475 = vmatpush1.bf16.msra.mxu0 %v467
      %476 = vmatprep.subr.bf16.mxu0 0
      %477 = vmatpush1.bf16.msra.mxu0 %v468
      %478 = vmatprep.subr.bf16.mxu0 0
      %479 = vmatpush1.bf16.msra.mxu0 0
      %480 = vmatprep.subr.bf16.mxu0 0
      %481 = vmatpush1.bf16.msra.mxu0 0
      %482 = vmatprep.subr.bf16.mxu0 0
      %483 = vmatpush1.bf16.msra.mxu0 0
      %484 = vmatprep.subr.bf16.mxu0 0
      %485 = vmatpush1.bf16.msra.mxu0 0
      %486 = vmatprep.subr.bf16.mxu0 0
      %487 = vmatpush1.bf16.msra.mxu0 0
      %488 = vmatprep.subr.bf16.mxu0 0
      %489 = vmatpush1.bf16.msra.mxu0 0
      %490 = vmatprep.subr.bf16.mxu0 0
      %491 = vmatpush1.bf16.msra.mxu0 0
      %492 = vmatprep.subr.bf16.mxu0 0
      %493 = vmatpush1.bf16.msra.mxu0 0
      %494 = vmatprep.subr.bf16.mxu0 0
      %495 = vmatpush1.bf16.msra.mxu0 0
      %496 = vmatprep.subr.bf16.mxu0 0
      %497 = vmatpush1.bf16.msra.mxu0 0
      %498 = vmatprep.subr.bf16.mxu0 0
      %499 = vmatpush1.bf16.msra.mxu0 0
      %500 = vmatprep.subr.bf16.mxu0 0
      %501 = vmatpush1.bf16.msra.mxu0 0
      %502 = vmatprep.subr.bf16.mxu0 0
      %503 = vmatpush1.bf16.msra.mxu0 0
      %504 = vmatprep.subr.bf16.mxu0 0
      %505 = vmatpush1.bf16.msra.mxu0 0
      %506 = vmatprep.mubr.bf16.mxu0 0
      %507 = vmatmul.mubr.bf16.gmra.mrb[0].mxu0 %v472
      %v508 = vpop.f32.mrb[0].mxu0
      %v509 = vadd.f32 %v457, %v508
      %v510 = vpop.f32.mrb[0].mxu0
      %v511 = vpop.f32.mrb[0].mxu0
      %v512 = vadd.f32 %v457, %v511
      %v513 = vpop.f32.mrb[0].mxu0
      %514 = vdwg.mxu0
      %v515 = vlaneseq
      %v516 = vand.u32 %v515, 127
      %vm517 = vcmp.lt.s32.totalorder %v516, 10
      %v518 = vsel %vm517, 0.0, -1e+30
      %v519 = vmul.f32 %v442, 0.35355338
      %v520 = vpack.c.bf16 %v519, %v519
      %v521 = vpack.c.bf16 %v512, %v509
      %vm522 = vcmask 64512
      %v524 = vsel %vm522, %v520, 0
      %v527 = vsel %vm522, %v521, 0
      %529 = vmatprep.subr.bf16.mxu0 0
      %530 = vmatpush1.bf16.xpose.msra.mxu0 %v527
      %531 = vmatprep.subr.bf16.mxu0 0
      %532 = vmatpush1.bf16.xpose.msra.mxu0 0
      %533 = vmatprep.subr.bf16.mxu0 0
      %534 = vmatpush1.bf16.xpose.msra.mxu0 0
      %535 = vmatprep.subr.bf16.mxu0 0
      %536 = vmatpush1.bf16.xpose.msra.mxu0 0
      %537 = vmatprep.subr.bf16.mxu0 0
      %538 = vmatpush1.bf16.xpose.msra.mxu0 0
      %539 = vmatprep.subr.bf16.mxu0 0
      %540 = vmatpush1.bf16.xpose.msra.mxu0 0
      %541 = vmatprep.subr.bf16.mxu0 0
      %542 = vmatpush1.bf16.xpose.msra.mxu0 0
      %543 = vmatprep.subr.bf16.mxu0 0
      %544 = vmatpush1.bf16.xpose.msra.mxu0 0
      %545 = vmatprep.subr.bf16.mxu0 0
      %546 = vmatpush1.bf16.xpose.msra.mxu0 0
      %547 = vmatprep.subr.bf16.mxu0 0
      %548 = vmatpush1.bf16.xpose.msra.mxu0 0
      %549 = vmatprep.subr.bf16.mxu0 0
      %550 = vmatpush1.bf16.xpose.msra.mxu0 0
      %551 = vmatprep.subr.bf16.mxu0 0
      %552 = vmatpush1.bf16.xpose.msra.mxu0 0
      %553 = vmatprep.subr.bf16.mxu0 0
      %554 = vmatpush1.bf16.xpose.msra.mxu0 0
      %555 = vmatprep.subr.bf16.mxu0 0
      %556 = vmatpush1.bf16.xpose.msra.mxu0 0
      %557 = vmatprep.subr.bf16.mxu0 0
      %558 = vmatpush1.bf16.xpose.msra.mxu0 0
      %559 = vmatprep.subr.bf16.mxu0 0
      %560 = vmatpush1.bf16.xpose.msra.mxu0 0
      %561 = vmatprep.mubr.bf16.mxu0 0
      %562 = vmatmul.mubr.bf16.gmra.mrb[0].mxu0 %v524
      %v563 = vpop.f32.mrb[0].mxu0
      %v564 = vadd.f32 %v518, %v563
      %v565 = vpop.f32.mrb[0].mxu0
      %v566 = vpop.f32.mrb[0].mxu0
      %v567 = vpop.f32.mrb[0].mxu0
      %568 = vdwg.mxu0
      %vm569 = vcmask 130048
      %v570 = vsel %vm569, %v564, -inf
      %571 = vmax.xlane.f32.xlu0 %v570
      %v572 = vpop.xlane.xlu0 %571
      %v573 = vsub.f32 %v564, %v572
      %v574 = vmul.f32 %v573, 1.442695
      %v575 = vpow.pop %v574
      %v576 = vsel %vm569, %v575, 0.0
      %577 = vadd.xlane.f32.xlu0 %v576
      %v578 = vpop.xlane.xlu0 %577
      %v579 = vpack.c.bf16 %v575, %v575
      %581 = vrot.lane.b32.xlu0 %v521, 96
      %v582 = vpop.permute.xlu0 %581
      %v585 = vsel %vm569, %v579, 0
      %587 = vmatprep.subr.bf16.mxu0 0
      %588 = vmatpush1.bf16.msra.mxu0 %v582
      %589 = vmatprep.subr.bf16.mxu0 0
      %590 = vmatpush1.bf16.msra.mxu0 0
      %591 = vmatprep.subr.bf16.mxu0 0
      %592 = vmatpush1.bf16.msra.mxu0 0
      %593 = vmatprep.subr.bf16.mxu0 0
      %594 = vmatpush1.bf16.msra.mxu0 0
      %595 = vmatprep.subr.bf16.mxu0 0
      %596 = vmatpush1.bf16.msra.mxu0 0
      %597 = vmatprep.subr.bf16.mxu0 0
      %598 = vmatpush1.bf16.msra.mxu0 0
      %599 = vmatprep.subr.bf16.mxu0 0
      %600 = vmatpush1.bf16.msra.mxu0 0
      %601 = vmatprep.subr.bf16.mxu0 0
      %602 = vmatpush1.bf16.msra.mxu0 0
      %603 = vmatprep.subr.bf16.mxu0 0
      %604 = vmatpush1.bf16.msra.mxu0 0
      %605 = vmatprep.subr.bf16.mxu0 0
      %606 = vmatpush1.bf16.msra.mxu0 0
      %607 = vmatprep.subr.bf16.mxu0 0
      %608 = vmatpush1.bf16.msra.mxu0 0
      %609 = vmatprep.subr.bf16.mxu0 0
      %610 = vmatpush1.bf16.msra.mxu0 0
      %611 = vmatprep.subr.bf16.mxu0 0
      %612 = vmatpush1.bf16.msra.mxu0 0
      %613 = vmatprep.subr.bf16.mxu0 0
      %614 = vmatpush1.bf16.msra.mxu0 0
      %615 = vmatprep.subr.bf16.mxu0 0
      %616 = vmatpush1.bf16.msra.mxu0 0
      %617 = vmatprep.subr.bf16.mxu0 0
      %618 = vmatpush1.bf16.msra.mxu0 0
      %619 = vmatprep.mubr.bf16.mxu0 0
      %620 = vmatmul.mubr.bf16.gmra.mrb[0].mxu0 %v585
      %v621 = vpop.f32.mrb[0].mxu0
      %v622 = vadd.f32 0.0, %v621
      %v623 = vpop.f32.mrb[0].mxu0
      %v624 = vpop.f32.mrb[0].mxu0
      %v625 = vpop.f32.mrb[0].mxu0
      %626 = vdwg.mxu0
      %v627 = vrcp.pop %v578
      %v628 = vmul.f32 %v622, %v627
      %630 = vrot.lane.b32.xlu0 %v520, 120
      %v631 = vpop.permute.xlu0 %630
      %632 = vrot.lane.b32.xlu0 %v521, 120
      %v633 = vpop.permute.xlu0 %632
      %v635 = vsel %vm522, %v631, 0
      %v638 = vsel %vm522, %v633, 0
      %640 = vmatprep.subr.bf16.mxu0 0
      %641 = vmatpush1.bf16.xpose.msra.mxu0 %v638
      %642 = vmatprep.subr.bf16.mxu0 0
      %643 = vmatpush1.bf16.xpose.msra.mxu0 0
      %644 = vmatprep.subr.bf16.mxu0 0
      %645 = vmatpush1.bf16.xpose.msra.mxu0 0
      %646 = vmatprep.subr.bf16.mxu0 0
      %647 = vmatpush1.bf16.xpose.msra.mxu0 0
      %648 = vmatprep.subr.bf16.mxu0 0
      %649 = vmatpush1.bf16.xpose.msra.mxu0 0
      %650 = vmatprep.subr.bf16.mxu0 0
      %651 = vmatpush1.bf16.xpose.msra.mxu0 0
      %652 = vmatprep.subr.bf16.mxu0 0
      %653 = vmatpush1.bf16.xpose.msra.mxu0 0
      %654 = vmatprep.subr.bf16.mxu0 0
      %655 = vmatpush1.bf16.xpose.msra.mxu0 0
      %656 = vmatprep.subr.bf16.mxu0 0
      %657 = vmatpush1.bf16.xpose.msra.mxu0 0
      %658 = vmatprep.subr.bf16.mxu0 0
      %659 = vmatpush1.bf16.xpose.msra.mxu0 0
      %660 = vmatprep.subr.bf16.mxu0 0
      %661 = vmatpush1.bf16.xpose.msra.mxu0 0
      %662 = vmatprep.subr.bf16.mxu0 0
      %663 = vmatpush1.bf16.xpose.msra.mxu0 0
      %664 = vmatprep.subr.bf16.mxu0 0
      %665 = vmatpush1.bf16.xpose.msra.mxu0 0
      %666 = vmatprep.subr.bf16.mxu0 0
      %667 = vmatpush1.bf16.xpose.msra.mxu0 0
      %668 = vmatprep.subr.bf16.mxu0 0
      %669 = vmatpush1.bf16.xpose.msra.mxu0 0
      %670 = vmatprep.subr.bf16.mxu0 0
      %671 = vmatpush1.bf16.xpose.msra.mxu0 0
      %672 = vmatprep.mubr.bf16.mxu0 0
      %673 = vmatmul.mubr.bf16.gmra.mrb[0].mxu0 %v635
      %v674 = vpop.f32.mrb[0].mxu0
      %v675 = vadd.f32 %v518, %v674
      %v676 = vpop.f32.mrb[0].mxu0
      %v677 = vpop.f32.mrb[0].mxu0
      %v678 = vpop.f32.mrb[0].mxu0
      %679 = vdwg.mxu0
      %v680 = vsel %vm569, %v675, -inf
      %681 = vmax.xlane.f32.xlu0 %v680
      %v682 = vpop.xlane.xlu0 %681
      %v683 = vsub.f32 %v675, %v682
      %v684 = vmul.f32 %v683, 1.442695
      %v685 = vpow.pop %v684
      %v686 = vsel %vm569, %v685, 0.0
      %687 = vadd.xlane.f32.xlu0 %v686
      %v688 = vpop.xlane.xlu0 %687
      %v689 = vpack.c.bf16 %v685, %v685
      %690 = vrot.lane.b32.xlu0 %v521, 88
      %v691 = vpop.permute.xlu0 %690
      %v694 = vsel %vm569, %v689, 0
      %696 = vmatprep.subr.bf16.mxu0 0
      %697 = vmatpush1.bf16.msra.mxu0 %v691
      %698 = vmatprep.subr.bf16.mxu0 0
      %699 = vmatpush1.bf16.msra.mxu0 0
      %700 = vmatprep.subr.bf16.mxu0 0
      %701 = vmatpush1.bf16.msra.mxu0 0
      %702 = vmatprep.subr.bf16.mxu0 0
      %703 = vmatpush1.bf16.msra.mxu0 0
      %704 = vmatprep.subr.bf16.mxu0 0
      %705 = vmatpush1.bf16.msra.mxu0 0
      %706 = vmatprep.subr.bf16.mxu0 0
      %707 = vmatpush1.bf16.msra.mxu0 0
      %708 = vmatprep.subr.bf16.mxu0 0
      %709 = vmatpush1.bf16.msra.mxu0 0
      %710 = vmatprep.subr.bf16.mxu0 0
      %711 = vmatpush1.bf16.msra.mxu0 0
      %712 = vmatprep.subr.bf16.mxu0 0
      %713 = vmatpush1.bf16.msra.mxu0 0
      %714 = vmatprep.subr.bf16.mxu0 0
      %715 = vmatpush1.bf16.msra.mxu0 0
      %716 = vmatprep.subr.bf16.mxu0 0
      %717 = vmatpush1.bf16.msra.mxu0 0
      %718 = vmatprep.subr.bf16.mxu0 0
      %719 = vmatpush1.bf16.msra.mxu0 0
      %720 = vmatprep.subr.bf16.mxu0 0
      %721 = vmatpush1.bf16.msra.mxu0 0
      %722 = vmatprep.subr.bf16.mxu0 0
      %723 = vmatpush1.bf16.msra.mxu0 0
      %724 = vmatprep.subr.bf16.mxu0 0
      %725 = vmatpush1.bf16.msra.mxu0 0
      %726 = vmatprep.subr.bf16.mxu0 0
      %727 = vmatpush1.bf16.msra.mxu0 0
      %728 = vmatprep.mubr.bf16.mxu0 0
      %729 = vmatmul.mubr.bf16.gmra.mrb[0].mxu0 %v694
      %v730 = vpop.f32.mrb[0].mxu0
      %v731 = vadd.f32 0.0, %v730
      %v732 = vpop.f32.mrb[0].mxu0
      %v733 = vpop.f32.mrb[0].mxu0
      %v734 = vpop.f32.mrb[0].mxu0
      %735 = vdwg.mxu0
      %v736 = vrcp.pop %v688
      %v737 = vmul.f32 %v731, %v736
      %738 = vrot.lane.b32.xlu0 %v520, 112
      %v739 = vpop.permute.xlu0 %738
      %740 = vrot.lane.b32.xlu0 %v521, 112
      %v741 = vpop.permute.xlu0 %740
      %v743 = vsel %vm522, %v739, 0
      %v746 = vsel %vm522, %v741, 0
      %748 = vmatprep.subr.bf16.mxu0 0
      %749 = vmatpush1.bf16.xpose.msra.mxu0 %v746
      %750 = vmatprep.subr.bf16.mxu0 0
      %751 = vmatpush1.bf16.xpose.msra.mxu0 0
      %752 = vmatprep.subr.bf16.mxu0 0
      %753 = vmatpush1.bf16.xpose.msra.mxu0 0
      %754 = vmatprep.subr.bf16.mxu0 0
      %755 = vmatpush1.bf16.xpose.msra.mxu0 0
      %756 = vmatprep.subr.bf16.mxu0 0
      %757 = vmatpush1.bf16.xpose.msra.mxu0 0
      %758 = vmatprep.subr.bf16.mxu0 0
      %759 = vmatpush1.bf16.xpose.msra.mxu0 0
      %760 = vmatprep.subr.bf16.mxu0 0
      %761 = vmatpush1.bf16.xpose.msra.mxu0 0
      %762 = vmatprep.subr.bf16.mxu0 0
      %763 = vmatpush1.bf16.xpose.msra.mxu0 0
      %764 = vmatprep.subr.bf16.mxu0 0
      %765 = vmatpush1.bf16.xpose.msra.mxu0 0
      %766 = vmatprep.subr.bf16.mxu0 0
      %767 = vmatpush1.bf16.xpose.msra.mxu0 0
      %768 = vmatprep.subr.bf16.mxu0 0
      %769 = vmatpush1.bf16.xpose.msra.mxu0 0
      %770 = vmatprep.subr.bf16.mxu0 0
      %771 = vmatpush1.bf16.xpose.msra.mxu0 0
      %772 = vmatprep.subr.bf16.mxu0 0
      %773 = vmatpush1.bf16.xpose.msra.mxu0 0
      %774 = vmatprep.subr.bf16.mxu0 0
      %775 = vmatpush1.bf16.xpose.msra.mxu0 0
      %776 = vmatprep.subr.bf16.mxu0 0
      %777 = vmatpush1.bf16.xpose.msra.mxu0 0
      %778 = vmatprep.subr.bf16.mxu0 0
      %779 = vmatpush1.bf16.xpose.msra.mxu0 0
      %780 = vmatprep.mubr.bf16.mxu0 0
      %781 = vmatmul.mubr.bf16.gmra.mrb[0].mxu0 %v743
      %v782 = vpop.f32.mrb[0].mxu0
      %v783 = vadd.f32 %v518, %v782
      %v784 = vpop.f32.mrb[0].mxu0
      %v785 = vpop.f32.mrb[0].mxu0
      %v786 = vpop.f32.mrb[0].mxu0
      %787 = vdwg.mxu0
      %v788 = vsel %vm569, %v783, -inf
      %789 = vmax.xlane.f32.xlu0 %v788
      %v790 = vpop.xlane.xlu0 %789
      %v791 = vsub.f32 %v783, %v790
      %v792 = vmul.f32 %v791, 1.442695
      %v793 = vpow.pop %v792
      %v794 = vsel %vm569, %v793, 0.0
      %795 = vadd.xlane.f32.xlu0 %v794
      %v796 = vpop.xlane.xlu0 %795
      %v797 = vpack.c.bf16 %v793, %v793
      %798 = vrot.lane.b32.xlu0 %v521, 80
      %v799 = vpop.permute.xlu0 %798
      %v802 = vsel %vm569, %v797, 0
      %804 = vmatprep.subr.bf16.mxu0 0
      %805 = vmatpush1.bf16.msra.mxu0 %v799
      %806 = vmatprep.subr.bf16.mxu0 0
      %807 = vmatpush1.bf16.msra.mxu0 0
      %808 = vmatprep.subr.bf16.mxu0 0
      %809 = vmatpush1.bf16.msra.mxu0 0
      %810 = vmatprep.subr.bf16.mxu0 0
      %811 = vmatpush1.bf16.msra.mxu0 0
      %812 = vmatprep.subr.bf16.mxu0 0
      %813 = vmatpush1.bf16.msra.mxu0 0
      %814 = vmatprep.subr.bf16.mxu0 0
      %815 = vmatpush1.bf16.msra.mxu0 0
      %816 = vmatprep.subr.bf16.mxu0 0
      %817 = vmatpush1.bf16.msra.mxu0 0
      %818 = vmatprep.subr.bf16.mxu0 0
      %819 = vmatpush1.bf16.msra.mxu0 0
      %820 = vmatprep.subr.bf16.mxu0 0
      %821 = vmatpush1.bf16.msra.mxu0 0
      %822 = vmatprep.subr.bf16.mxu0 0
      %823 = vmatpush1.bf16.msra.mxu0 0
      %824 = vmatprep.subr.bf16.mxu0 0
      %825 = vmatpush1.bf16.msra.mxu0 0
      %826 = vmatprep.subr.bf16.mxu0 0
      %827 = vmatpush1.bf16.msra.mxu0 0
      %828 = vmatprep.subr.bf16.mxu0 0
      %829 = vmatpush1.bf16.msra.mxu0 0
      %830 = vmatprep.subr.bf16.mxu0 0
      %831 = vmatpush1.bf16.msra.mxu0 0
      %832 = vmatprep.subr.bf16.mxu0 0
      %833 = vmatpush1.bf16.msra.mxu0 0
      %834 = vmatprep.subr.bf16.mxu0 0
      %835 = vmatpush1.bf16.msra.mxu0 0
      %836 = vmatprep.mubr.bf16.mxu0 0
      %837 = vmatmul.mubr.bf16.gmra.mrb[0].mxu0 %v802
      %v838 = vpop.f32.mrb[0].mxu0
      %v839 = vadd.f32 0.0, %v838
      %v840 = vpop.f32.mrb[0].mxu0
      %v841 = vpop.f32.mrb[0].mxu0
      %v842 = vpop.f32.mrb[0].mxu0
      %843 = vdwg.mxu0
      %v844 = vrcp.pop %v796
      %v845 = vmul.f32 %v839, %v844
      %846 = vrot.lane.b32.xlu0 %v520, 104
      %v847 = vpop.permute.xlu0 %846
      %848 = vrot.lane.b32.xlu0 %v521, 104
      %v849 = vpop.permute.xlu0 %848
      %v851 = vsel %vm522, %v847, 0
      %v854 = vsel %vm522, %v849, 0
      %856 = vmatprep.subr.bf16.mxu0 0
      %857 = vmatpush1.bf16.xpose.msra.mxu0 %v854
      %858 = vmatprep.subr.bf16.mxu0 0
      %859 = vmatpush1.bf16.xpose.msra.mxu0 0
      %860 = vmatprep.subr.bf16.mxu0 0
      %861 = vmatpush1.bf16.xpose.msra.mxu0 0
      %862 = vmatprep.subr.bf16.mxu0 0
      %863 = vmatpush1.bf16.xpose.msra.mxu0 0
      %864 = vmatprep.subr.bf16.mxu0 0
      %865 = vmatpush1.bf16.xpose.msra.mxu0 0
      %866 = vmatprep.subr.bf16.mxu0 0
      %867 = vmatpush1.bf16.xpose.msra.mxu0 0
      %868 = vmatprep.subr.bf16.mxu0 0
      %869 = vmatpush1.bf16.xpose.msra.mxu0 0
      %870 = vmatprep.subr.bf16.mxu0 0
      %871 = vmatpush1.bf16.xpose.msra.mxu0 0
      %872 = vmatprep.subr.bf16.mxu0 0
      %873 = vmatpush1.bf16.xpose.msra.mxu0 0
      %874 = vmatprep.subr.bf16.mxu0 0
      %875 = vmatpush1.bf16.xpose.msra.mxu0 0
      %876 = vmatprep.subr.bf16.mxu0 0
      %877 = vmatpush1.bf16.xpose.msra.mxu0 0
      %878 = vmatprep.subr.bf16.mxu0 0
      %879 = vmatpush1.bf16.xpose.msra.mxu0 0
      %880 = vmatprep.subr.bf16.mxu0 0
      %881 = vmatpush1.bf16.xpose.msra.mxu0 0
      %882 = vmatprep.subr.bf16.mxu0 0
      %883 = vmatpush1.bf16.xpose.msra.mxu0 0
      %884 = vmatprep.subr.bf16.mxu0 0
      %885 = vmatpush1.bf16.xpose.msra.mxu0 0
      %886 = vmatprep.subr.bf16.mxu0 0
      %887 = vmatpush1.bf16.xpose.msra.mxu0 0
      %888 = vmatprep.mubr.bf16.mxu0 0
      %889 = vmatmul.mubr.bf16.gmra.mrb[0].mxu0 %v851
      %v890 = vpop.f32.mrb[0].mxu0
      %v891 = vadd.f32 %v518, %v890
      %v892 = vpop.f32.mrb[0].mxu0
      %v893 = vpop.f32.mrb[0].mxu0
      %v894 = vpop.f32.mrb[0].mxu0
      %895 = vdwg.mxu0
      %v896 = vsel %vm569, %v891, -inf
      %897 = vmax.xlane.f32.xlu0 %v896
      %v898 = vpop.xlane.xlu0 %897
      %v899 = vsub.f32 %v891, %v898
      %v900 = vmul.f32 %v899, 1.442695
      %v901 = vpow.pop %v900
      %v902 = vsel %vm569, %v901, 0.0
      %903 = vadd.xlane.f32.xlu0 %v902
      %v904 = vpop.xlane.xlu0 %903
      %v905 = vpack.c.bf16 %v901, %v901
      %906 = vrot.lane.b32.xlu0 %v521, 72
      %v907 = vpop.permute.xlu0 %906
      %v910 = vsel %vm569, %v905, 0
      %912 = vmatprep.subr.bf16.mxu0 0
      %913 = vmatpush1.bf16.msra.mxu0 %v907
      %914 = vmatprep.subr.bf16.mxu0 0
      %915 = vmatpush1.bf16.msra.mxu0 0
      %916 = vmatprep.subr.bf16.mxu0 0
      %917 = vmatpush1.bf16.msra.mxu0 0
      %918 = vmatprep.subr.bf16.mxu0 0
      %919 = vmatpush1.bf16.msra.mxu0 0
      %920 = vmatprep.subr.bf16.mxu0 0
      %921 = vmatpush1.bf16.msra.mxu0 0
      %922 = vmatprep.subr.bf16.mxu0 0
      %923 = vmatpush1.bf16.msra.mxu0 0
      %924 = vmatprep.subr.bf16.mxu0 0
      %925 = vmatpush1.bf16.msra.mxu0 0
      %926 = vmatprep.subr.bf16.mxu0 0
      %927 = vmatpush1.bf16.msra.mxu0 0
      %928 = vmatprep.subr.bf16.mxu0 0
      %929 = vmatpush1.bf16.msra.mxu0 0
      %930 = vmatprep.subr.bf16.mxu0 0
      %931 = vmatpush1.bf16.msra.mxu0 0
      %932 = vmatprep.subr.bf16.mxu0 0
      %933 = vmatpush1.bf16.msra.mxu0 0
      %934 = vmatprep.subr.bf16.mxu0 0
      %935 = vmatpush1.bf16.msra.mxu0 0
      %936 = vmatprep.subr.bf16.mxu0 0
      %937 = vmatpush1.bf16.msra.mxu0 0
      %938 = vmatprep.subr.bf16.mxu0 0
      %939 = vmatpush1.bf16.msra.mxu0 0
      %940 = vmatprep.subr.bf16.mxu0 0
      %941 = vmatpush1.bf16.msra.mxu0 0
      %942 = vmatprep.subr.bf16.mxu0 0
      %943 = vmatpush1.bf16.msra.mxu0 0
      %944 = vmatprep.mubr.bf16.mxu0 0
      %945 = vmatmul.mubr.bf16.gmra.mrb[0].mxu0 %v910
      %v946 = vpop.f32.mrb[0].mxu0
      %v947 = vadd.f32 0.0, %v946
      %v948 = vpop.f32.mrb[0].mxu0
      %v949 = vpop.f32.mrb[0].mxu0
      %v950 = vpop.f32.mrb[0].mxu0
      %951 = vdwg.mxu0
      %v952 = vrcp.pop %v904
      %v953 = vmul.f32 %v947, %v952
      %955 = vrot.lane.b32.xlu0 %v737, 8
      %v956 = vpop.permute.xlu0 %955
      %959 = vrot.lane.b32.xlu0 %v845, 16
      %v960 = vpop.permute.xlu0 %959
      %963 = vrot.lane.b32.xlu0 %v953, 24
      %v964 = vpop.permute.xlu0 %963
      %v966 = vsel %vm522, %v628, %v956
      %v967 = vsel %vm569, %v966, %v960
      %vm968 = vcmask 195584
      %v969 = vsel %vm968, %v967, %v964
      %v970 = vpack.c.bf16 %v969, %v969
      %v971 = vld [vmem:[%s6] sm:$0xf]
      %v972 = vld [vmem:[%s6 + $0x4] sm:$0xf]
      %v973 = vld [vmem:[%s6 + $0x8] sm:$0xf]
      %v974 = vld [vmem:[%s6 + $0xc] sm:$0xf]
      %v975 = vld [vmem:[%s7] sm:$0x1]
      %v977 = vlaneseq
      %v978 = vshrl.u32 %v977, 7
      %v979 = vsub.s32 0, %v978
      %v980 = vrot.slane %v975, %v979
      %v986 = vunpack.c.l.b16 %v971
      %v987 = vunpack.c.l.b16 %v972
      %v988 = vunpack.c.l.b16 %v973
      %v989 = vunpack.c.l.b16 %v974
      %v990 = vpack.c.b16 %v987, %v986
      %v991 = vpack.c.b16 %v989, %v988
      %v995 = vsel %vm403, %v970, 0
      %997 = vmatprep.subr.bf16.mxu0 0
      %998 = vmatpush1.bf16.msra.mxu0 %v990
      %999 = vmatprep.subr.bf16.mxu0 0
      %1000 = vmatpush1.bf16.msra.mxu0 %v991
      %1001 = vmatprep.subr.bf16.mxu0 0
      %1002 = vmatpush1.bf16.msra.mxu0 0
      %1003 = vmatprep.subr.bf16.mxu0 0
      %1004 = vmatpush1.bf16.msra.mxu0 0
      %1005 = vmatprep.subr.bf16.mxu0 0
      %1006 = vmatpush1.bf16.msra.mxu0 0
      %1007 = vmatprep.subr.bf16.mxu0 0
      %1008 = vmatpush1.bf16.msra.mxu0 0
      %1009 = vmatprep.subr.bf16.mxu0 0
      %1010 = vmatpush1.bf16.msra.mxu0 0
      %1011 = vmatprep.subr.bf16.mxu0 0
      %1012 = vmatpush1.bf16.msra.mxu0 0
      %1013 = vmatprep.subr.bf16.mxu0 0
      %1014 = vmatpush1.bf16.msra.mxu0 0
      %1015 = vmatprep.subr.bf16.mxu0 0
      %1016 = vmatpush1.bf16.msra.mxu0 0
      %1017 = vmatprep.subr.bf16.mxu0 0
      %1018 = vmatpush1.bf16.msra.mxu0 0
      %1019 = vmatprep.subr.bf16.mxu0 0
      %1020 = vmatpush1.bf16.msra.mxu0 0
      %1021 = vmatprep.subr.bf16.mxu0 0
      %1022 = vmatpush1.bf16.msra.mxu0 0
      %1023 = vmatprep.subr.bf16.mxu0 0
      %1024 = vmatpush1.bf16.msra.mxu0 0
      %1025 = vmatprep.subr.bf16.mxu0 0
      %1026 = vmatpush1.bf16.msra.mxu0 0
      %1027 = vmatprep.subr.bf16.mxu0 0
      %1028 = vmatpush1.bf16.msra.mxu0 0
      %1029 = vmatprep.mubr.bf16.mxu0 0
      %1030 = vmatmul.mubr.bf16.gmra.mrb[0].mxu0 %v995
      %v1031 = vpop.f32.mrb[0].mxu0
      %v1032 = vadd.f32 %v980, %v1031
      %v1033 = vpop.f32.mrb[0].mxu0
      %v1034 = vpop.f32.mrb[0].mxu0
      %v1035 = vpop.f32.mrb[0].mxu0
      %1036 = vdwg.mxu0
      %v1037 = vadd.f32 %v1032, %v376
      %v1038 = vld [vmem:[%s8] sm:$0x1]
      %v1039 = vld [vmem:[%s9] sm:$0x1]
      %v1040 = vsel %vm403, %v1037, 0.0
      %1041 = vadd.xlane.f32.xlu0 %v1040
      %v1042 = vpop.xlane.xlu0 %1041
      %v1043 = vrcp.pop 32.0
      %v1044 = vmul.f32 %v1042, %v1043
      %v1045 = vsub.f32 %v1037, %v1044
      %v1046 = vmul.f32 %v1045, %v1045
      %v1047 = vsel %vm403, %v1046, 0.0
      %1048 = vadd.xlane.f32.xlu0 %v1047
      %v1049 = vpop.xlane.xlu0 %1048
      %v1050 = vmul.f32 %v1049, %v1043
      %v1051 = vadd.f32 %v1050, 1e-05
      %v1052 = vrsqrt.pop %v1051
      %v1053 = vmul.f32 %v1045, %v1052
      %v1055 = vlaneseq
      %v1056 = vshrl.u32 %v1055, 7
      %v1057 = vsub.s32 0, %v1056
      %v1058 = vrot.slane %v1038, %v1057
      %v1060 = vmul.f32 %v1053, %v1058
      %v1062 = vlaneseq
      %v1063 = vshrl.u32 %v1062, 7
      %v1064 = vsub.s32 0, %v1063
      %v1065 = vrot.slane %v1039, %v1064
      %v1067 = vadd.f32 %v1060, %v1065
      %1068 = vst.msk [vmem:[%s374] sm:$0xff] %vm403, %v1067
      %p1069 = scmp.lt.s32.totalorder %s21, 1
      %s1070 = scalar_select %p1069, %s21, 1
      %s1071 = smul.addr %s1070, 8
      %s1072 = scalar_lea.vmem %s10, %s1071
      // Predicated region
      $region61: #{transformer_decoder_forward.8} parent=59 // pred_check
        %p1073 = pneg %p259
      $region62: #{transformer_decoder_forward.8} parent=59 // pred_check_branch
        %1075 = sbr.rel (%p1073) target = $region64
      $region63: #{transformer_decoder_forward.8} parent=59 // pred_region
        _
      $region64: #{transformer_decoder_forward.8} parent=59 // pred_fallthru
        _
    $region60: #{transformer_decoder_forward.8} parent=5 // pred_fallthru
      _
    %p1076 = scmp.le.s32.totalorder 2, %s16
    // Predicated region
    $region65: #{transformer_decoder_forward.8} parent=5 // pred_check
      %p1077 = pneg %p1076
    $region66: #{transformer_decoder_forward.8} parent=5 // pred_check_branch
      %1079 = sbr.rel (%p1077) target = $region68
    $region67: #{transformer_decoder_forward.8} parent=5 // pred_region
      %s1080 = ssub.s32 %s16, 2
      // Predicated region
      $region69: #{transformer_decoder_forward.8} parent=67 // pred_check
        %p1081 = pneg %p265
      $region70: #{transformer_decoder_forward.8} parent=67 // pred_check_branch
        %1083 = sbr.rel (%p1081) target = $region72
      $region71: #{transformer_decoder_forward.8} parent=67 // pred_region
        %p1084 = scmp.lt.s32.totalorder %s22, 1
        %s1085 = scalar_select %p1084, %s22, 1
        %s1086 = smul.addr %s1085, 8
        %s1087 = scalar_lea.vmem %s10, %s1086
      $region72: #{transformer_decoder_forward.8} parent=67 // pred_fallthru
        _
    $region68: #{transformer_decoder_forward.8} parent=5 // pred_fallthru
      _
  $region6: #{transformer_decoder_forward.8} parent=0 // loop_footer
    %s20 = sadd.s32 1, %s16
  $region7: #{transformer_decoder_forward.8} parent=0 // loop_footer_branch
    %15 = sbr.rel target = $region3
  $region8: #{transformer_decoder_forward.8} parent=0 // loop_exit
    _

</llo_original>
